<compile_context>
chip_gen: v7x
topology: tpu7x:2x2x1
jax: 0.10.0
libtpu: 0.0.40
codegen_flags: <defaults>
</compile_context>

<pallas_src>
import numpy as np
import jax
import jax.numpy as jnp
from jax import lax
from jax.experimental import pallas as pl
from jax.experimental.pallas import tpu as pltpu

NUM_CLASSES = 10
H0, W0 = 21, 3            # landmark height / coordinate width (as in _get_conv_output_size)
C1, C2, C3 = 32, 64, 128
HP1, HP2 = 10, 5          # heights after pool1 / pool2
FC1 = 128
FC_PAD = 128              # fc2 output padded to a full 128-lane slab
EPS = 1e-5                # PyTorch BatchNorm2d default eps


def _round_up(n, m):
    return ((n + m - 1) // m) * m


def _cdiv(a, b):
    return -(-a // b)


P1 = _round_up(HP1 * C1, 128)   # 384: even/odd slab width after conv1 (pool1 input)
P2 = _round_up(HP2 * C2, 128)   # 384: even/odd slab width after conv2 (pool2 input)
N3 = HP2 * C3                   # 640: conv3 output width (h*128 + c), lane aligned


# ----------------------------- Pallas kernel ------------------------------- #
def _make_gesture_kernel(bt):
    rows = W0 * bt

    def kernel(x_ref, m1_ref, b1_ref, m2_ref, b2_ref, m3_ref, b3_ref,
               fc1w_ref, fc1b_ref, fc2w_ref, fc2b_ref, out_ref):
        f32, bf16 = jnp.float32, jnp.bfloat16

        # (W0, bt, 21) f32 tile -> (W0*bt, 21) row matrix.
        # bt % 16 == 0, so the leading-dim merge is sublane/packing aligned.
        x2 = x_ref[...].reshape(rows, H0)

        # conv1 + folded BN1 + ReLU, in f32 (K=21 is ~3% of the MXU work).
        # Columns: [even-h slab | odd-h slab], P1 lanes each.
        a1 = jnp.maximum(
            jnp.dot(x2, m1_ref[...], preferred_element_type=f32) + b1_ref[...],
            0.0)
        # MaxPool2d((2,1)) on H: 21 -> 10 (row 20 dropped) == aligned two-slab max.
        p1 = jnp.maximum(a1[:, :P1], a1[:, P1:2 * P1]).astype(bf16)     # (rows, 384)

        # conv2 + BN2 + ReLU.
        a2 = jnp.maximum(
            jnp.dot(p1, m2_ref[...], preferred_element_type=f32) + b2_ref[...],
            0.0)
        # MaxPool on H: 10 -> 5.
        p2 = jnp.maximum(a2[:, :P2], a2[:, P2:2 * P2]).astype(bf16)     # (rows, 384)

        # conv3 + BN3 + ReLU.  Columns h*128 + c (already 128-lane aligned).
        a3 = jnp.maximum(
            jnp.dot(p2, m3_ref[...], preferred_element_type=f32) + b3_ref[...],
            0.0)                                                         # (rows, 640)
        a3b = a3.astype(bf16)            # cast once; reused by every w slice

        # fc1 over the NCHW flatten: sum over w of (bt, 640) @ (640, 128).
        # Row slices start at multiples of bt (multiple of 16) -> aligned.
        acc = jnp.dot(a3b[0:bt, :], fc1w_ref[0], preferred_element_type=f32)
        for w in range(1, W0):
            acc = acc + jnp.dot(a3b[w * bt:(w + 1) * bt, :], fc1w_ref[w],
                                preferred_element_type=f32)
        h1 = jnp.maximum(acc + fc1b_ref[...], 0.0).astype(bf16)         # (bt, 128)

        # Dropout(0.3) is identity at inference; fc2 into a 128-lane padded slab.
        out_ref[...] = (jnp.dot(h1, fc2w_ref[...], preferred_element_type=f32)
                        + fc2b_ref[...])

    return kernel


# --------------------------- parameter plumbing ----------------------------- #
def init_params(key, num_classes=NUM_CLASSES):
    keys = iter(jax.random.split(key, 32))

    def nrm(shape, s=0.1):
        return jax.random.normal(next(keys), shape, jnp.float32) * s

    p = {}
    for i, (cin, cout) in enumerate([(1, C1), (C1, C2), (C2, C3)], start=1):
        p[f"conv{i}_w"] = nrm((cout, cin, 3, 1), s=1.0 / np.sqrt(3.0 * cin))
        p[f"conv{i}_b"] = nrm((cout,), 0.05)
        p[f"bn{i}_g"] = 1.0 + nrm((cout,), 0.1)
        p[f"bn{i}_b"] = nrm((cout,), 0.1)
        p[f"bn{i}_m"] = nrm((cout,), 0.1)
        p[f"bn{i}_v"] = 0.8 + jnp.abs(nrm((cout,), 0.2))
    p["fc1_w"] = nrm((FC1, C3 * HP2 * W0), s=1.0 / np.sqrt(C3 * HP2 * W0))
    p["fc1_b"] = nrm((FC1,), 0.05)
    p["fc2_w"] = nrm((num_classes, FC1), s=1.0 / np.sqrt(FC1))
    p["fc2_b"] = nrm((num_classes,), 0.05)
    return p


def _fold_bn(conv_w, conv_b, g, b, m, v, eps=EPS):
    # Eval-mode BN folded into the preceding conv: returns (Cout, Cin, 3), (Cout,).
    scale = g / jnp.sqrt(v + eps)
    w_f = conv_w[:, :, :, 0] * scale[:, None, None]
    b_f = (conv_b - m) * scale + b
    return w_f, b_f


def _band_matrix(w_folded, h_in, h_out_list, n_rows, n_cols, row_start, col_start):
    # Banded matrix so that conv along H (kernel 3, pad 1) == x_flat @ M,
    # with arbitrary row/column block placement (host-side / trace-time glue).
    wn = np.asarray(w_folded)                 # (Cout, Cin, 3)
    cout, cin, _ = wn.shape
    M = np.zeros((n_rows, n_cols), np.float32)
    for ho in h_out_list:
        c0 = col_start(ho)
        for k in range(3):
            hi = ho - 1 + k
            if 0 <= hi < h_in:
                r0 = row_start(hi)
                M[r0:r0 + cin, c0:c0 + cout] = wn[:, :, k].T
    return M


def _bias_vector(b_folded, h_out_list, n_cols, col_start):
    bn = np.asarray(b_folded)
    cout = bn.shape[0]
    v = np.zeros((1, n_cols), np.float32)
    for ho in h_out_list:
        c0 = col_start(ho)
        v[0, c0:c0 + cout] = bn
    return v


def _prepare_operands(p, num_classes=NUM_CLASSES):
    w1, b1 = _fold_bn(p["conv1_w"], p["conv1_b"], p["bn1_g"], p["bn1_b"], p["bn1_m"], p["bn1_v"])
    w2, b2 = _fold_bn(p["conv2_w"], p["conv2_b"], p["bn2_g"], p["bn2_b"], p["bn2_m"], p["bn2_v"])
    w3, b3 = _fold_bn(p["conv3_w"], p["conv3_b"], p["bn3_g"], p["bn3_b"], p["bn3_m"], p["bn3_v"])

    # Column placement: even-h block slab first, odd-h block slab second, each
    # zero-padded to P1/P2 lanes so the pool is an aligned two-slab maximum.
    col1 = lambda ho: (ho % 2) * P1 + (ho // 2) * C1
    col2 = lambda ho: (ho % 2) * P2 + (ho // 2) * C2
    col3 = lambda ho: ho * C3

    # conv1: h_out = 20 is dropped by the floor-mode pool, so skip it entirely.
    m1 = _band_matrix(w1, H0, range(2 * HP1), H0, 2 * P1, lambda hi: hi, col1)
    m2 = _band_matrix(w2, HP1, range(HP1), P1, 2 * P2, lambda hi: hi * C1, col2)
    m3 = _band_matrix(w3, HP2, range(HP2), P2, N3, lambda hi: hi * C2, col3)
    bias1 = _bias_vector(b1, range(2 * HP1), 2 * P1, col1)
    bias2 = _bias_vector(b2, range(HP1), 2 * P2, col2)
    bias3 = _bias_vector(b3, range(HP2), N3, col3)

    # PyTorch flatten of NCHW (B,128,5,3): feature index = c*15 + h*3 + w.
    # Reorder fc1 weight to per-w blocks of (h*128 + c, out).
    fc1w = (np.asarray(p["fc1_w"]).reshape(FC1, C3, HP2, W0)
            .transpose(3, 2, 1, 0)            # (w, h, c, out)
            .reshape(W0, HP2 * C3, FC1))
    fc1b = np.asarray(p["fc1_b"])[None, :]

    # fc2 padded to 128 output lanes (lane-dense store); extra lanes are zero.
    fc2w = np.zeros((FC1, FC_PAD), np.float32)
    fc2w[:, :num_classes] = np.asarray(p["fc2_w"]).T
    fc2b = np.zeros((1, FC_PAD), np.float32)
    fc2b[0, :num_classes] = np.asarray(p["fc2_b"])

    bf16 = jnp.bfloat16
    return (jnp.asarray(m1, jnp.float32), jnp.asarray(bias1, jnp.float32),  # conv1 stays f32
            jnp.asarray(m2, bf16), jnp.asarray(bias2, jnp.float32),
            jnp.asarray(m3, bf16), jnp.asarray(bias3, jnp.float32),
            jnp.asarray(fc1w, bf16), jnp.asarray(fc1b, jnp.float32),
            jnp.asarray(fc2w, bf16), jnp.asarray(fc2b, jnp.float32))


# ---------------------- generation-aware tiling helpers ---------------------- #
def _tpu_defaults():
    """Returns (target_tile_rows, vmem_limit_bytes, min_grid_steps)."""
    kind = ""
    try:
        kind = jax.devices()[0].device_kind.lower()
    except Exception:
        pass
    vmem_cap = None
    try:
        vmem_cap = pltpu.get_tpu_info().vmem_capacity_bytes
    except Exception:
        pass
    is_v7 = ("v7" in kind) or ("tpu7" in kind)
    if is_v7 or (vmem_cap is not None and vmem_cap <= (64 << 20)):
        # v7x: 64 MiB physical VMEM per TC, 2 TensorCores -> want >= 2 grid steps.
        return 512, 48 * 1024 * 1024, 2
    if ("v5" in kind) or ("v6" in kind) or (vmem_cap is not None and vmem_cap >= (96 << 20)):
        # v5e/v6e: 128 MiB physical VMEM, single TensorCore -> big tiles.
        return 1024, 96 * 1024 * 1024, 1
    # Unknown generation: conservative settings that fit everywhere modern.
    return 512, 48 * 1024 * 1024, 1


def _choose_block_b(B, target_tile, min_grid):
    B = max(int(B), 1)
    n_tiles = max(_cdiv(B, target_tile), 1)
    # Megacore (v7x): force >= 2 tiles when the batch is big enough for the
    # split to be worthwhile (each tile stays >= 16 rows).
    if n_tiles < min_grid and B >= 16 * min_grid:
        n_tiles = min_grid
    # Balanced tiles avoid the ~2x padding blow-up just above a tile boundary
    # (e.g. B=257 with a 256 tile).  Multiple of 16 for bf16 sublane packing.
    return _round_up(_cdiv(B, n_tiles), 16)


_HAS_BUFFERED = hasattr(pl, "Buffered")


def _resident(arr):
    # Full-array block + constant index_map: DMA'd once, stays in VMEM.
    # Buffered(1): don't double-buffer weights that never change per step.
    nd = arr.ndim
    idx = lambda i, _nd=nd: (0,) * _nd
    if _HAS_BUFFERED:
        try:
            return pl.BlockSpec(arr.shape, idx, pipeline_mode=pl.Buffered(1))
        except TypeError:
            pass
    return pl.BlockSpec(arr.shape, idx)


# ------------------------------ forward wrappers ----------------------------- #
def hand_gesture_cnn_forward_whb(x_whb, params, num_classes=NUM_CLASSES, block_b=None):
    """x_whb: (W0=3, B, 21) float32 — pre-laid-out input (no wrapper transpose)."""
    B = x_whb.shape[1]
    target_tile, vmem_limit, min_grid = _tpu_defaults()
    if block_b is None:
        block_b = _choose_block_b(B, target_tile, min_grid)
    block_b = max(_round_up(int(block_b), 16), 16)
    b_pad = block_b * _cdiv(max(B, 1), block_b)

    xr = x_whb
    if b_pad != B:
        xr = jnp.pad(xr, ((0, 0), (0, b_pad - B), (0, 0)))

    ops = _prepare_operands(params, num_classes)

    out = pl.pallas_call(
        _make_gesture_kernel(block_b),
        out_shape=jax.ShapeDtypeStruct((b_pad, FC_PAD), jnp.float32),
        grid=(b_pad // block_b,),
        in_specs=[pl.BlockSpec((W0, block_b, H0), lambda i: (0, i, 0))]
                 + [_resident(o) for o in ops],
        out_specs=pl.BlockSpec((block_b, FC_PAD), lambda i: (i, 0)),
        compiler_params=pltpu.CompilerParams(
            dimension_semantics=("parallel",),
            vmem_limit_bytes=vmem_limit,
            # Let XLA fuse the input relayout into operand production when the
            # caller jits the whole forward (removes an extra HBM round trip).
            allow_input_fusion=[True] + [False] * len(ops)),
    )(xr, *ops)

    return out[:B, :num_classes]


def hand_gesture_cnn_forward(x, params, num_classes=NUM_CLASSES, block_b=None):
    """x: NCHW (B, 1, 21, 3) float32 landmarks (same layout as the PyTorch module)."""
    # (B,1,21,3) -> (W0, B, 21): one row of 21 H-values per (w, b).
    xr = jnp.transpose(x[:, 0, :, :], (2, 0, 1))
    return hand_gesture_cnn_forward_whb(xr, params, num_classes, block_b)


# ------------------------------ pure-JAX reference --------------------------- #
def reference_forward(x, p):
    def bn(y, g, b, m, v):
        return ((y - m[None, :, None, None])
                / jnp.sqrt(v[None, :, None, None] + EPS)
                * g[None, :, None, None] + b[None, :, None, None])

    def conv(y, w, b):
        o = lax.conv_general_dilated(y, w, (1, 1), ((1, 1), (0, 0)),
                                     dimension_numbers=("NCHW", "OIHW", "NCHW"))
        return o + b[None, :, None, None]

    def pool(y):
        return lax.reduce_window(y, -jnp.inf, lax.max,
                                 (1, 1, 2, 1), (1, 1, 2, 1), "VALID")

    relu = lambda t: jnp.maximum(t, 0.0)
    y = pool(relu(bn(conv(x, p["conv1_w"], p["conv1_b"]),
                     p["bn1_g"], p["bn1_b"], p["bn1_m"], p["bn1_v"])))
    y = pool(relu(bn(conv(y, p["conv2_w"], p["conv2_b"]),
                     p["bn2_g"], p["bn2_b"], p["bn2_m"], p["bn2_v"])))
    y = relu(bn(conv(y, p["conv3_w"], p["conv3_b"]),
                p["bn3_g"], p["bn3_b"], p["bn3_m"], p["bn3_v"]))
    y = y.reshape(y.shape[0], -1)
    y = relu(y @ p["fc1_w"].T + p["fc1_b"])
    return y @ p["fc2_w"].T + p["fc2_b"]


if __name__ == "__main__":
    key = jax.random.PRNGKey(0)
    kp, kx = jax.random.split(key)
    params = init_params(kp)

    B = 2
    x = jax.random.normal(kx, (B, 1, H0, W0), jnp.float32)

    out = hand_gesture_cnn_forward(x, params)
    out = jax.block_until_ready(out)
    assert out.shape == (B, NUM_CLASSES)

    ref = reference_forward(x, params)
    # bf16 operands (conv2/conv3/fc) with f32 accumulation: loose-ish tolerance.
    np.testing.assert_allclose(np.asarray(out), np.asarray(ref),
                               rtol=5e-2, atol=5e-2)
    print("KERNEL_OK")
</pallas_src>

<mosaic_0001>
module attributes {stable_mosaic.version = 11 : i64} {
  func.func @kernel(%arg0: i32, %arg1: memref<3x16x21xf32, #tpu.memory_space<vmem>>, %arg2: memref<21x768xf32, #tpu.memory_space<vmem>>, %arg3: memref<1x768xf32, #tpu.memory_space<vmem>>, %arg4: memref<384x768xbf16, #tpu.memory_space<vmem>>, %arg5: memref<1x768xf32, #tpu.memory_space<vmem>>, %arg6: memref<384x640xbf16, #tpu.memory_space<vmem>>, %arg7: memref<1x640xf32, #tpu.memory_space<vmem>>, %arg8: memref<3x640x128xbf16, #tpu.memory_space<vmem>>, %arg9: memref<1x128xf32, #tpu.memory_space<vmem>>, %arg10: memref<128x128xbf16, #tpu.memory_space<vmem>>, %arg11: memref<1x128xf32, #tpu.memory_space<vmem>>, %arg12: memref<16x128xf32, #tpu.memory_space<vmem>>) attributes {dimension_semantics = [#tpu.dimension_semantics<parallel>], iteration_bounds = array<i64: 1>, scalar_prefetch = 0 : i64, scratch_operands = 0 : i64, tpu.core_type = #tpu.core_type<tc>, window_params = [{transform_indices = @transform_0, window_bounds = array<i64: 3, 16, 21>}, {pipeline_mode = #tpu.pipeline_mode<synchronous>, transform_indices = @transform_1, window_bounds = array<i64: 21, 768>}, {pipeline_mode = #tpu.pipeline_mode<synchronous>, transform_indices = @transform_2, window_bounds = array<i64: 1, 768>}, {pipeline_mode = #tpu.pipeline_mode<synchronous>, transform_indices = @transform_3, window_bounds = array<i64: 384, 768>}, {pipeline_mode = #tpu.pipeline_mode<synchronous>, transform_indices = @transform_4, window_bounds = array<i64: 1, 768>}, {pipeline_mode = #tpu.pipeline_mode<synchronous>, transform_indices = @transform_5, window_bounds = array<i64: 384, 640>}, {pipeline_mode = #tpu.pipeline_mode<synchronous>, transform_indices = @transform_6, window_bounds = array<i64: 1, 640>}, {pipeline_mode = #tpu.pipeline_mode<synchronous>, transform_indices = @transform_7, window_bounds = array<i64: 3, 640, 128>}, {pipeline_mode = #tpu.pipeline_mode<synchronous>, transform_indices = @transform_8, window_bounds = array<i64: 1, 128>}, {pipeline_mode = #tpu.pipeline_mode<synchronous>, transform_indices = @transform_9, window_bounds = array<i64: 128, 128>}, {pipeline_mode = #tpu.pipeline_mode<synchronous>, transform_indices = @transform_10, window_bounds = array<i64: 1, 128>}, {transform_indices = @transform_11, window_bounds = array<i64: 16, 128>}]} {
    %c0 = arith.constant 0 : index
    %c0_0 = arith.constant 0 : index
    %c0_1 = arith.constant 0 : index
    %0 = vector.load %arg1[%c0, %c0_0, %c0_1] : memref<3x16x21xf32, #tpu.memory_space<vmem>>, vector<3x16x21xf32>
    %1 = vector.shape_cast %0 : vector<3x16x21xf32> to vector<48x21xf32>
    %c0_2 = arith.constant 0 : index
    %c0_3 = arith.constant 0 : index
    %2 = vector.load %arg2[%c0_2, %c0_3] : memref<21x768xf32, #tpu.memory_space<vmem>>, vector<21x768xf32>
    %cst = arith.constant dense<0.000000e+00> : vector<48x768xf32>
    %3 = tpu.matmul %1, %2, %cst {dimension_numbers = #tpu.dot_dimension_numbers<[1], [0], [0], [1], [0, 0, 1, 1], [], []>} : vector<48x21xf32>, vector<21x768xf32>, vector<48x768xf32> -> vector<48x768xf32>
    %c0_4 = arith.constant 0 : index
    %c0_5 = arith.constant 0 : index
    %4 = vector.load %arg3[%c0_4, %c0_5] : memref<1x768xf32, #tpu.memory_space<vmem>>, vector<1x768xf32>
    %5 = vector.broadcast %4 : vector<1x768xf32> to vector<48x768xf32>
    %6 = arith.addf %3, %5 : vector<48x768xf32>
    %cst_6 = arith.constant 0.000000e+00 : f32
    %7 = vector.broadcast %cst_6 : f32 to vector<48x768xf32>
    %8 = arith.maximumf %6, %7 : vector<48x768xf32>
    %9 = vector.extract_strided_slice %8 {offsets = [0, 0], sizes = [48, 384], strides = [1, 1]} : vector<48x768xf32> to vector<48x384xf32>
    %10 = vector.extract_strided_slice %8 {offsets = [0, 384], sizes = [48, 384], strides = [1, 1]} : vector<48x768xf32> to vector<48x384xf32>
    %11 = arith.maximumf %9, %10 : vector<48x384xf32>
    %12 = arith.truncf %11 : vector<48x384xf32> to vector<48x384xbf16>
    %c0_7 = arith.constant 0 : index
    %c0_8 = arith.constant 0 : index
    %13 = vector.load %arg4[%c0_7, %c0_8] : memref<384x768xbf16, #tpu.memory_space<vmem>>, vector<384x768xbf16>
    %cst_9 = arith.constant dense<0.000000e+00> : vector<48x768xf32>
    %14 = tpu.matmul %12, %13, %cst_9 {dimension_numbers = #tpu.dot_dimension_numbers<[1], [0], [0], [1], [0, 0, 1, 1], [], []>} : vector<48x384xbf16>, vector<384x768xbf16>, vector<48x768xf32> -> vector<48x768xf32>
    %c0_10 = arith.constant 0 : index
    %c0_11 = arith.constant 0 : index
    %15 = vector.load %arg5[%c0_10, %c0_11] : memref<1x768xf32, #tpu.memory_space<vmem>>, vector<1x768xf32>
    %16 = vector.broadcast %15 : vector<1x768xf32> to vector<48x768xf32>
    %17 = arith.addf %14, %16 : vector<48x768xf32>
    %cst_12 = arith.constant 0.000000e+00 : f32
    %18 = vector.broadcast %cst_12 : f32 to vector<48x768xf32>
    %19 = arith.maximumf %17, %18 : vector<48x768xf32>
    %20 = vector.extract_strided_slice %19 {offsets = [0, 0], sizes = [48, 384], strides = [1, 1]} : vector<48x768xf32> to vector<48x384xf32>
    %21 = vector.extract_strided_slice %19 {offsets = [0, 384], sizes = [48, 384], strides = [1, 1]} : vector<48x768xf32> to vector<48x384xf32>
    %22 = arith.maximumf %20, %21 : vector<48x384xf32>
    %23 = arith.truncf %22 : vector<48x384xf32> to vector<48x384xbf16>
    %c0_13 = arith.constant 0 : index
    %c0_14 = arith.constant 0 : index
    %24 = vector.load %arg6[%c0_13, %c0_14] : memref<384x640xbf16, #tpu.memory_space<vmem>>, vector<384x640xbf16>
    %cst_15 = arith.constant dense<0.000000e+00> : vector<48x640xf32>
    %25 = tpu.matmul %23, %24, %cst_15 {dimension_numbers = #tpu.dot_dimension_numbers<[1], [0], [0], [1], [0, 0, 1, 1], [], []>} : vector<48x384xbf16>, vector<384x640xbf16>, vector<48x640xf32> -> vector<48x640xf32>
    %c0_16 = arith.constant 0 : index
    %c0_17 = arith.constant 0 : index
    %26 = vector.load %arg7[%c0_16, %c0_17] : memref<1x640xf32, #tpu.memory_space<vmem>>, vector<1x640xf32>
    %27 = vector.broadcast %26 : vector<1x640xf32> to vector<48x640xf32>
    %28 = arith.addf %25, %27 : vector<48x640xf32>
    %cst_18 = arith.constant 0.000000e+00 : f32
    %29 = vector.broadcast %cst_18 : f32 to vector<48x640xf32>
    %30 = arith.maximumf %28, %29 : vector<48x640xf32>
    %31 = arith.truncf %30 : vector<48x640xf32> to vector<48x640xbf16>
    %32 = vector.extract_strided_slice %31 {offsets = [0, 0], sizes = [16, 640], strides = [1, 1]} : vector<48x640xbf16> to vector<16x640xbf16>
    %c0_19 = arith.constant 0 : index
    %c0_20 = arith.constant 0 : index
    %c0_21 = arith.constant 0 : index
    %33 = vector.load %arg8[%c0_19, %c0_20, %c0_21] : memref<3x640x128xbf16, #tpu.memory_space<vmem>>, vector<1x640x128xbf16>
    %34 = vector.shape_cast %33 : vector<1x640x128xbf16> to vector<640x128xbf16>
    %cst_22 = arith.constant dense<0.000000e+00> : vector<16x128xf32>
    %35 = tpu.matmul %32, %34, %cst_22 {dimension_numbers = #tpu.dot_dimension_numbers<[1], [0], [0], [1], [0, 0, 1, 1], [], []>} : vector<16x640xbf16>, vector<640x128xbf16>, vector<16x128xf32> -> vector<16x128xf32>
    %36 = vector.extract_strided_slice %31 {offsets = [16, 0], sizes = [16, 640], strides = [1, 1]} : vector<48x640xbf16> to vector<16x640xbf16>
    %c1 = arith.constant 1 : index
    %c0_23 = arith.constant 0 : index
    %c0_24 = arith.constant 0 : index
    %37 = vector.load %arg8[%c1, %c0_23, %c0_24] : memref<3x640x128xbf16, #tpu.memory_space<vmem>>, vector<1x640x128xbf16>
    %38 = vector.shape_cast %37 : vector<1x640x128xbf16> to vector<640x128xbf16>
    %cst_25 = arith.constant dense<0.000000e+00> : vector<16x128xf32>
    %39 = tpu.matmul %36, %38, %cst_25 {dimension_numbers = #tpu.dot_dimension_numbers<[1], [0], [0], [1], [0, 0, 1, 1], [], []>} : vector<16x640xbf16>, vector<640x128xbf16>, vector<16x128xf32> -> vector<16x128xf32>
    %40 = arith.addf %35, %39 : vector<16x128xf32>
    %41 = vector.extract_strided_slice %31 {offsets = [32, 0], sizes = [16, 640], strides = [1, 1]} : vector<48x640xbf16> to vector<16x640xbf16>
    %c2 = arith.constant 2 : index
    %c0_26 = arith.constant 0 : index
    %c0_27 = arith.constant 0 : index
    %42 = vector.load %arg8[%c2, %c0_26, %c0_27] : memref<3x640x128xbf16, #tpu.memory_space<vmem>>, vector<1x640x128xbf16>
    %43 = vector.shape_cast %42 : vector<1x640x128xbf16> to vector<640x128xbf16>
    %cst_28 = arith.constant dense<0.000000e+00> : vector<16x128xf32>
    %44 = tpu.matmul %41, %43, %cst_28 {dimension_numbers = #tpu.dot_dimension_numbers<[1], [0], [0], [1], [0, 0, 1, 1], [], []>} : vector<16x640xbf16>, vector<640x128xbf16>, vector<16x128xf32> -> vector<16x128xf32>
    %45 = arith.addf %40, %44 : vector<16x128xf32>
    %c0_29 = arith.constant 0 : index
    %c0_30 = arith.constant 0 : index
    %46 = vector.load %arg9[%c0_29, %c0_30] : memref<1x128xf32, #tpu.memory_space<vmem>>, vector<1x128xf32>
    %47 = vector.broadcast %46 : vector<1x128xf32> to vector<16x128xf32>
    %48 = arith.addf %45, %47 : vector<16x128xf32>
    %cst_31 = arith.constant 0.000000e+00 : f32
    %49 = vector.broadcast %cst_31 : f32 to vector<16x128xf32>
    %50 = arith.maximumf %48, %49 : vector<16x128xf32>
    %51 = arith.truncf %50 : vector<16x128xf32> to vector<16x128xbf16>
    %c0_32 = arith.constant 0 : index
    %c0_33 = arith.constant 0 : index
    %52 = vector.load %arg10[%c0_32, %c0_33] : memref<128x128xbf16, #tpu.memory_space<vmem>>, vector<128x128xbf16>
    %cst_34 = arith.constant dense<0.000000e+00> : vector<16x128xf32>
    %53 = tpu.matmul %51, %52, %cst_34 {dimension_numbers = #tpu.dot_dimension_numbers<[1], [0], [0], [1], [0, 0, 1, 1], [], []>} : vector<16x128xbf16>, vector<128x128xbf16>, vector<16x128xf32> -> vector<16x128xf32>
    %c0_35 = arith.constant 0 : index
    %c0_36 = arith.constant 0 : index
    %54 = vector.load %arg11[%c0_35, %c0_36] : memref<1x128xf32, #tpu.memory_space<vmem>>, vector<1x128xf32>
    %55 = vector.broadcast %54 : vector<1x128xf32> to vector<16x128xf32>
    %56 = arith.addf %53, %55 : vector<16x128xf32>
    %c0_37 = arith.constant 0 : index
    %c0_38 = arith.constant 0 : index
    %57 = vector.load %arg12[%c0_37, %c0_38] : memref<16x128xf32, #tpu.memory_space<vmem>>, vector<16x128xf32>
    tpu.vector_store %arg12[%c0_37, %c0_38], %56 {strides = array<i32>} : memref<16x128xf32, #tpu.memory_space<vmem>>, vector<16x128xf32>,
    return
  }
  func.func @transform_0(%arg0: i32) -> (i32, i32, i32) {
    %c0_i32 = arith.constant 0 : i32
    %c0_i32_0 = arith.constant 0 : i32
    %c0_i32_1 = arith.constant 0 : i32
    return %c0_i32, %arg0, %c0_i32_0 : i32, i32, i32
  }
  func.func @transform_1(%arg0: i32) -> (i32, i32) {
    %c0_i32 = arith.constant 0 : i32
    %c0_i32_0 = arith.constant 0 : i32
    %c0_i32_1 = arith.constant 0 : i32
    return %c0_i32, %c0_i32_0 : i32, i32
  }
  func.func @transform_2(%arg0: i32) -> (i32, i32) {
    %c0_i32 = arith.constant 0 : i32
    %c0_i32_0 = arith.constant 0 : i32
    %c0_i32_1 = arith.constant 0 : i32
    return %c0_i32, %c0_i32_0 : i32, i32
  }
  func.func @transform_3(%arg0: i32) -> (i32, i32) {
    %c0_i32 = arith.constant 0 : i32
    %c0_i32_0 = arith.constant 0 : i32
    %c0_i32_1 = arith.constant 0 : i32
    return %c0_i32, %c0_i32_0 : i32, i32
  }
  func.func @transform_4(%arg0: i32) -> (i32, i32) {
    %c0_i32 = arith.constant 0 : i32
    %c0_i32_0 = arith.constant 0 : i32
    %c0_i32_1 = arith.constant 0 : i32
    return %c0_i32, %c0_i32_0 : i32, i32
  }
  func.func @transform_5(%arg0: i32) -> (i32, i32) {
    %c0_i32 = arith.constant 0 : i32
    %c0_i32_0 = arith.constant 0 : i32
    %c0_i32_1 = arith.constant 0 : i32
    return %c0_i32, %c0_i32_0 : i32, i32
  }
  func.func @transform_6(%arg0: i32) -> (i32, i32) {
    %c0_i32 = arith.constant 0 : i32
    %c0_i32_0 = arith.constant 0 : i32
    %c0_i32_1 = arith.constant 0 : i32
    return %c0_i32, %c0_i32_0 : i32, i32
  }
  func.func @transform_7(%arg0: i32) -> (i32, i32, i32) {
    %c0_i32 = arith.constant 0 : i32
    %c0_i32_0 = arith.constant 0 : i32
    %c0_i32_1 = arith.constant 0 : i32
    %c0_i32_2 = arith.constant 0 : i32
    return %c0_i32, %c0_i32_0, %c0_i32_1 : i32, i32, i32
  }
  func.func @transform_8(%arg0: i32) -> (i32, i32) {
    %c0_i32 = arith.constant 0 : i32
    %c0_i32_0 = arith.constant 0 : i32
    %c0_i32_1 = arith.constant 0 : i32
    return %c0_i32, %c0_i32_0 : i32, i32
  }
  func.func @transform_9(%arg0: i32) -> (i32, i32) {
    %c0_i32 = arith.constant 0 : i32
    %c0_i32_0 = arith.constant 0 : i32
    %c0_i32_1 = arith.constant 0 : i32
    return %c0_i32, %c0_i32_0 : i32, i32
  }
  func.func @transform_10(%arg0: i32) -> (i32, i32) {
    %c0_i32 = arith.constant 0 : i32
    %c0_i32_0 = arith.constant 0 : i32
    %c0_i32_1 = arith.constant 0 : i32
    return %c0_i32, %c0_i32_0 : i32, i32
  }
  func.func @transform_11(%arg0: i32) -> (i32, i32) {
    %c0_i32 = arith.constant 0 : i32
    %c0_i32_0 = arith.constant 0 : i32
    return %arg0, %c0_i32 : i32, i32
  }
}

</mosaic_0001>

<llo_original>
// kernel: tpu_custom_call.1
$region0: #{tpu_custom_call.1}
  #allocation0 [shape = 'u32[]', space=smem, size = 0x4, offset = 0x4, fixed_abs, tag = 'smem constant byte address 0x4 - core index']
  #allocation1 [shape = 'u32[144,128]{1,0:T(1,128)}', space=vmem, size = 0x12000, scoped, tag = 'internal scratch']
  %s0 = inlined_call_operand.hbm [shape: f32[3,16,21], index: 0, kind: input, shape index: {}]
  %s1 = inlined_call_operand.hbm [shape: f32[21,768], index: 1, kind: input, shape index: {}]
  %s2 = inlined_call_operand.vmem [shape: f32[1,768], index: 2, kind: input, shape index: {}]
  %s3 = inlined_call_operand.hbm [shape: bf16[384,768], index: 3, kind: input, shape index: {}]
  %s4 = inlined_call_operand.vmem [shape: f32[1,768], index: 4, kind: input, shape index: {}]
  %s5 = inlined_call_operand.hbm [shape: bf16[384,640], index: 5, kind: input, shape index: {}]
  %s6 = inlined_call_operand.vmem [shape: f32[1,640], index: 6, kind: input, shape index: {}]
  %s7 = inlined_call_operand.hbm [shape: bf16[3,640,128], index: 7, kind: input, shape index: {}]
  %s8 = inlined_call_operand.vmem [shape: f32[1,128], index: 8, kind: input, shape index: {}]
  %s9 = inlined_call_operand.hbm [shape: bf16[128,128], index: 9, kind: input, shape index: {}]
  %s10 = inlined_call_operand.vmem [shape: f32[1,128], index: 10, kind: input, shape index: {}]
  %s11 = inlined_call_operand.hbm [shape: f32[16,128], index: 11, kind: output, shape index: {}]
  %s12 = sld [smem:[#allocation0]]
  $region78: #{tpu_custom_call.1} parent=0
    _
  %s14 = ssub.s32 1, %s12
  %s15 = scalar_select 0, %s14, %s12
  $region1: #{tpu_custom_call.1} parent=0
    #allocation2 [shape = 'u8[24576]{0}', space=vmem, size = 0x6000, scoped, tag = 'input window, operand 0, single buffered']
    #allocation3 [shape = 's32[1]{0}', space=sflag, size = 0x4, scoped, tag = 'scoped memory for tpu_custom_call.1']
    #allocation4 [shape = 's32[1]{0}', space=sflag, size = 0x4, scoped, tag = 'scoped memory for tpu_custom_call.1']
    #allocation5 [shape = 'u8[73728]{0}', space=vmem, size = 0x12000, scoped, tag = 'input window, operand 1, single buffered']
    #allocation6 [shape = 's32[1]{0}', space=sflag, size = 0x4, scoped, tag = 'scoped memory for tpu_custom_call.1']
    #allocation7 [shape = 'u8[589824]{0}', space=vmem, size = 0x90000, scoped, tag = 'input window, operand 3, single buffered']
    #allocation8 [shape = 'u8[491520]{0}', space=vmem, size = 0x78000, scoped, tag = 'input window, operand 5, single buffered']
    #allocation9 [shape = 's32[1]{0}', space=sflag, size = 0x4, scoped, tag = 'scoped memory for tpu_custom_call.1']
    #allocation10 [shape = 'u8[491520]{0}', space=vmem, size = 0x78000, scoped, tag = 'input window, operand 7, single buffered']
    #allocation11 [shape = 'u8[32768]{0}', space=vmem, size = 0x8000, scoped, tag = 'input window, operand 9, single buffered']
    #allocation12 [shape = 's32[1]{0}', space=sflag, size = 0x4, scoped, tag = 'scoped memory for tpu_custom_call.1']
    #allocation13 [shape = 'u8[8192]{0}', space=vmem, size = 0x2000, scoped, tag = 'output window, operand 0, single buffered']
    %16 = vsyncpa [#allocation3], 0
    %17 = vsyncpa [#allocation6], 0
    %18 = vsyncpa [#allocation9], 0
    %19 = vsyncpa [#allocation12], 0
    %20 = vsyncpa [#allocation4], 0
    // Predicated region
    $region2: #{tpu_custom_call.1} parent=1 // pred_check
      _
    $region3: #{tpu_custom_call.1} parent=1 // pred_check_branch
      %22 = sbr.rel (0) target = $region5
    $region4: #{tpu_custom_call.1} parent=1 // pred_region
      %s24 = ssub.s32 768, 768
      %25 = vsyncadd [#allocation3], %s24
      %s26 = sshll.u32 [#allocation2], 4
      %s27 = int_to_ptr.vmem [resolvable:$true] %s26
      %32 = dma.hbm_to_vmem [thread:$0]  %s0, 768, %s27, [#allocation3], 128, 128, 8
    $region5: #{tpu_custom_call.1} parent=1 // pred_fallthru
      _
    // Predicated region
    $region6: #{tpu_custom_call.1} parent=1 // pred_check
      _
    $region7: #{tpu_custom_call.1} parent=1 // pred_check_branch
      %34 = sbr.rel (0) target = $region9
    $region8: #{tpu_custom_call.1} parent=1 // pred_region
      %s36 = ssub.s32 2304, 2304
      %37 = vsyncadd [#allocation6], %s36
      %s38 = sshll.u32 [#allocation5], 4
      %s39 = int_to_ptr.vmem [resolvable:$true] %s38
      %44 = dma.hbm_to_vmem [thread:$0]  %s1, 2304, %s39, [#allocation6], 768, 768, 48
    $region9: #{tpu_custom_call.1} parent=1 // pred_fallthru
      _
    // Predicated region
    $region10: #{tpu_custom_call.1} parent=1 // pred_check
      _
    $region11: #{tpu_custom_call.1} parent=1 // pred_check_branch
      %46 = sbr.rel (0) target = $region13
    $region12: #{tpu_custom_call.1} parent=1 // pred_region
      _
    $region13: #{tpu_custom_call.1} parent=1 // pred_fallthru
      _
    // Predicated region
    $region14: #{tpu_custom_call.1} parent=1 // pred_check
      _
    $region15: #{tpu_custom_call.1} parent=1 // pred_check_branch
      %48 = sbr.rel (0) target = $region17
    $region16: #{tpu_custom_call.1} parent=1 // pred_region
      %s50 = ssub.s32 18432, 18432
      %51 = vsyncadd [#allocation6], %s50
      %s52 = sshll.u32 [#allocation7], 4
      %s53 = int_to_ptr.vmem [resolvable:$true] %s52
      %58 = dma.hbm_to_vmem [thread:$0]  %s3, 18432, %s53, [#allocation6], 384, 384, 24
    $region17: #{tpu_custom_call.1} parent=1 // pred_fallthru
      _
    // Predicated region
    $region18: #{tpu_custom_call.1} parent=1 // pred_check
      _
    $region19: #{tpu_custom_call.1} parent=1 // pred_check_branch
      %60 = sbr.rel (0) target = $region21
    $region20: #{tpu_custom_call.1} parent=1 // pred_region
      _
    $region21: #{tpu_custom_call.1} parent=1 // pred_fallthru
      _
    // Predicated region
    $region22: #{tpu_custom_call.1} parent=1 // pred_check
      _
    $region23: #{tpu_custom_call.1} parent=1 // pred_check_branch
      %62 = sbr.rel (0) target = $region25
    $region24: #{tpu_custom_call.1} parent=1 // pred_region
      %s64 = ssub.s32 15360, 15360
      %65 = vsyncadd [#allocation9], %s64
      %s66 = sshll.u32 [#allocation8], 4
      %s67 = int_to_ptr.vmem [resolvable:$true] %s66
      %72 = dma.hbm_to_vmem [thread:$0]  %s5, 15360, %s67, [#allocation9], 320, 320, 20
    $region25: #{tpu_custom_call.1} parent=1 // pred_fallthru
      _
    // Predicated region
    $region26: #{tpu_custom_call.1} parent=1 // pred_check
      _
    $region27: #{tpu_custom_call.1} parent=1 // pred_check_branch
      %74 = sbr.rel (0) target = $region29
    $region28: #{tpu_custom_call.1} parent=1 // pred_region
      _
    $region29: #{tpu_custom_call.1} parent=1 // pred_fallthru
      _
    // Predicated region
    $region30: #{tpu_custom_call.1} parent=1 // pred_check
      _
    $region31: #{tpu_custom_call.1} parent=1 // pred_check_branch
      %76 = sbr.rel (0) target = $region33
    $region32: #{tpu_custom_call.1} parent=1 // pred_region
      %s78 = ssub.s32 15360, 15360
      %79 = vsyncadd [#allocation9], %s78
      %s80 = sshll.u32 [#allocation10], 4
      %s81 = int_to_ptr.vmem [resolvable:$true] %s80
      %86 = dma.hbm_to_vmem [thread:$0]  %s7, 15360, %s81, [#allocation9], 64, 64, 4
    $region33: #{tpu_custom_call.1} parent=1 // pred_fallthru
      _
    // Predicated region
    $region34: #{tpu_custom_call.1} parent=1 // pred_check
      _
    $region35: #{tpu_custom_call.1} parent=1 // pred_check_branch
      %88 = sbr.rel (0) target = $region37
    $region36: #{tpu_custom_call.1} parent=1 // pred_region
      _
    $region37: #{tpu_custom_call.1} parent=1 // pred_fallthru
      _
    // Predicated region
    $region38: #{tpu_custom_call.1} parent=1 // pred_check
      _
    $region39: #{tpu_custom_call.1} parent=1 // pred_check_branch
      %90 = sbr.rel (0) target = $region41
    $region40: #{tpu_custom_call.1} parent=1 // pred_region
      %s92 = ssub.s32 1024, 1024
      %93 = vsyncadd [#allocation12], %s92
      %s94 = sshll.u32 [#allocation11], 4
      %s95 = int_to_ptr.vmem [resolvable:$true] %s94
      %100 = dma.hbm_to_vmem [thread:$0]  %s9, 1024, %s95, [#allocation12], 64, 64, 4
    $region41: #{tpu_custom_call.1} parent=1 // pred_fallthru
      _
    // Predicated region
    $region42: #{tpu_custom_call.1} parent=1 // pred_check
      _
    $region43: #{tpu_custom_call.1} parent=1 // pred_check_branch
      %102 = sbr.rel (0) target = $region45
    $region44: #{tpu_custom_call.1} parent=1 // pred_region
      _
    $region45: #{tpu_custom_call.1} parent=1 // pred_fallthru
      _
    // Predicated region
    $region46: #{tpu_custom_call.1} parent=1 // pred_check
      _
    $region47: #{tpu_custom_call.1} parent=1 // pred_check_branch
      %104 = sbr.rel (0) target = $region49
    $region48: #{tpu_custom_call.1} parent=1 // pred_region
      %105 = dma.done [#allocation3], 768
    $region49: #{tpu_custom_call.1} parent=1 // pred_fallthru
      _
    // Predicated region
    $region50: #{tpu_custom_call.1} parent=1 // pred_check
      _
    $region51: #{tpu_custom_call.1} parent=1 // pred_check_branch
      %107 = sbr.rel (0) target = $region53
    $region52: #{tpu_custom_call.1} parent=1 // pred_region
      %108 = dma.done [#allocation6], 2304
    $region53: #{tpu_custom_call.1} parent=1 // pred_fallthru
      _
    // Predicated region
    $region54: #{tpu_custom_call.1} parent=1 // pred_check
      _
    $region55: #{tpu_custom_call.1} parent=1 // pred_check_branch
      %110 = sbr.rel (0) target = $region57
    $region56: #{tpu_custom_call.1} parent=1 // pred_region
      %111 = dma.done [#allocation6], 18432
    $region57: #{tpu_custom_call.1} parent=1 // pred_fallthru
      _
    // Predicated region
    $region58: #{tpu_custom_call.1} parent=1 // pred_check
      _
    $region59: #{tpu_custom_call.1} parent=1 // pred_check_branch
      %113 = sbr.rel (0) target = $region61
    $region60: #{tpu_custom_call.1} parent=1 // pred_region
      %114 = dma.done [#allocation9], 15360
    $region61: #{tpu_custom_call.1} parent=1 // pred_fallthru
      _
    // Predicated region
    $region62: #{tpu_custom_call.1} parent=1 // pred_check
      _
    $region63: #{tpu_custom_call.1} parent=1 // pred_check_branch
      %116 = sbr.rel (0) target = $region65
    $region64: #{tpu_custom_call.1} parent=1 // pred_region
      %117 = dma.done [#allocation9], 15360
    $region65: #{tpu_custom_call.1} parent=1 // pred_fallthru
      _
    // Predicated region
    $region66: #{tpu_custom_call.1} parent=1 // pred_check
      _
    $region67: #{tpu_custom_call.1} parent=1 // pred_check_branch
      %119 = sbr.rel (0) target = $region69
    $region68: #{tpu_custom_call.1} parent=1 // pred_region
      %120 = dma.done [#allocation12], 1024
    $region69: #{tpu_custom_call.1} parent=1 // pred_fallthru
      _
    %v122 = vld [vmem:[#allocation2] sm:$0xff]
    %v123 = vld [vmem:[#allocation2 + $0x8] sm:$0xff]
    %v124 = vld [vmem:[#allocation2 + $0x10] sm:$0xff]
    %v125 = vld [vmem:[#allocation2 + $0x18] sm:$0xff]
    %v126 = vld [vmem:[#allocation2 + $0x20] sm:$0xff]
    %v127 = vld [vmem:[#allocation2 + $0x28] sm:$0xff]
    %v128 = vld [vmem:[#allocation5] sm:$0xff]
    %v129 = vld [vmem:[#allocation5 + $0x8] sm:$0xff]
    %v130 = vld [vmem:[#allocation5 + $0x10] sm:$0xff]
    %v131 = vld [vmem:[#allocation5 + $0x18] sm:$0xff]
    %v132 = vld [vmem:[#allocation5 + $0x20] sm:$0xff]
    %v133 = vld [vmem:[#allocation5 + $0x28] sm:$0xff]
    %v134 = vld [vmem:[#allocation5 + $0x30] sm:$0xff]
    %v135 = vld [vmem:[#allocation5 + $0x38] sm:$0xff]
    %v136 = vld [vmem:[#allocation5 + $0x40] sm:$0xff]
    %v137 = vld [vmem:[#allocation5 + $0x48] sm:$0xff]
    %v138 = vld [vmem:[#allocation5 + $0x50] sm:$0xff]
    %v139 = vld [vmem:[#allocation5 + $0x58] sm:$0xff]
    %v140 = vld [vmem:[#allocation5 + $0x60] sm:$0x1f]
    %v141 = vld [vmem:[#allocation5 + $0x68] sm:$0x1f]
    %v142 = vld [vmem:[#allocation5 + $0x70] sm:$0x1f]
    %v143 = vld [vmem:[#allocation5 + $0x78] sm:$0x1f]
    %v144 = vld [vmem:[#allocation5 + $0x80] sm:$0x1f]
    %v145 = vld [vmem:[#allocation5 + $0x88] sm:$0x1f]
    %v146 = vld [vmem:[%s2] sm:$0x3f]
    %v148 = vlaneseq
    %v149 = vshrl.u32 %v148, 7
    %v150 = vsub.s32 0, %v149
    %v151 = vrot.slane %v146, %v150
    %v152 = vlaneseq
    %v153 = vshrl.u32 %v152, 7
    %v154 = vsub.s32 1, %v153
    %v155 = vrot.slane %v146, %v154
    %v156 = vlaneseq
    %v157 = vshrl.u32 %v156, 7
    %v158 = vsub.s32 2, %v157
    %v159 = vrot.slane %v146, %v158
    %v160 = vlaneseq
    %v161 = vshrl.u32 %v160, 7
    %v162 = vsub.s32 3, %v161
    %v163 = vrot.slane %v146, %v162
    %v164 = vlaneseq
    %v165 = vshrl.u32 %v164, 7
    %v166 = vsub.s32 4, %v165
    %v167 = vrot.slane %v146, %v166
    %v168 = vlaneseq
    %v169 = vshrl.u32 %v168, 7
    %v170 = vsub.s32 5, %v169
    %v171 = vrot.slane %v146, %v170
    %vm178 = vcmask 171008
    %v180 = vsel %vm178, %v122, 0
    %v183 = vsel %vm178, %v123, 0
    %v186 = vsel %vm178, %v124, 0
    %v189 = vsel %vm178, %v125, 0
    %v192 = vsel %vm178, %v126, 0
    %v195 = vsel %vm178, %v127, 0
    %vm197 = vcmask 1044480
    %v199 = vsel %vm197, %v140, 0
    %v202 = vsel %vm197, %v141, 0
    %v205 = vsel %vm197, %v142, 0
    %v208 = vsel %vm197, %v143, 0
    %v211 = vsel %vm197, %v144, 0
    %v214 = vsel %vm197, %v145, 0
    %216 = vmatprep.subr.mxu0 %v129
    %217 = vmatpush1.msra.mxu0 %v128
    %218 = vmatprep.subr.mxu0 %v135
    %219 = vmatpush1.msra.mxu0 %v134
    %220 = vmatprep.subr.mxu0 %v202
    %221 = vmatpush1.msra.mxu0 %v199
    %222 = vmatprep.subr.mxu0 0.0
    %223 = vmatpush1.msra.mxu0 0.0
    %224 = vmatprep.subr.mxu0 0.0
    %225 = vmatpush1.msra.mxu0 0.0
    %226 = vmatprep.subr.mxu0 0.0
    %227 = vmatpush1.msra.mxu0 0.0
    %228 = vmatprep.subr.mxu0 0.0
    %229 = vmatpush1.msra.mxu0 0.0
    %230 = vmatprep.subr.mxu0 0.0
    %231 = vmatpush1.msra.mxu0 0.0
    %232 = vmatprep.subr.mxu0 0.0
    %233 = vmatpush1.msra.mxu0 0.0
    %234 = vmatprep.subr.mxu0 0.0
    %235 = vmatpush1.msra.mxu0 0.0
    %236 = vmatprep.subr.mxu0 0.0
    %237 = vmatpush1.msra.mxu0 0.0
    %238 = vmatprep.subr.mxu0 0.0
    %239 = vmatpush1.msra.mxu0 0.0
    %240 = vmatprep.subr.mxu0 0.0
    %241 = vmatpush1.msra.mxu0 0.0
    %242 = vmatprep.subr.mxu0 0.0
    %243 = vmatpush1.msra.mxu0 0.0
    %244 = vmatprep.subr.mxu0 0.0
    %245 = vmatpush1.msra.mxu0 0.0
    %246 = vmatprep.subr.mxu0 0.0
    %247 = vmatpush1.msra.mxu0 0.0
    %248 = vmatprep.subr.mxu0 0.0
    %249 = vmatpush1.msra.mxu0 0.0
    %250 = vmatprep.subr.mxu0 0.0
    %251 = vmatpush1.msra.mxu0 0.0
    %252 = vmatprep.subr.mxu0 0.0
    %253 = vmatpush1.msra.mxu0 0.0
    %254 = vmatprep.subr.mxu0 0.0
    %255 = vmatpush1.msra.mxu0 0.0
    %256 = vmatprep.subr.mxu0 0.0
    %257 = vmatpush1.msra.mxu0 0.0
    %258 = vmatprep.subr.mxu0 0.0
    %259 = vmatpush1.msra.mxu0 0.0
    %260 = vmatprep.subr.mxu0 0.0
    %261 = vmatpush1.msra.mxu0 0.0
    %262 = vmatprep.subr.mxu0 0.0
    %263 = vmatpush1.msra.mxu0 0.0
    %264 = vmatprep.subr.mxu0 0.0
    %265 = vmatpush1.msra.mxu0 0.0
    %266 = vmatprep.subr.mxu0 0.0
    %267 = vmatpush1.msra.mxu0 0.0
    %268 = vmatprep.subr.mxu0 0.0
    %269 = vmatpush1.msra.mxu0 0.0
    %270 = vmatprep.subr.mxu0 0.0
    %271 = vmatpush1.msra.mxu0 0.0
    %272 = vmatprep.subr.mxu0 0.0
    %273 = vmatpush1.msra.mxu0 0.0
    %274 = vmatprep.subr.mxu0 0.0
    %275 = vmatpush1.msra.mxu0 0.0
    %276 = vmatprep.subr.mxu0 0.0
    %277 = vmatpush1.msra.mxu0 0.0
    %278 = vmatprep.subr.mxu0 0.0
    %279 = vmatpush1.msra.mxu0 0.0
    %280 = vmatprep.mubr.f32.mxu0 0.0
    %281 = vmatmul.mubr.f32.gmra.mrb[0].mxu0 %v180
    %v282 = vpop.f32.mrb[0].mxu0
    %v283 = vadd.f32 %v151, %v282
    %v284 = vpop.f32.mrb[0].mxu0
    %v285 = vadd.f32 %v155, %v284
    %286 = vmatprep.mubr.f32.mxu0 0.0
    %287 = vmatmul.mubr.f32.gmra.mrb[0].mxu0 %v183
    %v288 = vpop.f32.mrb[0].mxu0
    %v289 = vadd.f32 %v151, %v288
    %v290 = vpop.f32.mrb[0].mxu0
    %v291 = vadd.f32 %v155, %v290
    %292 = vmatprep.mubr.f32.mxu0 0.0
    %293 = vmatmul.mubr.f32.gmra.mrb[0].mxu0 %v186
    %v294 = vpop.f32.mrb[0].mxu0
    %v295 = vadd.f32 %v151, %v294
    %v296 = vpop.f32.mrb[0].mxu0
    %v297 = vadd.f32 %v155, %v296
    %298 = vmatprep.mubr.f32.mxu0 0.0
    %299 = vmatmul.mubr.f32.gmra.mrb[0].mxu0 %v189
    %v300 = vpop.f32.mrb[0].mxu0
    %v301 = vadd.f32 %v151, %v300
    %v302 = vpop.f32.mrb[0].mxu0
    %v303 = vadd.f32 %v155, %v302
    %304 = vmatprep.mubr.f32.mxu0 0.0
    %305 = vmatmul.mubr.f32.gmra.mrb[0].mxu0 %v192
    %v306 = vpop.f32.mrb[0].mxu0
    %v307 = vadd.f32 %v151, %v306
    %v308 = vpop.f32.mrb[0].mxu0
    %v309 = vadd.f32 %v155, %v308
    %310 = vmatprep.mubr.f32.mxu0 0.0
    %311 = vmatmul.mubr.f32.gmra.mrb[0].mxu0 %v195
    %v312 = vpop.f32.mrb[0].mxu0
    %v313 = vadd.f32 %v151, %v312
    %v314 = vpop.f32.mrb[0].mxu0
    %v315 = vadd.f32 %v155, %v314
    %316 = vdwg.mxu0
    %317 = vmatprep.subr.mxu0 %v131
    %318 = vmatpush1.msra.mxu0 %v130
    %319 = vmatprep.subr.mxu0 %v137
    %320 = vmatpush1.msra.mxu0 %v136
    %321 = vmatprep.subr.mxu0 %v208
    %322 = vmatpush1.msra.mxu0 %v205
    %323 = vmatprep.subr.mxu0 0.0
    %324 = vmatpush1.msra.mxu0 0.0
    %325 = vmatprep.subr.mxu0 0.0
    %326 = vmatpush1.msra.mxu0 0.0
    %327 = vmatprep.subr.mxu0 0.0
    %328 = vmatpush1.msra.mxu0 0.0
    %329 = vmatprep.subr.mxu0 0.0
    %330 = vmatpush1.msra.mxu0 0.0
    %331 = vmatprep.subr.mxu0 0.0
    %332 = vmatpush1.msra.mxu0 0.0
    %333 = vmatprep.subr.mxu0 0.0
    %334 = vmatpush1.msra.mxu0 0.0
    %335 = vmatprep.subr.mxu0 0.0
    %336 = vmatpush1.msra.mxu0 0.0
    %337 = vmatprep.subr.mxu0 0.0
    %338 = vmatpush1.msra.mxu0 0.0
    %339 = vmatprep.subr.mxu0 0.0
    %340 = vmatpush1.msra.mxu0 0.0
    %341 = vmatprep.subr.mxu0 0.0
    %342 = vmatpush1.msra.mxu0 0.0
    %343 = vmatprep.subr.mxu0 0.0
    %344 = vmatpush1.msra.mxu0 0.0
    %345 = vmatprep.subr.mxu0 0.0
    %346 = vmatpush1.msra.mxu0 0.0
    %347 = vmatprep.subr.mxu0 0.0
    %348 = vmatpush1.msra.mxu0 0.0
    %349 = vmatprep.subr.mxu0 0.0
    %350 = vmatpush1.msra.mxu0 0.0
    %351 = vmatprep.subr.mxu0 0.0
    %352 = vmatpush1.msra.mxu0 0.0
    %353 = vmatprep.subr.mxu0 0.0
    %354 = vmatpush1.msra.mxu0 0.0
    %355 = vmatprep.subr.mxu0 0.0
    %356 = vmatpush1.msra.mxu0 0.0
    %357 = vmatprep.subr.mxu0 0.0
    %358 = vmatpush1.msra.mxu0 0.0
    %359 = vmatprep.subr.mxu0 0.0
    %360 = vmatpush1.msra.mxu0 0.0
    %361 = vmatprep.subr.mxu0 0.0
    %362 = vmatpush1.msra.mxu0 0.0
    %363 = vmatprep.subr.mxu0 0.0
    %364 = vmatpush1.msra.mxu0 0.0
    %365 = vmatprep.subr.mxu0 0.0
    %366 = vmatpush1.msra.mxu0 0.0
    %367 = vmatprep.subr.mxu0 0.0
    %368 = vmatpush1.msra.mxu0 0.0
    %369 = vmatprep.subr.mxu0 0.0
    %370 = vmatpush1.msra.mxu0 0.0
    %371 = vmatprep.subr.mxu0 0.0
    %372 = vmatpush1.msra.mxu0 0.0
    %373 = vmatprep.subr.mxu0 0.0
    %374 = vmatpush1.msra.mxu0 0.0
    %375 = vmatprep.subr.mxu0 0.0
    %376 = vmatpush1.msra.mxu0 0.0
    %377 = vmatprep.subr.mxu0 0.0
    %378 = vmatpush1.msra.mxu0 0.0
    %379 = vmatprep.subr.mxu0 0.0
    %380 = vmatpush1.msra.mxu0 0.0
    %381 = vmatprep.mubr.f32.mxu0 0.0
    %382 = vmatmul.mubr.f32.gmra.mrb[0].mxu0 %v180
    %v383 = vpop.f32.mrb[0].mxu0
    %v384 = vadd.f32 %v159, %v383
    %v385 = vpop.f32.mrb[0].mxu0
    %v386 = vadd.f32 %v163, %v385
    %387 = vmatprep.mubr.f32.mxu0 0.0
    %388 = vmatmul.mubr.f32.gmra.mrb[0].mxu0 %v183
    %v389 = vpop.f32.mrb[0].mxu0
    %v390 = vadd.f32 %v159, %v389
    %v391 = vpop.f32.mrb[0].mxu0
    %v392 = vadd.f32 %v163, %v391
    %393 = vmatprep.mubr.f32.mxu0 0.0
    %394 = vmatmul.mubr.f32.gmra.mrb[0].mxu0 %v186
    %v395 = vpop.f32.mrb[0].mxu0
    %v396 = vadd.f32 %v159, %v395
    %v397 = vpop.f32.mrb[0].mxu0
    %v398 = vadd.f32 %v163, %v397
    %399 = vmatprep.mubr.f32.mxu0 0.0
    %400 = vmatmul.mubr.f32.gmra.mrb[0].mxu0 %v189
    %v401 = vpop.f32.mrb[0].mxu0
    %v402 = vadd.f32 %v159, %v401
    %v403 = vpop.f32.mrb[0].mxu0
    %v404 = vadd.f32 %v163, %v403
    %405 = vmatprep.mubr.f32.mxu0 0.0
    %406 = vmatmul.mubr.f32.gmra.mrb[0].mxu0 %v192
    %v407 = vpop.f32.mrb[0].mxu0
    %v408 = vadd.f32 %v159, %v407
    %v409 = vpop.f32.mrb[0].mxu0
    %v410 = vadd.f32 %v163, %v409
    %411 = vmatprep.mubr.f32.mxu0 0.0
    %412 = vmatmul.mubr.f32.gmra.mrb[0].mxu0 %v195
    %v413 = vpop.f32.mrb[0].mxu0
    %v414 = vadd.f32 %v159, %v413
    %v415 = vpop.f32.mrb[0].mxu0
    %v416 = vadd.f32 %v163, %v415
    %417 = vdwg.mxu0
    %418 = vmatprep.subr.mxu0 %v133
    %419 = vmatpush1.msra.mxu0 %v132
    %420 = vmatprep.subr.mxu0 %v139
    %421 = vmatpush1.msra.mxu0 %v138
    %422 = vmatprep.subr.mxu0 %v214
    %423 = vmatpush1.msra.mxu0 %v211
    %424 = vmatprep.subr.mxu0 0.0
    %425 = vmatpush1.msra.mxu0 0.0
    %426 = vmatprep.subr.mxu0 0.0
    %427 = vmatpush1.msra.mxu0 0.0
    %428 = vmatprep.subr.mxu0 0.0
    %429 = vmatpush1.msra.mxu0 0.0
    %430 = vmatprep.subr.mxu0 0.0
    %431 = vmatpush1.msra.mxu0 0.0
    %432 = vmatprep.subr.mxu0 0.0
    %433 = vmatpush1.msra.mxu0 0.0
    %434 = vmatprep.subr.mxu0 0.0
    %435 = vmatpush1.msra.mxu0 0.0
    %436 = vmatprep.subr.mxu0 0.0
    %437 = vmatpush1.msra.mxu0 0.0
    %438 = vmatprep.subr.mxu0 0.0
    %439 = vmatpush1.msra.mxu0 0.0
    %440 = vmatprep.subr.mxu0 0.0
    %441 = vmatpush1.msra.mxu0 0.0
    %442 = vmatprep.subr.mxu0 0.0
    %443 = vmatpush1.msra.mxu0 0.0
    %444 = vmatprep.subr.mxu0 0.0
    %445 = vmatpush1.msra.mxu0 0.0
    %446 = vmatprep.subr.mxu0 0.0
    %447 = vmatpush1.msra.mxu0 0.0
    %448 = vmatprep.subr.mxu0 0.0
    %449 = vmatpush1.msra.mxu0 0.0
    %450 = vmatprep.subr.mxu0 0.0
    %451 = vmatpush1.msra.mxu0 0.0
    %452 = vmatprep.subr.mxu0 0.0
    %453 = vmatpush1.msra.mxu0 0.0
    %454 = vmatprep.subr.mxu0 0.0
    %455 = vmatpush1.msra.mxu0 0.0
    %456 = vmatprep.subr.mxu0 0.0
    %457 = vmatpush1.msra.mxu0 0.0
    %458 = vmatprep.subr.mxu0 0.0
    %459 = vmatpush1.msra.mxu0 0.0
    %460 = vmatprep.subr.mxu0 0.0
    %461 = vmatpush1.msra.mxu0 0.0
    %462 = vmatprep.subr.mxu0 0.0
    %463 = vmatpush1.msra.mxu0 0.0
    %464 = vmatprep.subr.mxu0 0.0
    %465 = vmatpush1.msra.mxu0 0.0
    %466 = vmatprep.subr.mxu0 0.0
    %467 = vmatpush1.msra.mxu0 0.0
    %468 = vmatprep.subr.mxu0 0.0
    %469 = vmatpush1.msra.mxu0 0.0
    %470 = vmatprep.subr.mxu0 0.0
    %471 = vmatpush1.msra.mxu0 0.0
    %472 = vmatprep.subr.mxu0 0.0
    %473 = vmatpush1.msra.mxu0 0.0
    %474 = vmatprep.subr.mxu0 0.0
    %475 = vmatpush1.msra.mxu0 0.0
    %476 = vmatprep.subr.mxu0 0.0
    %477 = vmatpush1.msra.mxu0 0.0
    %478 = vmatprep.subr.mxu0 0.0
    %479 = vmatpush1.msra.mxu0 0.0
    %480 = vmatprep.subr.mxu0 0.0
    %481 = vmatpush1.msra.mxu0 0.0
    %482 = vmatprep.mubr.f32.mxu0 0.0
    %483 = vmatmul.mubr.f32.gmra.mrb[0].mxu0 %v180
    %v484 = vpop.f32.mrb[0].mxu0
    %v485 = vadd.f32 %v167, %v484
    %v486 = vpop.f32.mrb[0].mxu0
    %v487 = vadd.f32 %v171, %v486
    %488 = vmatprep.mubr.f32.mxu0 0.0
    %489 = vmatmul.mubr.f32.gmra.mrb[0].mxu0 %v183
    %v490 = vpop.f32.mrb[0].mxu0
    %v491 = vadd.f32 %v167, %v490
    %v492 = vpop.f32.mrb[0].mxu0
    %v493 = vadd.f32 %v171, %v492
    %494 = vmatprep.mubr.f32.mxu0 0.0
    %495 = vmatmul.mubr.f32.gmra.mrb[0].mxu0 %v186
    %v496 = vpop.f32.mrb[0].mxu0
    %v497 = vadd.f32 %v167, %v496
    %v498 = vpop.f32.mrb[0].mxu0
    %v499 = vadd.f32 %v171, %v498
    %500 = vmatprep.mubr.f32.mxu0 0.0
    %501 = vmatmul.mubr.f32.gmra.mrb[0].mxu0 %v189
    %v502 = vpop.f32.mrb[0].mxu0
    %v503 = vadd.f32 %v167, %v502
    %v504 = vpop.f32.mrb[0].mxu0
    %v505 = vadd.f32 %v171, %v504
    %506 = vmatprep.mubr.f32.mxu0 0.0
    %507 = vmatmul.mubr.f32.gmra.mrb[0].mxu0 %v192
    %v508 = vpop.f32.mrb[0].mxu0
    %v509 = vadd.f32 %v167, %v508
    %v510 = vpop.f32.mrb[0].mxu0
    %v511 = vadd.f32 %v171, %v510
    %512 = vmatprep.mubr.f32.mxu0 0.0
    %513 = vmatmul.mubr.f32.gmra.mrb[0].mxu0 %v195
    %v514 = vpop.f32.mrb[0].mxu0
    %v515 = vadd.f32 %v167, %v514
    %v516 = vpop.f32.mrb[0].mxu0
    %v517 = vadd.f32 %v171, %v516
    %518 = vdwg.mxu0
    %v519 = vmax.f32 %v283, 0.0
    %v520 = vmax.f32 %v285, 0.0
    %v521 = vmax.f32 %v384, 0.0
    %v522 = vmax.f32 %v386, 0.0
    %v523 = vmax.f32 %v485, 0.0
    %v524 = vmax.f32 %v487, 0.0
    %v525 = vmax.f32 %v289, 0.0
    %v526 = vmax.f32 %v291, 0.0
    %v527 = vmax.f32 %v390, 0.0
    %v528 = vmax.f32 %v392, 0.0
    %v529 = vmax.f32 %v491, 0.0
    %v530 = vmax.f32 %v493, 0.0
    %v531 = vmax.f32 %v295, 0.0
    %v532 = vmax.f32 %v297, 0.0
    %v533 = vmax.f32 %v396, 0.0
    %v534 = vmax.f32 %v398, 0.0
    %v535 = vmax.f32 %v497, 0.0
    %v536 = vmax.f32 %v499, 0.0
    %v537 = vmax.f32 %v301, 0.0
    %v538 = vmax.f32 %v303, 0.0
    %v539 = vmax.f32 %v402, 0.0
    %v540 = vmax.f32 %v404, 0.0
    %v541 = vmax.f32 %v503, 0.0
    %v542 = vmax.f32 %v505, 0.0
    %v543 = vmax.f32 %v307, 0.0
    %v544 = vmax.f32 %v309, 0.0
    %v545 = vmax.f32 %v408, 0.0
    %v546 = vmax.f32 %v410, 0.0
    %v547 = vmax.f32 %v509, 0.0
    %v548 = vmax.f32 %v511, 0.0
    %v549 = vmax.f32 %v313, 0.0
    %v550 = vmax.f32 %v315, 0.0
    %v551 = vmax.f32 %v414, 0.0
    %v552 = vmax.f32 %v416, 0.0
    %v553 = vmax.f32 %v515, 0.0
    %v554 = vmax.f32 %v517, 0.0
    %v555 = vmax.f32 %v519, %v522
    %v556 = vmax.f32 %v520, %v523
    %v557 = vmax.f32 %v521, %v524
    %v558 = vmax.f32 %v525, %v528
    %v559 = vmax.f32 %v526, %v529
    %v560 = vmax.f32 %v527, %v530
    %v561 = vmax.f32 %v531, %v534
    %v562 = vmax.f32 %v532, %v535
    %v563 = vmax.f32 %v533, %v536
    %v564 = vmax.f32 %v537, %v540
    %v565 = vmax.f32 %v538, %v541
    %v566 = vmax.f32 %v539, %v542
    %v567 = vmax.f32 %v543, %v546
    %v568 = vmax.f32 %v544, %v547
    %v569 = vmax.f32 %v545, %v548
    %v570 = vmax.f32 %v549, %v552
    %v571 = vmax.f32 %v550, %v553
    %v572 = vmax.f32 %v551, %v554
    %v573 = vpack.c.bf16 %v558, %v555
    %v574 = vpack.c.bf16 %v559, %v556
    %v575 = vpack.c.bf16 %v560, %v557
    %v576 = vpack.c.bf16 %v564, %v561
    %v577 = vpack.c.bf16 %v565, %v562
    %v578 = vpack.c.bf16 %v566, %v563
    %v579 = vpack.c.bf16 %v570, %v567
    %v580 = vpack.c.bf16 %v571, %v568
    %v581 = vpack.c.bf16 %v572, %v569
    %v582 = vld [vmem:[#allocation7] sm:$0xff]
    %v583 = vld [vmem:[#allocation7 + $0x8] sm:$0xff]
    %v584 = vld [vmem:[#allocation7 + $0x10] sm:$0xff]
    %v585 = vld [vmem:[#allocation7 + $0x18] sm:$0xff]
    %v586 = vld [vmem:[#allocation7 + $0x20] sm:$0xff]
    %v587 = vld [vmem:[#allocation7 + $0x28] sm:$0xff]
    %v588 = vld [vmem:[#allocation7 + $0x30] sm:$0xff]
    %v589 = vld [vmem:[#allocation7 + $0x38] sm:$0xff]
    %v590 = vld [vmem:[#allocation7 + $0x40] sm:$0xff]
    %v591 = vld [vmem:[#allocation7 + $0x48] sm:$0xff]
    %v592 = vld [vmem:[#allocation7 + $0x50] sm:$0xff]
    %v593 = vld [vmem:[#allocation7 + $0x58] sm:$0xff]
    %v594 = vld [vmem:[#allocation7 + $0x60] sm:$0xff]
    %v595 = vld [vmem:[#allocation7 + $0x68] sm:$0xff]
    %v596 = vld [vmem:[#allocation7 + $0x70] sm:$0xff]
    %v597 = vld [vmem:[#allocation7 + $0x78] sm:$0xff]
    %v598 = vld [vmem:[#allocation7 + $0x80] sm:$0xff]
    %v599 = vld [vmem:[#allocation7 + $0x88] sm:$0xff]
    %v600 = vld [vmem:[#allocation7 + $0x90] sm:$0xff]
    %v601 = vld [vmem:[#allocation7 + $0x98] sm:$0xff]
    %v602 = vld [vmem:[#allocation7 + $0xa0] sm:$0xff]
    %v603 = vld [vmem:[#allocation7 + $0xa8] sm:$0xff]
    %v604 = vld [vmem:[#allocation7 + $0xb0] sm:$0xff]
    %v605 = vld [vmem:[#allocation7 + $0xb8] sm:$0xff]
    %v606 = vld [vmem:[#allocation7 + $0xc0] sm:$0xff]
    %v607 = vld [vmem:[#allocation7 + $0xc8] sm:$0xff]
    %v608 = vld [vmem:[#allocation7 + $0xd0] sm:$0xff]
    %v609 = vld [vmem:[#allocation7 + $0xd8] sm:$0xff]
    %v610 = vld [vmem:[#allocation7 + $0xe0] sm:$0xff]
    %v611 = vld [vmem:[#allocation7 + $0xe8] sm:$0xff]
    %v612 = vld [vmem:[#allocation7 + $0xf0] sm:$0xff]
    %v613 = vld [vmem:[#allocation7 + $0xf8] sm:$0xff]
    %v614 = vld [vmem:[#allocation7 + $0x100] sm:$0xff]
    %v615 = vld [vmem:[#allocation7 + $0x108] sm:$0xff]
    %v616 = vld [vmem:[#allocation7 + $0x110] sm:$0xff]
    %v617 = vld [vmem:[#allocation7 + $0x118] sm:$0xff]
    %v618 = vld [vmem:[#allocation7 + $0x120] sm:$0xff]
    %v619 = vld [vmem:[#allocation7 + $0x128] sm:$0xff]
    %v620 = vld [vmem:[#allocation7 + $0x130] sm:$0xff]
    %v621 = vld [vmem:[#allocation7 + $0x138] sm:$0xff]
    %v622 = vld [vmem:[#allocation7 + $0x140] sm:$0xff]
    %v623 = vld [vmem:[#allocation7 + $0x148] sm:$0xff]
    %v624 = vld [vmem:[#allocation7 + $0x150] sm:$0xff]
    %v625 = vld [vmem:[#allocation7 + $0x158] sm:$0xff]
    %v626 = vld [vmem:[#allocation7 + $0x160] sm:$0xff]
    %v627 = vld [vmem:[#allocation7 + $0x168] sm:$0xff]
    %v628 = vld [vmem:[#allocation7 + $0x170] sm:$0xff]
    %v629 = vld [vmem:[#allocation7 + $0x178] sm:$0xff]
    %v630 = vld [vmem:[#allocation7 + $0x180] sm:$0xff]
    %v631 = vld [vmem:[#allocation7 + $0x188] sm:$0xff]
    %v632 = vld [vmem:[#allocation7 + $0x190] sm:$0xff]
    %v633 = vld [vmem:[#allocation7 + $0x198] sm:$0xff]
    %v634 = vld [vmem:[#allocation7 + $0x1a0] sm:$0xff]
    %v635 = vld [vmem:[#allocation7 + $0x1a8] sm:$0xff]
    %v636 = vld [vmem:[#allocation7 + $0x1b0] sm:$0xff]
    %v637 = vld [vmem:[#allocation7 + $0x1b8] sm:$0xff]
    %v638 = vld [vmem:[#allocation7 + $0x1c0] sm:$0xff]
    %v639 = vld [vmem:[#allocation7 + $0x1c8] sm:$0xff]
    %v640 = vld [vmem:[#allocation7 + $0x1d0] sm:$0xff]
    %v641 = vld [vmem:[#allocation7 + $0x1d8] sm:$0xff]
    %v642 = vld [vmem:[#allocation7 + $0x1e0] sm:$0xff]
    %v643 = vld [vmem:[#allocation7 + $0x1e8] sm:$0xff]
    %v644 = vld [vmem:[#allocation7 + $0x1f0] sm:$0xff]
    %v645 = vld [vmem:[#allocation7 + $0x1f8] sm:$0xff]
    %v646 = vld [vmem:[#allocation7 + $0x200] sm:$0xff]
    %v647 = vld [vmem:[#allocation7 + $0x208] sm:$0xff]
    %v648 = vld [vmem:[#allocation7 + $0x210] sm:$0xff]
    %v649 = vld [vmem:[#allocation7 + $0x218] sm:$0xff]
    %v650 = vld [vmem:[#allocation7 + $0x220] sm:$0xff]
    %v651 = vld [vmem:[#allocation7 + $0x228] sm:$0xff]
    %v652 = vld [vmem:[#allocation7 + $0x230] sm:$0xff]
    %v653 = vld [vmem:[#allocation7 + $0x238] sm:$0xff]
    %v654 = vld [vmem:[#allocation7 + $0x240] sm:$0xff]
    %v655 = vld [vmem:[#allocation7 + $0x248] sm:$0xff]
    %v656 = vld [vmem:[#allocation7 + $0x250] sm:$0xff]
    %v657 = vld [vmem:[#allocation7 + $0x258] sm:$0xff]
    %v658 = vld [vmem:[#allocation7 + $0x260] sm:$0xff]
    %v659 = vld [vmem:[#allocation7 + $0x268] sm:$0xff]
    %v660 = vld [vmem:[#allocation7 + $0x270] sm:$0xff]
    %v661 = vld [vmem:[#allocation7 + $0x278] sm:$0xff]
    %v662 = vld [vmem:[#allocation7 + $0x280] sm:$0xff]
    %v663 = vld [vmem:[#allocation7 + $0x288] sm:$0xff]
    %v664 = vld [vmem:[#allocation7 + $0x290] sm:$0xff]
    %v665 = vld [vmem:[#allocation7 + $0x298] sm:$0xff]
    %v666 = vld [vmem:[#allocation7 + $0x2a0] sm:$0xff]
    %v667 = vld [vmem:[#allocation7 + $0x2a8] sm:$0xff]
    %v668 = vld [vmem:[#allocation7 + $0x2b0] sm:$0xff]
    %v669 = vld [vmem:[#allocation7 + $0x2b8] sm:$0xff]
    %v670 = vld [vmem:[#allocation7 + $0x2c0] sm:$0xff]
    %v671 = vld [vmem:[#allocation7 + $0x2c8] sm:$0xff]
    %v672 = vld [vmem:[#allocation7 + $0x2d0] sm:$0xff]
    %v673 = vld [vmem:[#allocation7 + $0x2d8] sm:$0xff]
    %v674 = vld [vmem:[#allocation7 + $0x2e0] sm:$0xff]
    %v675 = vld [vmem:[#allocation7 + $0x2e8] sm:$0xff]
    %v676 = vld [vmem:[#allocation7 + $0x2f0] sm:$0xff]
    %v677 = vld [vmem:[#allocation7 + $0x2f8] sm:$0xff]
    %v678 = vld [vmem:[#allocation7 + $0x300] sm:$0xff]
    %v679 = vld [vmem:[#allocation7 + $0x308] sm:$0xff]
    %v680 = vld [vmem:[#allocation7 + $0x310] sm:$0xff]
    %v681 = vld [vmem:[#allocation7 + $0x318] sm:$0xff]
    %v682 = vld [vmem:[#allocation7 + $0x320] sm:$0xff]
    %v683 = vld [vmem:[#allocation7 + $0x328] sm:$0xff]
    %v684 = vld [vmem:[#allocation7 + $0x330] sm:$0xff]
    %v685 = vld [vmem:[#allocation7 + $0x338] sm:$0xff]
    %v686 = vld [vmem:[#allocation7 + $0x340] sm:$0xff]
    %v687 = vld [vmem:[#allocation7 + $0x348] sm:$0xff]
    %v688 = vld [vmem:[#allocation7 + $0x350] sm:$0xff]
    %v689 = vld [vmem:[#allocation7 + $0x358] sm:$0xff]
    %v690 = vld [vmem:[#allocation7 + $0x360] sm:$0xff]
    %v691 = vld [vmem:[#allocation7 + $0x368] sm:$0xff]
    %v692 = vld [vmem:[#allocation7 + $0x370] sm:$0xff]
    %v693 = vld [vmem:[#allocation7 + $0x378] sm:$0xff]
    %v694 = vld [vmem:[#allocation7 + $0x380] sm:$0xff]
    %v695 = vld [vmem:[#allocation7 + $0x388] sm:$0xff]
    %v696 = vld [vmem:[#allocation7 + $0x390] sm:$0xff]
    %v697 = vld [vmem:[#allocation7 + $0x398] sm:$0xff]
    %v698 = vld [vmem:[#allocation7 + $0x3a0] sm:$0xff]
    %v699 = vld [vmem:[#allocation7 + $0x3a8] sm:$0xff]
    %v700 = vld [vmem:[#allocation7 + $0x3b0] sm:$0xff]
    %v701 = vld [vmem:[#allocation7 + $0x3b8] sm:$0xff]
    %v702 = vld [vmem:[#allocation7 + $0x3c0] sm:$0xff]
    %v703 = vld [vmem:[#allocation7 + $0x3c8] sm:$0xff]
    %v704 = vld [vmem:[#allocation7 + $0x3d0] sm:$0xff]
    %v705 = vld [vmem:[#allocation7 + $0x3d8] sm:$0xff]
    %v706 = vld [vmem:[#allocation7 + $0x3e0] sm:$0xff]
    %v707 = vld [vmem:[#allocation7 + $0x3e8] sm:$0xff]
    %v708 = vld [vmem:[#allocation7 + $0x3f0] sm:$0xff]
    %v709 = vld [vmem:[#allocation7 + $0x3f8] sm:$0xff]
    %v710 = vld [vmem:[#allocation7 + $0x400] sm:$0xff]
    %v711 = vld [vmem:[#allocation7 + $0x408] sm:$0xff]
    %v712 = vld [vmem:[#allocation7 + $0x410] sm:$0xff]
    %v713 = vld [vmem:[#allocation7 + $0x418] sm:$0xff]
    %v714 = vld [vmem:[#allocation7 + $0x420] sm:$0xff]
    %v715 = vld [vmem:[#allocation7 + $0x428] sm:$0xff]
    %v716 = vld [vmem:[#allocation7 + $0x430] sm:$0xff]
    %v717 = vld [vmem:[#allocation7 + $0x438] sm:$0xff]
    %v718 = vld [vmem:[#allocation7 + $0x440] sm:$0xff]
    %v719 = vld [vmem:[#allocation7 + $0x448] sm:$0xff]
    %v720 = vld [vmem:[#allocation7 + $0x450] sm:$0xff]
    %v721 = vld [vmem:[#allocation7 + $0x458] sm:$0xff]
    %v722 = vld [vmem:[#allocation7 + $0x460] sm:$0xff]
    %v723 = vld [vmem:[#allocation7 + $0x468] sm:$0xff]
    %v724 = vld [vmem:[#allocation7 + $0x470] sm:$0xff]
    %v725 = vld [vmem:[#allocation7 + $0x478] sm:$0xff]
    %v726 = vld [vmem:[%s4] sm:$0x3f]
    %v728 = vlaneseq
    %v729 = vshrl.u32 %v728, 7
    %v730 = vsub.s32 0, %v729
    %v731 = vrot.slane %v726, %v730
    %v732 = vlaneseq
    %v733 = vshrl.u32 %v732, 7
    %v734 = vsub.s32 1, %v733
    %v735 = vrot.slane %v726, %v734
    %v736 = vlaneseq
    %v737 = vshrl.u32 %v736, 7
    %v738 = vsub.s32 2, %v737
    %v739 = vrot.slane %v726, %v738
    %v740 = vlaneseq
    %v741 = vshrl.u32 %v740, 7
    %v742 = vsub.s32 3, %v741
    %v743 = vrot.slane %v726, %v742
    %v744 = vlaneseq
    %v745 = vshrl.u32 %v744, 7
    %v746 = vsub.s32 4, %v745
    %v747 = vrot.slane %v726, %v746
    %v748 = vlaneseq
    %v749 = vshrl.u32 %v748, 7
    %v750 = vsub.s32 5, %v749
    %v751 = vrot.slane %v726, %v750
    %v902 = vunpack.c.l.b16 %v582
    %v903 = vunpack.c.h.b16 %v582
    %v904 = vunpack.c.l.b16 %v583
    %v905 = vunpack.c.h.b16 %v583
    %v906 = vunpack.c.l.b16 %v584
    %v907 = vunpack.c.h.b16 %v584
    %v908 = vunpack.c.l.b16 %v585
    %v909 = vunpack.c.h.b16 %v585
    %v910 = vunpack.c.l.b16 %v586
    %v911 = vunpack.c.h.b16 %v586
    %v912 = vunpack.c.l.b16 %v587
    %v913 = vunpack.c.h.b16 %v587
    %v914 = vunpack.c.l.b16 %v588
    %v915 = vunpack.c.h.b16 %v588
    %v916 = vunpack.c.l.b16 %v589
    %v917 = vunpack.c.h.b16 %v589
    %v918 = vunpack.c.l.b16 %v590
    %v919 = vunpack.c.h.b16 %v590
    %v920 = vunpack.c.l.b16 %v591
    %v921 = vunpack.c.h.b16 %v591
    %v922 = vunpack.c.l.b16 %v592
    %v923 = vunpack.c.h.b16 %v592
    %v924 = vunpack.c.l.b16 %v593
    %v925 = vunpack.c.h.b16 %v593
    %v926 = vunpack.c.l.b16 %v594
    %v927 = vunpack.c.h.b16 %v594
    %v928 = vunpack.c.l.b16 %v595
    %v929 = vunpack.c.h.b16 %v595
    %v930 = vunpack.c.l.b16 %v596
    %v931 = vunpack.c.h.b16 %v596
    %v932 = vunpack.c.l.b16 %v597
    %v933 = vunpack.c.h.b16 %v597
    %v934 = vunpack.c.l.b16 %v598
    %v935 = vunpack.c.h.b16 %v598
    %v936 = vunpack.c.l.b16 %v599
    %v937 = vunpack.c.h.b16 %v599
    %v938 = vunpack.c.l.b16 %v600
    %v939 = vunpack.c.h.b16 %v600
    %v940 = vunpack.c.l.b16 %v601
    %v941 = vunpack.c.h.b16 %v601
    %v942 = vunpack.c.l.b16 %v602
    %v943 = vunpack.c.h.b16 %v602
    %v944 = vunpack.c.l.b16 %v603
    %v945 = vunpack.c.h.b16 %v603
    %v946 = vunpack.c.l.b16 %v604
    %v947 = vunpack.c.h.b16 %v604
    %v948 = vunpack.c.l.b16 %v605
    %v949 = vunpack.c.h.b16 %v605
    %v950 = vunpack.c.l.b16 %v606
    %v951 = vunpack.c.h.b16 %v606
    %v952 = vunpack.c.l.b16 %v607
    %v953 = vunpack.c.h.b16 %v607
    %v954 = vunpack.c.l.b16 %v608
    %v955 = vunpack.c.h.b16 %v608
    %v956 = vunpack.c.l.b16 %v609
    %v957 = vunpack.c.h.b16 %v609
    %v958 = vunpack.c.l.b16 %v610
    %v959 = vunpack.c.h.b16 %v610
    %v960 = vunpack.c.l.b16 %v611
    %v961 = vunpack.c.h.b16 %v611
    %v962 = vunpack.c.l.b16 %v612
    %v963 = vunpack.c.h.b16 %v612
    %v964 = vunpack.c.l.b16 %v613
    %v965 = vunpack.c.h.b16 %v613
    %v966 = vunpack.c.l.b16 %v614
    %v967 = vunpack.c.h.b16 %v614
    %v968 = vunpack.c.l.b16 %v615
    %v969 = vunpack.c.h.b16 %v615
    %v970 = vunpack.c.l.b16 %v616
    %v971 = vunpack.c.h.b16 %v616
    %v972 = vunpack.c.l.b16 %v617
    %v973 = vunpack.c.h.b16 %v617
    %v974 = vunpack.c.l.b16 %v618
    %v975 = vunpack.c.h.b16 %v618
    %v976 = vunpack.c.l.b16 %v619
    %v977 = vunpack.c.h.b16 %v619
    %v978 = vunpack.c.l.b16 %v620
    %v979 = vunpack.c.h.b16 %v620
    %v980 = vunpack.c.l.b16 %v621
    %v981 = vunpack.c.h.b16 %v621
    %v982 = vunpack.c.l.b16 %v622
    %v983 = vunpack.c.h.b16 %v622
    %v984 = vunpack.c.l.b16 %v623
    %v985 = vunpack.c.h.b16 %v623
    %v986 = vunpack.c.l.b16 %v624
    %v987 = vunpack.c.h.b16 %v624
    %v988 = vunpack.c.l.b16 %v625
    %v989 = vunpack.c.h.b16 %v625
    %v990 = vunpack.c.l.b16 %v626
    %v991 = vunpack.c.h.b16 %v626
    %v992 = vunpack.c.l.b16 %v627
    %v993 = vunpack.c.h.b16 %v627
    %v994 = vunpack.c.l.b16 %v628
    %v995 = vunpack.c.h.b16 %v628
    %v996 = vunpack.c.l.b16 %v629
    %v997 = vunpack.c.h.b16 %v629
    %v998 = vunpack.c.l.b16 %v630
    %v999 = vunpack.c.h.b16 %v630
    %v1000 = vunpack.c.l.b16 %v631
    %v1001 = vunpack.c.h.b16 %v631
    %v1002 = vunpack.c.l.b16 %v632
    %v1003 = vunpack.c.h.b16 %v632
    %v1004 = vunpack.c.l.b16 %v633
    %v1005 = vunpack.c.h.b16 %v633
    %v1006 = vunpack.c.l.b16 %v634
    %v1007 = vunpack.c.h.b16 %v634
    %v1008 = vunpack.c.l.b16 %v635
    %v1009 = vunpack.c.h.b16 %v635
    %v1010 = vunpack.c.l.b16 %v636
    %v1011 = vunpack.c.h.b16 %v636
    %v1012 = vunpack.c.l.b16 %v637
    %v1013 = vunpack.c.h.b16 %v637
    %v1014 = vunpack.c.l.b16 %v638
    %v1015 = vunpack.c.h.b16 %v638
    %v1016 = vunpack.c.l.b16 %v639
    %v1017 = vunpack.c.h.b16 %v639
    %v1018 = vunpack.c.l.b16 %v640
    %v1019 = vunpack.c.h.b16 %v640
    %v1020 = vunpack.c.l.b16 %v641
    %v1021 = vunpack.c.h.b16 %v641
    %v1022 = vunpack.c.l.b16 %v642
    %v1023 = vunpack.c.h.b16 %v642
    %v1024 = vunpack.c.l.b16 %v643
    %v1025 = vunpack.c.h.b16 %v643
    %v1026 = vunpack.c.l.b16 %v644
    %v1027 = vunpack.c.h.b16 %v644
    %v1028 = vunpack.c.l.b16 %v645
    %v1029 = vunpack.c.h.b16 %v645
    %v1030 = vunpack.c.l.b16 %v646
    %v1031 = vunpack.c.h.b16 %v646
    %v1032 = vunpack.c.l.b16 %v647
    %v1033 = vunpack.c.h.b16 %v647
    %v1034 = vunpack.c.l.b16 %v648
    %v1035 = vunpack.c.h.b16 %v648
    %v1036 = vunpack.c.l.b16 %v649
    %v1037 = vunpack.c.h.b16 %v649
    %v1038 = vunpack.c.l.b16 %v650
    %v1039 = vunpack.c.h.b16 %v650
    %v1040 = vunpack.c.l.b16 %v651
    %v1041 = vunpack.c.h.b16 %v651
    %v1042 = vunpack.c.l.b16 %v652
    %v1043 = vunpack.c.h.b16 %v652
    %v1044 = vunpack.c.l.b16 %v653
    %v1045 = vunpack.c.h.b16 %v653
    %v1046 = vunpack.c.l.b16 %v654
    %v1047 = vunpack.c.h.b16 %v654
    %v1048 = vunpack.c.l.b16 %v655
    %v1049 = vunpack.c.h.b16 %v655
    %v1050 = vunpack.c.l.b16 %v656
    %v1051 = vunpack.c.h.b16 %v656
    %v1052 = vunpack.c.l.b16 %v657
    %v1053 = vunpack.c.h.b16 %v657
    %v1054 = vunpack.c.l.b16 %v658
    %v1055 = vunpack.c.h.b16 %v658
    %v1056 = vunpack.c.l.b16 %v659
    %v1057 = vunpack.c.h.b16 %v659
    %v1058 = vunpack.c.l.b16 %v660
    %v1059 = vunpack.c.h.b16 %v660
    %v1060 = vunpack.c.l.b16 %v661
    %v1061 = vunpack.c.h.b16 %v661
    %v1062 = vunpack.c.l.b16 %v662
    %v1063 = vunpack.c.h.b16 %v662
    %v1064 = vunpack.c.l.b16 %v663
    %v1065 = vunpack.c.h.b16 %v663
    %v1066 = vunpack.c.l.b16 %v664
    %v1067 = vunpack.c.h.b16 %v664
    %v1068 = vunpack.c.l.b16 %v665
    %v1069 = vunpack.c.h.b16 %v665
    %v1070 = vunpack.c.l.b16 %v666
    %v1071 = vunpack.c.h.b16 %v666
    %v1072 = vunpack.c.l.b16 %v667
    %v1073 = vunpack.c.h.b16 %v667
    %v1074 = vunpack.c.l.b16 %v668
    %v1075 = vunpack.c.h.b16 %v668
    %v1076 = vunpack.c.l.b16 %v669
    %v1077 = vunpack.c.h.b16 %v669
    %v1078 = vunpack.c.l.b16 %v670
    %v1079 = vunpack.c.h.b16 %v670
    %v1080 = vunpack.c.l.b16 %v671
    %v1081 = vunpack.c.h.b16 %v671
    %v1082 = vunpack.c.l.b16 %v672
    %v1083 = vunpack.c.h.b16 %v672
    %v1084 = vunpack.c.l.b16 %v673
    %v1085 = vunpack.c.h.b16 %v673
    %v1086 = vunpack.c.l.b16 %v674
    %v1087 = vunpack.c.h.b16 %v674
    %v1088 = vunpack.c.l.b16 %v675
    %v1089 = vunpack.c.h.b16 %v675
    %v1090 = vunpack.c.l.b16 %v676
    %v1091 = vunpack.c.h.b16 %v676
    %v1092 = vunpack.c.l.b16 %v677
    %v1093 = vunpack.c.h.b16 %v677
    %v1094 = vunpack.c.l.b16 %v678
    %v1095 = vunpack.c.h.b16 %v678
    %v1096 = vunpack.c.l.b16 %v679
    %v1097 = vunpack.c.h.b16 %v679
    %v1098 = vunpack.c.l.b16 %v680
    %v1099 = vunpack.c.h.b16 %v680
    %v1100 = vunpack.c.l.b16 %v681
    %v1101 = vunpack.c.h.b16 %v681
    %v1102 = vunpack.c.l.b16 %v682
    %v1103 = vunpack.c.h.b16 %v682
    %v1104 = vunpack.c.l.b16 %v683
    %v1105 = vunpack.c.h.b16 %v683
    %v1106 = vunpack.c.l.b16 %v684
    %v1107 = vunpack.c.h.b16 %v684
    %v1108 = vunpack.c.l.b16 %v685
    %v1109 = vunpack.c.h.b16 %v685
    %v1110 = vunpack.c.l.b16 %v686
    %v1111 = vunpack.c.h.b16 %v686
    %v1112 = vunpack.c.l.b16 %v687
    %v1113 = vunpack.c.h.b16 %v687
    %v1114 = vunpack.c.l.b16 %v688
    %v1115 = vunpack.c.h.b16 %v688
    %v1116 = vunpack.c.l.b16 %v689
    %v1117 = vunpack.c.h.b16 %v689
    %v1118 = vunpack.c.l.b16 %v690
    %v1119 = vunpack.c.h.b16 %v690
    %v1120 = vunpack.c.l.b16 %v691
    %v1121 = vunpack.c.h.b16 %v691
    %v1122 = vunpack.c.l.b16 %v692
    %v1123 = vunpack.c.h.b16 %v692
    %v1124 = vunpack.c.l.b16 %v693
    %v1125 = vunpack.c.h.b16 %v693
    %v1126 = vunpack.c.l.b16 %v694
    %v1127 = vunpack.c.h.b16 %v694
    %v1128 = vunpack.c.l.b16 %v695
    %v1129 = vunpack.c.h.b16 %v695
    %v1130 = vunpack.c.l.b16 %v696
    %v1131 = vunpack.c.h.b16 %v696
    %v1132 = vunpack.c.l.b16 %v697
    %v1133 = vunpack.c.h.b16 %v697
    %v1134 = vunpack.c.l.b16 %v698
    %v1135 = vunpack.c.h.b16 %v698
    %v1136 = vunpack.c.l.b16 %v699
    %v1137 = vunpack.c.h.b16 %v699
    %v1138 = vunpack.c.l.b16 %v700
    %v1139 = vunpack.c.h.b16 %v700
    %v1140 = vunpack.c.l.b16 %v701
    %v1141 = vunpack.c.h.b16 %v701
    %v1142 = vunpack.c.l.b16 %v702
    %v1143 = vunpack.c.h.b16 %v702
    %v1144 = vunpack.c.l.b16 %v703
    %v1145 = vunpack.c.h.b16 %v703
    %v1146 = vunpack.c.l.b16 %v704
    %v1147 = vunpack.c.h.b16 %v704
    %v1148 = vunpack.c.l.b16 %v705
    %v1149 = vunpack.c.h.b16 %v705
    %v1150 = vunpack.c.l.b16 %v706
    %v1151 = vunpack.c.h.b16 %v706
    %v1152 = vunpack.c.l.b16 %v707
    %v1153 = vunpack.c.h.b16 %v707
    %v1154 = vunpack.c.l.b16 %v708
    %v1155 = vunpack.c.h.b16 %v708
    %v1156 = vunpack.c.l.b16 %v709
    %v1157 = vunpack.c.h.b16 %v709
    %v1158 = vunpack.c.l.b16 %v710
    %v1159 = vunpack.c.h.b16 %v710
    %v1160 = vunpack.c.l.b16 %v711
    %v1161 = vunpack.c.h.b16 %v711
    %v1162 = vunpack.c.l.b16 %v712
    %v1163 = vunpack.c.h.b16 %v712
    %v1164 = vunpack.c.l.b16 %v713
    %v1165 = vunpack.c.h.b16 %v713
    %v1166 = vunpack.c.l.b16 %v714
    %v1167 = vunpack.c.h.b16 %v714
    %v1168 = vunpack.c.l.b16 %v715
    %v1169 = vunpack.c.h.b16 %v715
    %v1170 = vunpack.c.l.b16 %v716
    %v1171 = vunpack.c.h.b16 %v716
    %v1172 = vunpack.c.l.b16 %v717
    %v1173 = vunpack.c.h.b16 %v717
    %v1174 = vunpack.c.l.b16 %v718
    %v1175 = vunpack.c.h.b16 %v718
    %v1176 = vunpack.c.l.b16 %v719
    %v1177 = vunpack.c.h.b16 %v719
    %v1178 = vunpack.c.l.b16 %v720
    %v1179 = vunpack.c.h.b16 %v720
    %v1180 = vunpack.c.l.b16 %v721
    %v1181 = vunpack.c.h.b16 %v721
    %v1182 = vunpack.c.l.b16 %v722
    %v1183 = vunpack.c.h.b16 %v722
    %v1184 = vunpack.c.l.b16 %v723
    %v1185 = vunpack.c.h.b16 %v723
    %v1186 = vunpack.c.l.b16 %v724
    %v1187 = vunpack.c.h.b16 %v724
    %v1188 = vunpack.c.l.b16 %v725
    %v1189 = vunpack.c.h.b16 %v725
    %v1190 = vpack.c.b16 %v908, %v902
    %v1191 = vpack.c.b16 %v909, %v903
    %v1192 = vpack.c.b16 %v910, %v904
    %v1193 = vpack.c.b16 %v911, %v905
    %v1194 = vpack.c.b16 %v912, %v906
    %v1195 = vpack.c.b16 %v913, %v907
    %v1196 = vpack.c.b16 %v920, %v914
    %v1197 = vpack.c.b16 %v921, %v915
    %v1198 = vpack.c.b16 %v922, %v916
    %v1199 = vpack.c.b16 %v923, %v917
    %v1200 = vpack.c.b16 %v924, %v918
    %v1201 = vpack.c.b16 %v925, %v919
    %v1202 = vpack.c.b16 %v932, %v926
    %v1203 = vpack.c.b16 %v933, %v927
    %v1204 = vpack.c.b16 %v934, %v928
    %v1205 = vpack.c.b16 %v935, %v929
    %v1206 = vpack.c.b16 %v936, %v930
    %v1207 = vpack.c.b16 %v937, %v931
    %v1208 = vpack.c.b16 %v944, %v938
    %v1209 = vpack.c.b16 %v945, %v939
    %v1210 = vpack.c.b16 %v946, %v940
    %v1211 = vpack.c.b16 %v947, %v941
    %v1212 = vpack.c.b16 %v948, %v942
    %v1213 = vpack.c.b16 %v949, %v943
    %v1214 = vpack.c.b16 %v956, %v950
    %v1215 = vpack.c.b16 %v957, %v951
    %v1216 = vpack.c.b16 %v958, %v952
    %v1217 = vpack.c.b16 %v959, %v953
    %v1218 = vpack.c.b16 %v960, %v954
    %v1219 = vpack.c.b16 %v961, %v955
    %v1220 = vpack.c.b16 %v968, %v962
    %v1221 = vpack.c.b16 %v969, %v963
    %v1222 = vpack.c.b16 %v970, %v964
    %v1223 = vpack.c.b16 %v971, %v965
    %v1224 = vpack.c.b16 %v972, %v966
    %v1225 = vpack.c.b16 %v973, %v967
    %v1226 = vpack.c.b16 %v980, %v974
    %v1227 = vpack.c.b16 %v981, %v975
    %v1228 = vpack.c.b16 %v982, %v976
    %v1229 = vpack.c.b16 %v983, %v977
    %v1230 = vpack.c.b16 %v984, %v978
    %v1231 = vpack.c.b16 %v985, %v979
    %v1232 = vpack.c.b16 %v992, %v986
    %v1233 = vpack.c.b16 %v993, %v987
    %v1234 = vpack.c.b16 %v994, %v988
    %v1235 = vpack.c.b16 %v995, %v989
    %v1236 = vpack.c.b16 %v996, %v990
    %v1237 = vpack.c.b16 %v997, %v991
    %v1238 = vpack.c.b16 %v1004, %v998
    %v1239 = vpack.c.b16 %v1005, %v999
    %v1240 = vpack.c.b16 %v1006, %v1000
    %v1241 = vpack.c.b16 %v1007, %v1001
    %v1242 = vpack.c.b16 %v1008, %v1002
    %v1243 = vpack.c.b16 %v1009, %v1003
    %v1244 = vpack.c.b16 %v1016, %v1010
    %v1245 = vpack.c.b16 %v1017, %v1011
    %v1246 = vpack.c.b16 %v1018, %v1012
    %v1247 = vpack.c.b16 %v1019, %v1013
    %v1248 = vpack.c.b16 %v1020, %v1014
    %v1249 = vpack.c.b16 %v1021, %v1015
    %v1250 = vpack.c.b16 %v1028, %v1022
    %v1251 = vpack.c.b16 %v1029, %v1023
    %v1252 = vpack.c.b16 %v1030, %v1024
    %v1253 = vpack.c.b16 %v1031, %v1025
    %v1254 = vpack.c.b16 %v1032, %v1026
    %v1255 = vpack.c.b16 %v1033, %v1027
    %v1256 = vpack.c.b16 %v1040, %v1034
    %v1257 = vpack.c.b16 %v1041, %v1035
    %v1258 = vpack.c.b16 %v1042, %v1036
    %v1259 = vpack.c.b16 %v1043, %v1037
    %v1260 = vpack.c.b16 %v1044, %v1038
    %v1261 = vpack.c.b16 %v1045, %v1039
    %v1262 = vpack.c.b16 %v1052, %v1046
    %v1263 = vpack.c.b16 %v1053, %v1047
    %v1264 = vpack.c.b16 %v1054, %v1048
    %v1265 = vpack.c.b16 %v1055, %v1049
    %v1266 = vpack.c.b16 %v1056, %v1050
    %v1267 = vpack.c.b16 %v1057, %v1051
    %v1268 = vpack.c.b16 %v1064, %v1058
    %v1269 = vpack.c.b16 %v1065, %v1059
    %v1270 = vpack.c.b16 %v1066, %v1060
    %v1271 = vpack.c.b16 %v1067, %v1061
    %v1272 = vpack.c.b16 %v1068, %v1062
    %v1273 = vpack.c.b16 %v1069, %v1063
    %v1274 = vpack.c.b16 %v1076, %v1070
    %v1275 = vpack.c.b16 %v1077, %v1071
    %v1276 = vpack.c.b16 %v1078, %v1072
    %v1277 = vpack.c.b16 %v1079, %v1073
    %v1278 = vpack.c.b16 %v1080, %v1074
    %v1279 = vpack.c.b16 %v1081, %v1075
    %v1280 = vpack.c.b16 %v1088, %v1082
    %v1281 = vpack.c.b16 %v1089, %v1083
    %v1282 = vpack.c.b16 %v1090, %v1084
    %v1283 = vpack.c.b16 %v1091, %v1085
    %v1284 = vpack.c.b16 %v1092, %v1086
    %v1285 = vpack.c.b16 %v1093, %v1087
    %v1286 = vpack.c.b16 %v1100, %v1094
    %v1287 = vpack.c.b16 %v1101, %v1095
    %v1288 = vpack.c.b16 %v1102, %v1096
    %v1289 = vpack.c.b16 %v1103, %v1097
    %v1290 = vpack.c.b16 %v1104, %v1098
    %v1291 = vpack.c.b16 %v1105, %v1099
    %v1292 = vpack.c.b16 %v1112, %v1106
    %v1293 = vpack.c.b16 %v1113, %v1107
    %v1294 = vpack.c.b16 %v1114, %v1108
    %v1295 = vpack.c.b16 %v1115, %v1109
    %v1296 = vpack.c.b16 %v1116, %v1110
    %v1297 = vpack.c.b16 %v1117, %v1111
    %v1298 = vpack.c.b16 %v1124, %v1118
    %v1299 = vpack.c.b16 %v1125, %v1119
    %v1300 = vpack.c.b16 %v1126, %v1120
    %v1301 = vpack.c.b16 %v1127, %v1121
    %v1302 = vpack.c.b16 %v1128, %v1122
    %v1303 = vpack.c.b16 %v1129, %v1123
    %v1304 = vpack.c.b16 %v1136, %v1130
    %v1305 = vpack.c.b16 %v1137, %v1131
    %v1306 = vpack.c.b16 %v1138, %v1132
    %v1307 = vpack.c.b16 %v1139, %v1133
    %v1308 = vpack.c.b16 %v1140, %v1134
    %v1309 = vpack.c.b16 %v1141, %v1135
    %v1310 = vpack.c.b16 %v1148, %v1142
    %v1311 = vpack.c.b16 %v1149, %v1143
    %v1312 = vpack.c.b16 %v1150, %v1144
    %v1313 = vpack.c.b16 %v1151, %v1145
    %v1314 = vpack.c.b16 %v1152, %v1146
    %v1315 = vpack.c.b16 %v1153, %v1147
    %v1316 = vpack.c.b16 %v1160, %v1154
    %v1317 = vpack.c.b16 %v1161, %v1155
    %v1318 = vpack.c.b16 %v1162, %v1156
    %v1319 = vpack.c.b16 %v1163, %v1157
    %v1320 = vpack.c.b16 %v1164, %v1158
    %v1321 = vpack.c.b16 %v1165, %v1159
    %v1322 = vpack.c.b16 %v1172, %v1166
    %v1323 = vpack.c.b16 %v1173, %v1167
    %v1324 = vpack.c.b16 %v1174, %v1168
    %v1325 = vpack.c.b16 %v1175, %v1169
    %v1326 = vpack.c.b16 %v1176, %v1170
    %v1327 = vpack.c.b16 %v1177, %v1171
    %v1328 = vpack.c.b16 %v1184, %v1178
    %v1329 = vpack.c.b16 %v1185, %v1179
    %v1330 = vpack.c.b16 %v1186, %v1180
    %v1331 = vpack.c.b16 %v1187, %v1181
    %v1332 = vpack.c.b16 %v1188, %v1182
    %v1333 = vpack.c.b16 %v1189, %v1183
    %1478 = vmatprep.subr.bf16.mxu0 %v1191
    %1479 = vmatpush1.bf16.msra.mxu0 %v1190
    %1480 = vmatprep.subr.bf16.mxu0 %v1197
    %1481 = vmatpush1.bf16.msra.mxu0 %v1196
    %1482 = vmatprep.subr.bf16.mxu0 %v1203
    %1483 = vmatpush1.bf16.msra.mxu0 %v1202
    %1484 = vmatprep.subr.bf16.mxu0 %v1209
    %1485 = vmatpush1.bf16.msra.mxu0 %v1208
    %1486 = vmatprep.subr.bf16.mxu0 %v1215
    %1487 = vmatpush1.bf16.msra.mxu0 %v1214
    %1488 = vmatprep.subr.bf16.mxu0 %v1221
    %1489 = vmatpush1.bf16.msra.mxu0 %v1220
    %1490 = vmatprep.subr.bf16.mxu0 %v1227
    %1491 = vmatpush1.bf16.msra.mxu0 %v1226
    %1492 = vmatprep.subr.bf16.mxu0 %v1233
    %1493 = vmatpush1.bf16.msra.mxu0 %v1232
    %1494 = vmatprep.subr.bf16.mxu0 %v1239
    %1495 = vmatpush1.bf16.msra.mxu0 %v1238
    %1496 = vmatprep.subr.bf16.mxu0 %v1245
    %1497 = vmatpush1.bf16.msra.mxu0 %v1244
    %1498 = vmatprep.subr.bf16.mxu0 %v1251
    %1499 = vmatpush1.bf16.msra.mxu0 %v1250
    %1500 = vmatprep.subr.bf16.mxu0 %v1257
    %1501 = vmatpush1.bf16.msra.mxu0 %v1256
    %1502 = vmatprep.subr.bf16.mxu0 %v1263
    %1503 = vmatpush1.bf16.msra.mxu0 %v1262
    %1504 = vmatprep.subr.bf16.mxu0 %v1269
    %1505 = vmatpush1.bf16.msra.mxu0 %v1268
    %1506 = vmatprep.subr.bf16.mxu0 %v1275
    %1507 = vmatpush1.bf16.msra.mxu0 %v1274
    %1508 = vmatprep.subr.bf16.mxu0 %v1281
    %1509 = vmatpush1.bf16.msra.mxu0 %v1280
    %1510 = vmatprep.mubr.bf16.mxu0 %v574
    %1511 = vmatmul.mubr.bf16.gmra.mrb[0].mxu0 %v573
    %v1512 = vpop.f32.mrb[0].mxu0
    %v1513 = vadd.f32 %v731, %v1512
    %v1514 = vpop.f32.mrb[0].mxu0
    %v1515 = vadd.f32 %v735, %v1514
    %v1516 = vpop.f32.mrb[0].mxu0
    %v1517 = vadd.f32 %v731, %v1516
    %v1518 = vpop.f32.mrb[0].mxu0
    %v1519 = vadd.f32 %v735, %v1518
    %1520 = vmatprep.mubr.bf16.mxu0 %v577
    %1521 = vmatmul.mubr.bf16.gmra.mrb[0].mxu0 %v576
    %v1522 = vpop.f32.mrb[0].mxu0
    %v1523 = vadd.f32 %v731, %v1522
    %v1524 = vpop.f32.mrb[0].mxu0
    %v1525 = vadd.f32 %v735, %v1524
    %v1526 = vpop.f32.mrb[0].mxu0
    %v1527 = vadd.f32 %v731, %v1526
    %v1528 = vpop.f32.mrb[0].mxu0
    %v1529 = vadd.f32 %v735, %v1528
    %1530 = vmatprep.mubr.bf16.mxu0 %v580
    %1531 = vmatmul.mubr.bf16.gmra.mrb[0].mxu0 %v579
    %v1532 = vpop.f32.mrb[0].mxu0
    %v1533 = vadd.f32 %v731, %v1532
    %v1534 = vpop.f32.mrb[0].mxu0
    %v1535 = vadd.f32 %v735, %v1534
    %v1536 = vpop.f32.mrb[0].mxu0
    %v1537 = vadd.f32 %v731, %v1536
    %v1538 = vpop.f32.mrb[0].mxu0
    %v1539 = vadd.f32 %v735, %v1538
    %1540 = vdwg.mxu0
    %1541 = vmatprep.subr.bf16.mxu0 %v1287
    %1542 = vmatpush1.bf16.msra.mxu0 %v1286
    %1543 = vmatprep.subr.bf16.mxu0 %v1293
    %1544 = vmatpush1.bf16.msra.mxu0 %v1292
    %1545 = vmatprep.subr.bf16.mxu0 %v1299
    %1546 = vmatpush1.bf16.msra.mxu0 %v1298
    %1547 = vmatprep.subr.bf16.mxu0 %v1305
    %1548 = vmatpush1.bf16.msra.mxu0 %v1304
    %1549 = vmatprep.subr.bf16.mxu0 %v1311
    %1550 = vmatpush1.bf16.msra.mxu0 %v1310
    %1551 = vmatprep.subr.bf16.mxu0 %v1317
    %1552 = vmatpush1.bf16.msra.mxu0 %v1316
    %1553 = vmatprep.subr.bf16.mxu0 %v1323
    %1554 = vmatpush1.bf16.msra.mxu0 %v1322
    %1555 = vmatprep.subr.bf16.mxu0 %v1329
    %1556 = vmatpush1.bf16.msra.mxu0 %v1328
    %1557 = vmatprep.subr.bf16.mxu0 0
    %1558 = vmatpush1.bf16.msra.mxu0 0
    %1559 = vmatprep.subr.bf16.mxu0 0
    %1560 = vmatpush1.bf16.msra.mxu0 0
    %1561 = vmatprep.subr.bf16.mxu0 0
    %1562 = vmatpush1.bf16.msra.mxu0 0
    %1563 = vmatprep.subr.bf16.mxu0 0
    %1564 = vmatpush1.bf16.msra.mxu0 0
    %1565 = vmatprep.subr.bf16.mxu0 0
    %1566 = vmatpush1.bf16.msra.mxu0 0
    %1567 = vmatprep.subr.bf16.mxu0 0
    %1568 = vmatpush1.bf16.msra.mxu0 0
    %1569 = vmatprep.subr.bf16.mxu0 0
    %1570 = vmatpush1.bf16.msra.mxu0 0
    %1571 = vmatprep.subr.bf16.mxu0 0
    %1572 = vmatpush1.bf16.msra.mxu0 0
    %1573 = vmatprep.mubr.bf16.mxu0 0
    %1574 = vmatmul.mubr.bf16.gmra.mrb[0].mxu0 %v575
    %v1575 = vpop.f32.mrb[0].mxu0
    %v1576 = vadd.f32 %v1513, %v1575
    %v1577 = vpop.f32.mrb[0].mxu0
    %v1578 = vadd.f32 %v1515, %v1577
    %v1579 = vpop.f32.mrb[0].mxu0
    %v1580 = vadd.f32 %v1517, %v1579
    %v1581 = vpop.f32.mrb[0].mxu0
    %v1582 = vadd.f32 %v1519, %v1581
    %1583 = vmatprep.mubr.bf16.mxu0 0
    %1584 = vmatmul.mubr.bf16.gmra.mrb[0].mxu0 %v578
    %v1585 = vpop.f32.mrb[0].mxu0
    %v1586 = vadd.f32 %v1523, %v1585
    %v1587 = vpop.f32.mrb[0].mxu0
    %v1588 = vadd.f32 %v1525, %v1587
    %v1589 = vpop.f32.mrb[0].mxu0
    %v1590 = vadd.f32 %v1527, %v1589
    %v1591 = vpop.f32.mrb[0].mxu0
    %v1592 = vadd.f32 %v1529, %v1591
    %1593 = vmatprep.mubr.bf16.mxu0 0
    %1594 = vmatmul.mubr.bf16.gmra.mrb[0].mxu0 %v581
    %v1595 = vpop.f32.mrb[0].mxu0
    %v1596 = vadd.f32 %v1533, %v1595
    %v1597 = vpop.f32.mrb[0].mxu0
    %v1598 = vadd.f32 %v1535, %v1597
    %v1599 = vpop.f32.mrb[0].mxu0
    %v1600 = vadd.f32 %v1537, %v1599
    %v1601 = vpop.f32.mrb[0].mxu0
    %v1602 = vadd.f32 %v1539, %v1601
    %1603 = vdwg.mxu0
    %1604 = vmatprep.subr.bf16.mxu0 %v1193
    %1605 = vmatpush1.bf16.msra.mxu0 %v1192
    %1606 = vmatprep.subr.bf16.mxu0 %v1199
    %1607 = vmatpush1.bf16.msra.mxu0 %v1198
    %1608 = vmatprep.subr.bf16.mxu0 %v1205
    %1609 = vmatpush1.bf16.msra.mxu0 %v1204
    %1610 = vmatprep.subr.bf16.mxu0 %v1211
    %1611 = vmatpush1.bf16.msra.mxu0 %v1210
    %1612 = vmatprep.subr.bf16.mxu0 %v1217
    %1613 = vmatpush1.bf16.msra.mxu0 %v1216
    %1614 = vmatprep.subr.bf16.mxu0 %v1223
    %1615 = vmatpush1.bf16.msra.mxu0 %v1222
    %1616 = vmatprep.subr.bf16.mxu0 %v1229
    %1617 = vmatpush1.bf16.msra.mxu0 %v1228
    %1618 = vmatprep.subr.bf16.mxu0 %v1235
    %1619 = vmatpush1.bf16.msra.mxu0 %v1234
    %1620 = vmatprep.subr.bf16.mxu0 %v1241
    %1621 = vmatpush1.bf16.msra.mxu0 %v1240
    %1622 = vmatprep.subr.bf16.mxu0 %v1247
    %1623 = vmatpush1.bf16.msra.mxu0 %v1246
    %1624 = vmatprep.subr.bf16.mxu0 %v1253
    %1625 = vmatpush1.bf16.msra.mxu0 %v1252
    %1626 = vmatprep.subr.bf16.mxu0 %v1259
    %1627 = vmatpush1.bf16.msra.mxu0 %v1258
    %1628 = vmatprep.subr.bf16.mxu0 %v1265
    %1629 = vmatpush1.bf16.msra.mxu0 %v1264
    %1630 = vmatprep.subr.bf16.mxu0 %v1271
    %1631 = vmatpush1.bf16.msra.mxu0 %v1270
    %1632 = vmatprep.subr.bf16.mxu0 %v1277
    %1633 = vmatpush1.bf16.msra.mxu0 %v1276
    %1634 = vmatprep.subr.bf16.mxu0 %v1283
    %1635 = vmatpush1.bf16.msra.mxu0 %v1282
    %1636 = vmatprep.mubr.bf16.mxu0 %v574
    %1637 = vmatmul.mubr.bf16.gmra.mrb[0].mxu0 %v573
    %v1638 = vpop.f32.mrb[0].mxu0
    %v1639 = vadd.f32 %v739, %v1638
    %v1640 = vpop.f32.mrb[0].mxu0
    %v1641 = vadd.f32 %v743, %v1640
    %v1642 = vpop.f32.mrb[0].mxu0
    %v1643 = vadd.f32 %v739, %v1642
    %v1644 = vpop.f32.mrb[0].mxu0
    %v1645 = vadd.f32 %v743, %v1644
    %1646 = vmatprep.mubr.bf16.mxu0 %v577
    %1647 = vmatmul.mubr.bf16.gmra.mrb[0].mxu0 %v576
    %v1648 = vpop.f32.mrb[0].mxu0
    %v1649 = vadd.f32 %v739, %v1648
    %v1650 = vpop.f32.mrb[0].mxu0
    %v1651 = vadd.f32 %v743, %v1650
    %v1652 = vpop.f32.mrb[0].mxu0
    %v1653 = vadd.f32 %v739, %v1652
    %v1654 = vpop.f32.mrb[0].mxu0
    %v1655 = vadd.f32 %v743, %v1654
    %1656 = vmatprep.mubr.bf16.mxu0 %v580
    %1657 = vmatmul.mubr.bf16.gmra.mrb[0].mxu0 %v579
    %v1658 = vpop.f32.mrb[0].mxu0
    %v1659 = vadd.f32 %v739, %v1658
    %v1660 = vpop.f32.mrb[0].mxu0
    %v1661 = vadd.f32 %v743, %v1660
    %v1662 = vpop.f32.mrb[0].mxu0
    %v1663 = vadd.f32 %v739, %v1662
    %v1664 = vpop.f32.mrb[0].mxu0
    %v1665 = vadd.f32 %v743, %v1664
    %1666 = vdwg.mxu0
    %1667 = vmatprep.subr.bf16.mxu0 %v1289
    %1668 = vmatpush1.bf16.msra.mxu0 %v1288
    %1669 = vmatprep.subr.bf16.mxu0 %v1295
    %1670 = vmatpush1.bf16.msra.mxu0 %v1294
    %1671 = vmatprep.subr.bf16.mxu0 %v1301
    %1672 = vmatpush1.bf16.msra.mxu0 %v1300
    %1673 = vmatprep.subr.bf16.mxu0 %v1307
    %1674 = vmatpush1.bf16.msra.mxu0 %v1306
    %1675 = vmatprep.subr.bf16.mxu0 %v1313
    %1676 = vmatpush1.bf16.msra.mxu0 %v1312
    %1677 = vmatprep.subr.bf16.mxu0 %v1319
    %1678 = vmatpush1.bf16.msra.mxu0 %v1318
    %1679 = vmatprep.subr.bf16.mxu0 %v1325
    %1680 = vmatpush1.bf16.msra.mxu0 %v1324
    %1681 = vmatprep.subr.bf16.mxu0 %v1331
    %1682 = vmatpush1.bf16.msra.mxu0 %v1330
    %1683 = vmatprep.subr.bf16.mxu0 0
    %1684 = vmatpush1.bf16.msra.mxu0 0
    %1685 = vmatprep.subr.bf16.mxu0 0
    %1686 = vmatpush1.bf16.msra.mxu0 0
    %1687 = vmatprep.subr.bf16.mxu0 0
    %1688 = vmatpush1.bf16.msra.mxu0 0
    %1689 = vmatprep.subr.bf16.mxu0 0
    %1690 = vmatpush1.bf16.msra.mxu0 0
    %1691 = vmatprep.subr.bf16.mxu0 0
    %1692 = vmatpush1.bf16.msra.mxu0 0
    %1693 = vmatprep.subr.bf16.mxu0 0
    %1694 = vmatpush1.bf16.msra.mxu0 0
    %1695 = vmatprep.subr.bf16.mxu0 0
    %1696 = vmatpush1.bf16.msra.mxu0 0
    %1697 = vmatprep.subr.bf16.mxu0 0
    %1698 = vmatpush1.bf16.msra.mxu0 0
    %1699 = vmatprep.mubr.bf16.mxu0 0
    %1700 = vmatmul.mubr.bf16.gmra.mrb[0].mxu0 %v575
    %v1701 = vpop.f32.mrb[0].mxu0
    %v1702 = vadd.f32 %v1639, %v1701
    %v1703 = vpop.f32.mrb[0].mxu0
    %v1704 = vadd.f32 %v1641, %v1703
    %v1705 = vpop.f32.mrb[0].mxu0
    %v1706 = vadd.f32 %v1643, %v1705
    %v1707 = vpop.f32.mrb[0].mxu0
    %v1708 = vadd.f32 %v1645, %v1707
    %1709 = vmatprep.mubr.bf16.mxu0 0
    %1710 = vmatmul.mubr.bf16.gmra.mrb[0].mxu0 %v578
    %v1711 = vpop.f32.mrb[0].mxu0
    %v1712 = vadd.f32 %v1649, %v1711
    %v1713 = vpop.f32.mrb[0].mxu0
    %v1714 = vadd.f32 %v1651, %v1713
    %v1715 = vpop.f32.mrb[0].mxu0
    %v1716 = vadd.f32 %v1653, %v1715
    %v1717 = vpop.f32.mrb[0].mxu0
    %v1718 = vadd.f32 %v1655, %v1717
    %1719 = vmatprep.mubr.bf16.mxu0 0
    %1720 = vmatmul.mubr.bf16.gmra.mrb[0].mxu0 %v581
    %v1721 = vpop.f32.mrb[0].mxu0
    %v1722 = vadd.f32 %v1659, %v1721
    %v1723 = vpop.f32.mrb[0].mxu0
    %v1724 = vadd.f32 %v1661, %v1723
    %v1725 = vpop.f32.mrb[0].mxu0
    %v1726 = vadd.f32 %v1663, %v1725
    %v1727 = vpop.f32.mrb[0].mxu0
    %v1728 = vadd.f32 %v1665, %v1727
    %1729 = vdwg.mxu0
    %1730 = vmatprep.subr.bf16.mxu0 %v1195
    %1731 = vmatpush1.bf16.msra.mxu0 %v1194
    %1732 = vmatprep.subr.bf16.mxu0 %v1201
    %1733 = vmatpush1.bf16.msra.mxu0 %v1200
    %1734 = vmatprep.subr.bf16.mxu0 %v1207
    %1735 = vmatpush1.bf16.msra.mxu0 %v1206
    %1736 = vmatprep.subr.bf16.mxu0 %v1213
    %1737 = vmatpush1.bf16.msra.mxu0 %v1212
    %1738 = vmatprep.subr.bf16.mxu0 %v1219
    %1739 = vmatpush1.bf16.msra.mxu0 %v1218
    %1740 = vmatprep.subr.bf16.mxu0 %v1225
    %1741 = vmatpush1.bf16.msra.mxu0 %v1224
    %1742 = vmatprep.subr.bf16.mxu0 %v1231
    %1743 = vmatpush1.bf16.msra.mxu0 %v1230
    %1744 = vmatprep.subr.bf16.mxu0 %v1237
    %1745 = vmatpush1.bf16.msra.mxu0 %v1236
    %1746 = vmatprep.subr.bf16.mxu0 %v1243
    %1747 = vmatpush1.bf16.msra.mxu0 %v1242
    %1748 = vmatprep.subr.bf16.mxu0 %v1249
    %1749 = vmatpush1.bf16.msra.mxu0 %v1248
    %1750 = vmatprep.subr.bf16.mxu0 %v1255
    %1751 = vmatpush1.bf16.msra.mxu0 %v1254
    %1752 = vmatprep.subr.bf16.mxu0 %v1261
    %1753 = vmatpush1.bf16.msra.mxu0 %v1260
    %1754 = vmatprep.subr.bf16.mxu0 %v1267
    %1755 = vmatpush1.bf16.msra.mxu0 %v1266
    %1756 = vmatprep.subr.bf16.mxu0 %v1273
    %1757 = vmatpush1.bf16.msra.mxu0 %v1272
    %1758 = vmatprep.subr.bf16.mxu0 %v1279
    %1759 = vmatpush1.bf16.msra.mxu0 %v1278
    %1760 = vmatprep.subr.bf16.mxu0 %v1285
    %1761 = vmatpush1.bf16.msra.mxu0 %v1284
    %1762 = vmatprep.mubr.bf16.mxu0 %v574
    %1763 = vmatmul.mubr.bf16.gmra.mrb[0].mxu0 %v573
    %v1764 = vpop.f32.mrb[0].mxu0
    %v1765 = vadd.f32 %v747, %v1764
    %v1766 = vpop.f32.mrb[0].mxu0
    %v1767 = vadd.f32 %v751, %v1766
    %v1768 = vpop.f32.mrb[0].mxu0
    %v1769 = vadd.f32 %v747, %v1768
    %v1770 = vpop.f32.mrb[0].mxu0
    %v1771 = vadd.f32 %v751, %v1770
    %1772 = vmatprep.mubr.bf16.mxu0 %v577
    %1773 = vmatmul.mubr.bf16.gmra.mrb[0].mxu0 %v576
    %v1774 = vpop.f32.mrb[0].mxu0
    %v1775 = vadd.f32 %v747, %v1774
    %v1776 = vpop.f32.mrb[0].mxu0
    %v1777 = vadd.f32 %v751, %v1776
    %v1778 = vpop.f32.mrb[0].mxu0
    %v1779 = vadd.f32 %v747, %v1778
    %v1780 = vpop.f32.mrb[0].mxu0
    %v1781 = vadd.f32 %v751, %v1780
    %1782 = vmatprep.mubr.bf16.mxu0 %v580
    %1783 = vmatmul.mubr.bf16.gmra.mrb[0].mxu0 %v579
    %v1784 = vpop.f32.mrb[0].mxu0
    %v1785 = vadd.f32 %v747, %v1784
    %v1786 = vpop.f32.mrb[0].mxu0
    %v1787 = vadd.f32 %v751, %v1786
    %v1788 = vpop.f32.mrb[0].mxu0
    %v1789 = vadd.f32 %v747, %v1788
    %v1790 = vpop.f32.mrb[0].mxu0
    %v1791 = vadd.f32 %v751, %v1790
    %1792 = vdwg.mxu0
    %1793 = vmatprep.subr.bf16.mxu0 %v1291
    %1794 = vmatpush1.bf16.msra.mxu0 %v1290
    %1795 = vmatprep.subr.bf16.mxu0 %v1297
    %1796 = vmatpush1.bf16.msra.mxu0 %v1296
    %1797 = vmatprep.subr.bf16.mxu0 %v1303
    %1798 = vmatpush1.bf16.msra.mxu0 %v1302
    %1799 = vmatprep.subr.bf16.mxu0 %v1309
    %1800 = vmatpush1.bf16.msra.mxu0 %v1308
    %1801 = vmatprep.subr.bf16.mxu0 %v1315
    %1802 = vmatpush1.bf16.msra.mxu0 %v1314
    %1803 = vmatprep.subr.bf16.mxu0 %v1321
    %1804 = vmatpush1.bf16.msra.mxu0 %v1320
    %1805 = vmatprep.subr.bf16.mxu0 %v1327
    %1806 = vmatpush1.bf16.msra.mxu0 %v1326
    %1807 = vmatprep.subr.bf16.mxu0 %v1333
    %1808 = vmatpush1.bf16.msra.mxu0 %v1332
    %1809 = vmatprep.subr.bf16.mxu0 0
    %1810 = vmatpush1.bf16.msra.mxu0 0
    %1811 = vmatprep.subr.bf16.mxu0 0
    %1812 = vmatpush1.bf16.msra.mxu0 0
    %1813 = vmatprep.subr.bf16.mxu0 0
    %1814 = vmatpush1.bf16.msra.mxu0 0
    %1815 = vmatprep.subr.bf16.mxu0 0
    %1816 = vmatpush1.bf16.msra.mxu0 0
    %1817 = vmatprep.subr.bf16.mxu0 0
    %1818 = vmatpush1.bf16.msra.mxu0 0
    %1819 = vmatprep.subr.bf16.mxu0 0
    %1820 = vmatpush1.bf16.msra.mxu0 0
    %1821 = vmatprep.subr.bf16.mxu0 0
    %1822 = vmatpush1.bf16.msra.mxu0 0
    %1823 = vmatprep.subr.bf16.mxu0 0
    %1824 = vmatpush1.bf16.msra.mxu0 0
    %1825 = vmatprep.mubr.bf16.mxu0 0
    %1826 = vmatmul.mubr.bf16.gmra.mrb[0].mxu0 %v575
    %v1827 = vpop.f32.mrb[0].mxu0
    %v1828 = vadd.f32 %v1765, %v1827
    %v1829 = vpop.f32.mrb[0].mxu0
    %v1830 = vadd.f32 %v1767, %v1829
    %v1831 = vpop.f32.mrb[0].mxu0
    %v1832 = vadd.f32 %v1769, %v1831
    %v1833 = vpop.f32.mrb[0].mxu0
    %v1834 = vadd.f32 %v1771, %v1833
    %1835 = vmatprep.mubr.bf16.mxu0 0
    %1836 = vmatmul.mubr.bf16.gmra.mrb[0].mxu0 %v578
    %v1837 = vpop.f32.mrb[0].mxu0
    %v1838 = vadd.f32 %v1775, %v1837
    %v1839 = vpop.f32.mrb[0].mxu0
    %v1840 = vadd.f32 %v1777, %v1839
    %v1841 = vpop.f32.mrb[0].mxu0
    %v1842 = vadd.f32 %v1779, %v1841
    %v1843 = vpop.f32.mrb[0].mxu0
    %v1844 = vadd.f32 %v1781, %v1843
    %1845 = vmatprep.mubr.bf16.mxu0 0
    %1846 = vmatmul.mubr.bf16.gmra.mrb[0].mxu0 %v581
    %v1847 = vpop.f32.mrb[0].mxu0
    %v1848 = vadd.f32 %v1785, %v1847
    %v1849 = vpop.f32.mrb[0].mxu0
    %v1850 = vadd.f32 %v1787, %v1849
    %v1851 = vpop.f32.mrb[0].mxu0
    %v1852 = vadd.f32 %v1789, %v1851
    %v1853 = vpop.f32.mrb[0].mxu0
    %v1854 = vadd.f32 %v1791, %v1853
    %1855 = vdwg.mxu0
    %v1856 = vmax.f32 %v1576, 0.0
    %v1857 = vmax.f32 %v1578, 0.0
    %v1858 = vmax.f32 %v1702, 0.0
    %v1859 = vmax.f32 %v1704, 0.0
    %v1860 = vmax.f32 %v1828, 0.0
    %v1861 = vmax.f32 %v1830, 0.0
    %v1862 = vmax.f32 %v1580, 0.0
    %v1863 = vmax.f32 %v1582, 0.0
    %v1864 = vmax.f32 %v1706, 0.0
    %v1865 = vmax.f32 %v1708, 0.0
    %v1866 = vmax.f32 %v1832, 0.0
    %v1867 = vmax.f32 %v1834, 0.0
    %v1868 = vmax.f32 %v1586, 0.0
    %v1869 = vmax.f32 %v1588, 0.0
    %v1870 = vmax.f32 %v1712, 0.0
    %v1871 = vmax.f32 %v1714, 0.0
    %v1872 = vmax.f32 %v1838, 0.0
    %v1873 = vmax.f32 %v1840, 0.0
    %v1874 = vmax.f32 %v1590, 0.0
    %v1875 = vmax.f32 %v1592, 0.0
    %v1876 = vmax.f32 %v1716, 0.0
    %v1877 = vmax.f32 %v1718, 0.0
    %v1878 = vmax.f32 %v1842, 0.0
    %v1879 = vmax.f32 %v1844, 0.0
    %v1880 = vmax.f32 %v1596, 0.0
    %v1881 = vmax.f32 %v1598, 0.0
    %v1882 = vmax.f32 %v1722, 0.0
    %v1883 = vmax.f32 %v1724, 0.0
    %v1884 = vmax.f32 %v1848, 0.0
    %v1885 = vmax.f32 %v1850, 0.0
    %v1886 = vmax.f32 %v1600, 0.0
    %v1887 = vmax.f32 %v1602, 0.0
    %v1888 = vmax.f32 %v1726, 0.0
    %v1889 = vmax.f32 %v1728, 0.0
    %v1890 = vmax.f32 %v1852, 0.0
    %v1891 = vmax.f32 %v1854, 0.0
    %v1892 = vmax.f32 %v1856, %v1859
    %v1893 = vmax.f32 %v1857, %v1860
    %v1894 = vmax.f32 %v1858, %v1861
    %v1895 = vmax.f32 %v1862, %v1865
    %v1896 = vmax.f32 %v1863, %v1866
    %v1897 = vmax.f32 %v1864, %v1867
    %v1898 = vmax.f32 %v1868, %v1871
    %v1899 = vmax.f32 %v1869, %v1872
    %v1900 = vmax.f32 %v1870, %v1873
    %v1901 = vmax.f32 %v1874, %v1877
    %v1902 = vmax.f32 %v1875, %v1878
    %v1903 = vmax.f32 %v1876, %v1879
    %v1904 = vmax.f32 %v1880, %v1883
    %v1905 = vmax.f32 %v1881, %v1884
    %v1906 = vmax.f32 %v1882, %v1885
    %v1907 = vmax.f32 %v1886, %v1889
    %v1908 = vmax.f32 %v1887, %v1890
    %v1909 = vmax.f32 %v1888, %v1891
    %v1910 = vpack.c.bf16 %v1895, %v1892
    %v1911 = vpack.c.bf16 %v1896, %v1893
    %v1912 = vpack.c.bf16 %v1897, %v1894
    %v1913 = vpack.c.bf16 %v1901, %v1898
    %v1914 = vpack.c.bf16 %v1902, %v1899
    %v1915 = vpack.c.bf16 %v1903, %v1900
    %v1916 = vpack.c.bf16 %v1907, %v1904
    %v1917 = vpack.c.bf16 %v1908, %v1905
    %v1918 = vpack.c.bf16 %v1909, %v1906
    %v1919 = vld [vmem:[#allocation8] sm:$0xff]
    %v1920 = vld [vmem:[#allocation8 + $0x8] sm:$0xff]
    %v1921 = vld [vmem:[#allocation8 + $0x10] sm:$0xf]
    %v1922 = vld [vmem:[#allocation8 + $0x14] sm:$0xff]
    %v1923 = vld [vmem:[#allocation8 + $0x1c] sm:$0xff]
    %v1924 = vld [vmem:[#allocation8 + $0x24] sm:$0xf]
    %v1925 = vld [vmem:[#allocation8 + $0x28] sm:$0xff]
    %v1926 = vld [vmem:[#allocation8 + $0x30] sm:$0xff]
    %v1927 = vld [vmem:[#allocation8 + $0x38] sm:$0xf]
    %v1928 = vld [vmem:[#allocation8 + $0x3c] sm:$0xff]
    %v1929 = vld [vmem:[#allocation8 + $0x44] sm:$0xff]
    %v1930 = vld [vmem:[#allocation8 + $0x4c] sm:$0xf]
    %v1931 = vld [vmem:[#allocation8 + $0x50] sm:$0xff]
    %v1932 = vld [vmem:[#allocation8 + $0x58] sm:$0xff]
    %v1933 = vld [vmem:[#allocation8 + $0x60] sm:$0xf]
    %v1934 = vld [vmem:[#allocation8 + $0x64] sm:$0xff]
    %v1935 = vld [vmem:[#allocation8 + $0x6c] sm:$0xff]
    %v1936 = vld [vmem:[#allocation8 + $0x74] sm:$0xf]
    %v1937 = vld [vmem:[#allocation8 + $0x78] sm:$0xff]
    %v1938 = vld [vmem:[#allocation8 + $0x80] sm:$0xff]
    %v1939 = vld [vmem:[#allocation8 + $0x88] sm:$0xf]
    %v1940 = vld [vmem:[#allocation8 + $0x8c] sm:$0xff]
    %v1941 = vld [vmem:[#allocation8 + $0x94] sm:$0xff]
    %v1942 = vld [vmem:[#allocation8 + $0x9c] sm:$0xf]
    %v1943 = vld [vmem:[#allocation8 + $0xa0] sm:$0xff]
    %v1944 = vld [vmem:[#allocation8 + $0xa8] sm:$0xff]
    %v1945 = vld [vmem:[#allocation8 + $0xb0] sm:$0xf]
    %v1946 = vld [vmem:[#allocation8 + $0xb4] sm:$0xff]
    %v1947 = vld [vmem:[#allocation8 + $0xbc] sm:$0xff]
    %v1948 = vld [vmem:[#allocation8 + $0xc4] sm:$0xf]
    %v1949 = vld [vmem:[#allocation8 + $0xc8] sm:$0xff]
    %v1950 = vld [vmem:[#allocation8 + $0xd0] sm:$0xff]
    %v1951 = vld [vmem:[#allocation8 + $0xd8] sm:$0xf]
    %v1952 = vld [vmem:[#allocation8 + $0xdc] sm:$0xff]
    %v1953 = vld [vmem:[#allocation8 + $0xe4] sm:$0xff]
    %v1954 = vld [vmem:[#allocation8 + $0xec] sm:$0xf]
    %v1955 = vld [vmem:[#allocation8 + $0xf0] sm:$0xff]
    %v1956 = vld [vmem:[#allocation8 + $0xf8] sm:$0xff]
    %v1957 = vld [vmem:[#allocation8 + $0x100] sm:$0xf]
    %v1958 = vld [vmem:[#allocation8 + $0x104] sm:$0xff]
    %v1959 = vld [vmem:[#allocation8 + $0x10c] sm:$0xff]
    %v1960 = vld [vmem:[#allocation8 + $0x114] sm:$0xf]
    %v1961 = vld [vmem:[#allocation8 + $0x118] sm:$0xff]
    %v1962 = vld [vmem:[#allocation8 + $0x120] sm:$0xff]
    %v1963 = vld [vmem:[#allocation8 + $0x128] sm:$0xf]
    %v1964 = vld [vmem:[#allocation8 + $0x12c] sm:$0xff]
    %v1965 = vld [vmem:[#allocation8 + $0x134] sm:$0xff]
    %v1966 = vld [vmem:[#allocation8 + $0x13c] sm:$0xf]
    %v1967 = vld [vmem:[#allocation8 + $0x140] sm:$0xff]
    %v1968 = vld [vmem:[#allocation8 + $0x148] sm:$0xff]
    %v1969 = vld [vmem:[#allocation8 + $0x150] sm:$0xf]
    %v1970 = vld [vmem:[#allocation8 + $0x154] sm:$0xff]
    %v1971 = vld [vmem:[#allocation8 + $0x15c] sm:$0xff]
    %v1972 = vld [vmem:[#allocation8 + $0x164] sm:$0xf]
    %v1973 = vld [vmem:[#allocation8 + $0x168] sm:$0xff]
    %v1974 = vld [vmem:[#allocation8 + $0x170] sm:$0xff]
    %v1975 = vld [vmem:[#allocation8 + $0x178] sm:$0xf]
    %v1976 = vld [vmem:[#allocation8 + $0x17c] sm:$0xff]
    %v1977 = vld [vmem:[#allocation8 + $0x184] sm:$0xff]
    %v1978 = vld [vmem:[#allocation8 + $0x18c] sm:$0xf]
    %v1979 = vld [vmem:[#allocation8 + $0x190] sm:$0xff]
    %v1980 = vld [vmem:[#allocation8 + $0x198] sm:$0xff]
    %v1981 = vld [vmem:[#allocation8 + $0x1a0] sm:$0xf]
    %v1982 = vld [vmem:[#allocation8 + $0x1a4] sm:$0xff]
    %v1983 = vld [vmem:[#allocation8 + $0x1ac] sm:$0xff]
    %v1984 = vld [vmem:[#allocation8 + $0x1b4] sm:$0xf]
    %v1985 = vld [vmem:[#allocation8 + $0x1b8] sm:$0xff]
    %v1986 = vld [vmem:[#allocation8 + $0x1c0] sm:$0xff]
    %v1987 = vld [vmem:[#allocation8 + $0x1c8] sm:$0xf]
    %v1988 = vld [vmem:[#allocation8 + $0x1cc] sm:$0xff]
    %v1989 = vld [vmem:[#allocation8 + $0x1d4] sm:$0xff]
    %v1990 = vld [vmem:[#allocation8 + $0x1dc] sm:$0xf]
    %v1991 = vld [vmem:[#allocation8 + $0x1e0] sm:$0xff]
    %v1992 = vld [vmem:[#allocation8 + $0x1e8] sm:$0xff]
    %v1993 = vld [vmem:[#allocation8 + $0x1f0] sm:$0xf]
    %v1994 = vld [vmem:[#allocation8 + $0x1f4] sm:$0xff]
    %v1995 = vld [vmem:[#allocation8 + $0x1fc] sm:$0xff]
    %v1996 = vld [vmem:[#allocation8 + $0x204] sm:$0xf]
    %v1997 = vld [vmem:[#allocation8 + $0x208] sm:$0xff]
    %v1998 = vld [vmem:[#allocation8 + $0x210] sm:$0xff]
    %v1999 = vld [vmem:[#allocation8 + $0x218] sm:$0xf]
    %v2000 = vld [vmem:[#allocation8 + $0x21c] sm:$0xff]
    %v2001 = vld [vmem:[#allocation8 + $0x224] sm:$0xff]
    %v2002 = vld [vmem:[#allocation8 + $0x22c] sm:$0xf]
    %v2003 = vld [vmem:[#allocation8 + $0x230] sm:$0xff]
    %v2004 = vld [vmem:[#allocation8 + $0x238] sm:$0xff]
    %v2005 = vld [vmem:[#allocation8 + $0x240] sm:$0xf]
    %v2006 = vld [vmem:[#allocation8 + $0x244] sm:$0xff]
    %v2007 = vld [vmem:[#allocation8 + $0x24c] sm:$0xff]
    %v2008 = vld [vmem:[#allocation8 + $0x254] sm:$0xf]
    %v2009 = vld [vmem:[#allocation8 + $0x258] sm:$0xff]
    %v2010 = vld [vmem:[#allocation8 + $0x260] sm:$0xff]
    %v2011 = vld [vmem:[#allocation8 + $0x268] sm:$0xf]
    %v2012 = vld [vmem:[#allocation8 + $0x26c] sm:$0xff]
    %v2013 = vld [vmem:[#allocation8 + $0x274] sm:$0xff]
    %v2014 = vld [vmem:[#allocation8 + $0x27c] sm:$0xf]
    %v2015 = vld [vmem:[#allocation8 + $0x280] sm:$0xff]
    %v2016 = vld [vmem:[#allocation8 + $0x288] sm:$0xff]
    %v2017 = vld [vmem:[#allocation8 + $0x290] sm:$0xf]
    %v2018 = vld [vmem:[#allocation8 + $0x294] sm:$0xff]
    %v2019 = vld [vmem:[#allocation8 + $0x29c] sm:$0xff]
    %v2020 = vld [vmem:[#allocation8 + $0x2a4] sm:$0xf]
    %v2021 = vld [vmem:[#allocation8 + $0x2a8] sm:$0xff]
    %v2022 = vld [vmem:[#allocation8 + $0x2b0] sm:$0xff]
    %v2023 = vld [vmem:[#allocation8 + $0x2b8] sm:$0xf]
    %v2024 = vld [vmem:[#allocation8 + $0x2bc] sm:$0xff]
    %v2025 = vld [vmem:[#allocation8 + $0x2c4] sm:$0xff]
    %v2026 = vld [vmem:[#allocation8 + $0x2cc] sm:$0xf]
    %v2027 = vld [vmem:[#allocation8 + $0x2d0] sm:$0xff]
    %v2028 = vld [vmem:[#allocation8 + $0x2d8] sm:$0xff]
    %v2029 = vld [vmem:[#allocation8 + $0x2e0] sm:$0xf]
    %v2030 = vld [vmem:[#allocation8 + $0x2e4] sm:$0xff]
    %v2031 = vld [vmem:[#allocation8 + $0x2ec] sm:$0xff]
    %v2032 = vld [vmem:[#allocation8 + $0x2f4] sm:$0xf]
    %v2033 = vld [vmem:[#allocation8 + $0x2f8] sm:$0xff]
    %v2034 = vld [vmem:[#allocation8 + $0x300] sm:$0xff]
    %v2035 = vld [vmem:[#allocation8 + $0x308] sm:$0xf]
    %v2036 = vld [vmem:[#allocation8 + $0x30c] sm:$0xff]
    %v2037 = vld [vmem:[#allocation8 + $0x314] sm:$0xff]
    %v2038 = vld [vmem:[#allocation8 + $0x31c] sm:$0xf]
    %v2039 = vld [vmem:[#allocation8 + $0x320] sm:$0xff]
    %v2040 = vld [vmem:[#allocation8 + $0x328] sm:$0xff]
    %v2041 = vld [vmem:[#allocation8 + $0x330] sm:$0xf]
    %v2042 = vld [vmem:[#allocation8 + $0x334] sm:$0xff]
    %v2043 = vld [vmem:[#allocation8 + $0x33c] sm:$0xff]
    %v2044 = vld [vmem:[#allocation8 + $0x344] sm:$0xf]
    %v2045 = vld [vmem:[#allocation8 + $0x348] sm:$0xff]
    %v2046 = vld [vmem:[#allocation8 + $0x350] sm:$0xff]
    %v2047 = vld [vmem:[#allocation8 + $0x358] sm:$0xf]
    %v2048 = vld [vmem:[#allocation8 + $0x35c] sm:$0xff]
    %v2049 = vld [vmem:[#allocation8 + $0x364] sm:$0xff]
    %v2050 = vld [vmem:[#allocation8 + $0x36c] sm:$0xf]
    %v2051 = vld [vmem:[#allocation8 + $0x370] sm:$0xff]
    %v2052 = vld [vmem:[#allocation8 + $0x378] sm:$0xff]
    %v2053 = vld [vmem:[#allocation8 + $0x380] sm:$0xf]
    %v2054 = vld [vmem:[#allocation8 + $0x384] sm:$0xff]
    %v2055 = vld [vmem:[#allocation8 + $0x38c] sm:$0xff]
    %v2056 = vld [vmem:[#allocation8 + $0x394] sm:$0xf]
    %v2057 = vld [vmem:[#allocation8 + $0x398] sm:$0xff]
    %v2058 = vld [vmem:[#allocation8 + $0x3a0] sm:$0xff]
    %v2059 = vld [vmem:[#allocation8 + $0x3a8] sm:$0xf]
    %v2060 = vld [vmem:[#allocation8 + $0x3ac] sm:$0xff]
    %v2061 = vld [vmem:[#allocation8 + $0x3b4] sm:$0xff]
    %v2062 = vld [vmem:[#allocation8 + $0x3bc] sm:$0xf]
    %v2063 = vld [vmem:[%s6] sm:$0x1f]
    %v2065 = vlaneseq
    %v2066 = vshrl.u32 %v2065, 7
    %v2067 = vsub.s32 0, %v2066
    %v2068 = vrot.slane %v2063, %v2067
    %v2069 = vlaneseq
    %v2070 = vshrl.u32 %v2069, 7
    %v2071 = vsub.s32 1, %v2070
    %v2072 = vrot.slane %v2063, %v2071
    %v2073 = vlaneseq
    %v2074 = vshrl.u32 %v2073, 7
    %v2075 = vsub.s32 2, %v2074
    %v2076 = vrot.slane %v2063, %v2075
    %v2077 = vlaneseq
    %v2078 = vshrl.u32 %v2077, 7
    %v2079 = vsub.s32 3, %v2078
    %v2080 = vrot.slane %v2063, %v2079
    %v2081 = vlaneseq
    %v2082 = vshrl.u32 %v2081, 7
    %v2083 = vsub.s32 4, %v2082
    %v2084 = vrot.slane %v2063, %v2083
    %v2234 = vunpack.c.l.b16 %v1919
    %v2235 = vunpack.c.h.b16 %v1919
    %v2236 = vunpack.c.l.b16 %v1920
    %v2237 = vunpack.c.h.b16 %v1920
    %v2238 = vunpack.c.l.b16 %v1921
    %v2239 = vunpack.c.l.b16 %v1922
    %v2240 = vunpack.c.h.b16 %v1922
    %v2241 = vunpack.c.l.b16 %v1923
    %v2242 = vunpack.c.h.b16 %v1923
    %v2243 = vunpack.c.l.b16 %v1924
    %v2244 = vunpack.c.l.b16 %v1925
    %v2245 = vunpack.c.h.b16 %v1925
    %v2246 = vunpack.c.l.b16 %v1926
    %v2247 = vunpack.c.h.b16 %v1926
    %v2248 = vunpack.c.l.b16 %v1927
    %v2249 = vunpack.c.l.b16 %v1928
    %v2250 = vunpack.c.h.b16 %v1928
    %v2251 = vunpack.c.l.b16 %v1929
    %v2252 = vunpack.c.h.b16 %v1929
    %v2253 = vunpack.c.l.b16 %v1930
    %v2254 = vunpack.c.l.b16 %v1931
    %v2255 = vunpack.c.h.b16 %v1931
    %v2256 = vunpack.c.l.b16 %v1932
    %v2257 = vunpack.c.h.b16 %v1932
    %v2258 = vunpack.c.l.b16 %v1933
    %v2259 = vunpack.c.l.b16 %v1934
    %v2260 = vunpack.c.h.b16 %v1934
    %v2261 = vunpack.c.l.b16 %v1935
    %v2262 = vunpack.c.h.b16 %v1935
    %v2263 = vunpack.c.l.b16 %v1936
    %v2264 = vunpack.c.l.b16 %v1937
    %v2265 = vunpack.c.h.b16 %v1937
    %v2266 = vunpack.c.l.b16 %v1938
    %v2267 = vunpack.c.h.b16 %v1938
    %v2268 = vunpack.c.l.b16 %v1939
    %v2269 = vunpack.c.l.b16 %v1940
    %v2270 = vunpack.c.h.b16 %v1940
    %v2271 = vunpack.c.l.b16 %v1941
    %v2272 = vunpack.c.h.b16 %v1941
    %v2273 = vunpack.c.l.b16 %v1942
    %v2274 = vunpack.c.l.b16 %v1943
    %v2275 = vunpack.c.h.b16 %v1943
    %v2276 = vunpack.c.l.b16 %v1944
    %v2277 = vunpack.c.h.b16 %v1944
    %v2278 = vunpack.c.l.b16 %v1945
    %v2279 = vunpack.c.l.b16 %v1946
    %v2280 = vunpack.c.h.b16 %v1946
    %v2281 = vunpack.c.l.b16 %v1947
    %v2282 = vunpack.c.h.b16 %v1947
    %v2283 = vunpack.c.l.b16 %v1948
    %v2284 = vunpack.c.l.b16 %v1949
    %v2285 = vunpack.c.h.b16 %v1949
    %v2286 = vunpack.c.l.b16 %v1950
    %v2287 = vunpack.c.h.b16 %v1950
    %v2288 = vunpack.c.l.b16 %v1951
    %v2289 = vunpack.c.l.b16 %v1952
    %v2290 = vunpack.c.h.b16 %v1952
    %v2291 = vunpack.c.l.b16 %v1953
    %v2292 = vunpack.c.h.b16 %v1953
    %v2293 = vunpack.c.l.b16 %v1954
    %v2294 = vunpack.c.l.b16 %v1955
    %v2295 = vunpack.c.h.b16 %v1955
    %v2296 = vunpack.c.l.b16 %v1956
    %v2297 = vunpack.c.h.b16 %v1956
    %v2298 = vunpack.c.l.b16 %v1957
    %v2299 = vunpack.c.l.b16 %v1958
    %v2300 = vunpack.c.h.b16 %v1958
    %v2301 = vunpack.c.l.b16 %v1959
    %v2302 = vunpack.c.h.b16 %v1959
    %v2303 = vunpack.c.l.b16 %v1960
    %v2304 = vunpack.c.l.b16 %v1961
    %v2305 = vunpack.c.h.b16 %v1961
    %v2306 = vunpack.c.l.b16 %v1962
    %v2307 = vunpack.c.h.b16 %v1962
    %v2308 = vunpack.c.l.b16 %v1963
    %v2309 = vunpack.c.l.b16 %v1964
    %v2310 = vunpack.c.h.b16 %v1964
    %v2311 = vunpack.c.l.b16 %v1965
    %v2312 = vunpack.c.h.b16 %v1965
    %v2313 = vunpack.c.l.b16 %v1966
    %v2314 = vunpack.c.l.b16 %v1967
    %v2315 = vunpack.c.h.b16 %v1967
    %v2316 = vunpack.c.l.b16 %v1968
    %v2317 = vunpack.c.h.b16 %v1968
    %v2318 = vunpack.c.l.b16 %v1969
    %v2319 = vunpack.c.l.b16 %v1970
    %v2320 = vunpack.c.h.b16 %v1970
    %v2321 = vunpack.c.l.b16 %v1971
    %v2322 = vunpack.c.h.b16 %v1971
    %v2323 = vunpack.c.l.b16 %v1972
    %v2324 = vunpack.c.l.b16 %v1973
    %v2325 = vunpack.c.h.b16 %v1973
    %v2326 = vunpack.c.l.b16 %v1974
    %v2327 = vunpack.c.h.b16 %v1974
    %v2328 = vunpack.c.l.b16 %v1975
    %v2329 = vunpack.c.l.b16 %v1976
    %v2330 = vunpack.c.h.b16 %v1976
    %v2331 = vunpack.c.l.b16 %v1977
    %v2332 = vunpack.c.h.b16 %v1977
    %v2333 = vunpack.c.l.b16 %v1978
    %v2334 = vunpack.c.l.b16 %v1979
    %v2335 = vunpack.c.h.b16 %v1979
    %v2336 = vunpack.c.l.b16 %v1980
    %v2337 = vunpack.c.h.b16 %v1980
    %v2338 = vunpack.c.l.b16 %v1981
    %v2339 = vunpack.c.l.b16 %v1982
    %v2340 = vunpack.c.h.b16 %v1982
    %v2341 = vunpack.c.l.b16 %v1983
    %v2342 = vunpack.c.h.b16 %v1983
    %v2343 = vunpack.c.l.b16 %v1984
    %v2344 = vunpack.c.l.b16 %v1985
    %v2345 = vunpack.c.h.b16 %v1985
    %v2346 = vunpack.c.l.b16 %v1986
    %v2347 = vunpack.c.h.b16 %v1986
    %v2348 = vunpack.c.l.b16 %v1987
    %v2349 = vunpack.c.l.b16 %v1988
    %v2350 = vunpack.c.h.b16 %v1988
    %v2351 = vunpack.c.l.b16 %v1989
    %v2352 = vunpack.c.h.b16 %v1989
    %v2353 = vunpack.c.l.b16 %v1990
    %v2354 = vunpack.c.l.b16 %v1991
    %v2355 = vunpack.c.h.b16 %v1991
    %v2356 = vunpack.c.l.b16 %v1992
    %v2357 = vunpack.c.h.b16 %v1992
    %v2358 = vunpack.c.l.b16 %v1993
    %v2359 = vunpack.c.l.b16 %v1994
    %v2360 = vunpack.c.h.b16 %v1994
    %v2361 = vunpack.c.l.b16 %v1995
    %v2362 = vunpack.c.h.b16 %v1995
    %v2363 = vunpack.c.l.b16 %v1996
    %v2364 = vunpack.c.l.b16 %v1997
    %v2365 = vunpack.c.h.b16 %v1997
    %v2366 = vunpack.c.l.b16 %v1998
    %v2367 = vunpack.c.h.b16 %v1998
    %v2368 = vunpack.c.l.b16 %v1999
    %v2369 = vunpack.c.l.b16 %v2000
    %v2370 = vunpack.c.h.b16 %v2000
    %v2371 = vunpack.c.l.b16 %v2001
    %v2372 = vunpack.c.h.b16 %v2001
    %v2373 = vunpack.c.l.b16 %v2002
    %v2374 = vunpack.c.l.b16 %v2003
    %v2375 = vunpack.c.h.b16 %v2003
    %v2376 = vunpack.c.l.b16 %v2004
    %v2377 = vunpack.c.h.b16 %v2004
    %v2378 = vunpack.c.l.b16 %v2005
    %v2379 = vunpack.c.l.b16 %v2006
    %v2380 = vunpack.c.h.b16 %v2006
    %v2381 = vunpack.c.l.b16 %v2007
    %v2382 = vunpack.c.h.b16 %v2007
    %v2383 = vunpack.c.l.b16 %v2008
    %v2384 = vunpack.c.l.b16 %v2009
    %v2385 = vunpack.c.h.b16 %v2009
    %v2386 = vunpack.c.l.b16 %v2010
    %v2387 = vunpack.c.h.b16 %v2010
    %v2388 = vunpack.c.l.b16 %v2011
    %v2389 = vunpack.c.l.b16 %v2012
    %v2390 = vunpack.c.h.b16 %v2012
    %v2391 = vunpack.c.l.b16 %v2013
    %v2392 = vunpack.c.h.b16 %v2013
    %v2393 = vunpack.c.l.b16 %v2014
    %v2394 = vunpack.c.l.b16 %v2015
    %v2395 = vunpack.c.h.b16 %v2015
    %v2396 = vunpack.c.l.b16 %v2016
    %v2397 = vunpack.c.h.b16 %v2016
    %v2398 = vunpack.c.l.b16 %v2017
    %v2399 = vunpack.c.l.b16 %v2018
    %v2400 = vunpack.c.h.b16 %v2018
    %v2401 = vunpack.c.l.b16 %v2019
    %v2402 = vunpack.c.h.b16 %v2019
    %v2403 = vunpack.c.l.b16 %v2020
    %v2404 = vunpack.c.l.b16 %v2021
    %v2405 = vunpack.c.h.b16 %v2021
    %v2406 = vunpack.c.l.b16 %v2022
    %v2407 = vunpack.c.h.b16 %v2022
    %v2408 = vunpack.c.l.b16 %v2023
    %v2409 = vunpack.c.l.b16 %v2024
    %v2410 = vunpack.c.h.b16 %v2024
    %v2411 = vunpack.c.l.b16 %v2025
    %v2412 = vunpack.c.h.b16 %v2025
    %v2413 = vunpack.c.l.b16 %v2026
    %v2414 = vunpack.c.l.b16 %v2027
    %v2415 = vunpack.c.h.b16 %v2027
    %v2416 = vunpack.c.l.b16 %v2028
    %v2417 = vunpack.c.h.b16 %v2028
    %v2418 = vunpack.c.l.b16 %v2029
    %v2419 = vunpack.c.l.b16 %v2030
    %v2420 = vunpack.c.h.b16 %v2030
    %v2421 = vunpack.c.l.b16 %v2031
    %v2422 = vunpack.c.h.b16 %v2031
    %v2423 = vunpack.c.l.b16 %v2032
    %v2424 = vunpack.c.l.b16 %v2033
    %v2425 = vunpack.c.h.b16 %v2033
    %v2426 = vunpack.c.l.b16 %v2034
    %v2427 = vunpack.c.h.b16 %v2034
    %v2428 = vunpack.c.l.b16 %v2035
    %v2429 = vunpack.c.l.b16 %v2036
    %v2430 = vunpack.c.h.b16 %v2036
    %v2431 = vunpack.c.l.b16 %v2037
    %v2432 = vunpack.c.h.b16 %v2037
    %v2433 = vunpack.c.l.b16 %v2038
    %v2434 = vunpack.c.l.b16 %v2039
    %v2435 = vunpack.c.h.b16 %v2039
    %v2436 = vunpack.c.l.b16 %v2040
    %v2437 = vunpack.c.h.b16 %v2040
    %v2438 = vunpack.c.l.b16 %v2041
    %v2439 = vunpack.c.l.b16 %v2042
    %v2440 = vunpack.c.h.b16 %v2042
    %v2441 = vunpack.c.l.b16 %v2043
    %v2442 = vunpack.c.h.b16 %v2043
    %v2443 = vunpack.c.l.b16 %v2044
    %v2444 = vunpack.c.l.b16 %v2045
    %v2445 = vunpack.c.h.b16 %v2045
    %v2446 = vunpack.c.l.b16 %v2046
    %v2447 = vunpack.c.h.b16 %v2046
    %v2448 = vunpack.c.l.b16 %v2047
    %v2449 = vunpack.c.l.b16 %v2048
    %v2450 = vunpack.c.h.b16 %v2048
    %v2451 = vunpack.c.l.b16 %v2049
    %v2452 = vunpack.c.h.b16 %v2049
    %v2453 = vunpack.c.l.b16 %v2050
    %v2454 = vunpack.c.l.b16 %v2051
    %v2455 = vunpack.c.h.b16 %v2051
    %v2456 = vunpack.c.l.b16 %v2052
    %v2457 = vunpack.c.h.b16 %v2052
    %v2458 = vunpack.c.l.b16 %v2053
    %v2459 = vunpack.c.l.b16 %v2054
    %v2460 = vunpack.c.h.b16 %v2054
    %v2461 = vunpack.c.l.b16 %v2055
    %v2462 = vunpack.c.h.b16 %v2055
    %v2463 = vunpack.c.l.b16 %v2056
    %v2464 = vunpack.c.l.b16 %v2057
    %v2465 = vunpack.c.h.b16 %v2057
    %v2466 = vunpack.c.l.b16 %v2058
    %v2467 = vunpack.c.h.b16 %v2058
    %v2468 = vunpack.c.l.b16 %v2059
    %v2469 = vunpack.c.l.b16 %v2060
    %v2470 = vunpack.c.h.b16 %v2060
    %v2471 = vunpack.c.l.b16 %v2061
    %v2472 = vunpack.c.h.b16 %v2061
    %v2473 = vunpack.c.l.b16 %v2062
    %v2474 = vpack.c.b16 %v2239, %v2234
    %v2475 = vpack.c.b16 %v2240, %v2235
    %v2476 = vpack.c.b16 %v2241, %v2236
    %v2477 = vpack.c.b16 %v2242, %v2237
    %v2478 = vpack.c.b16 %v2243, %v2238
    %v2479 = vpack.c.b16 %v2249, %v2244
    %v2480 = vpack.c.b16 %v2250, %v2245
    %v2481 = vpack.c.b16 %v2251, %v2246
    %v2482 = vpack.c.b16 %v2252, %v2247
    %v2483 = vpack.c.b16 %v2253, %v2248
    %v2484 = vpack.c.b16 %v2259, %v2254
    %v2485 = vpack.c.b16 %v2260, %v2255
    %v2486 = vpack.c.b16 %v2261, %v2256
    %v2487 = vpack.c.b16 %v2262, %v2257
    %v2488 = vpack.c.b16 %v2263, %v2258
    %v2489 = vpack.c.b16 %v2269, %v2264
    %v2490 = vpack.c.b16 %v2270, %v2265
    %v2491 = vpack.c.b16 %v2271, %v2266
    %v2492 = vpack.c.b16 %v2272, %v2267
    %v2493 = vpack.c.b16 %v2273, %v2268
    %v2494 = vpack.c.b16 %v2279, %v2274
    %v2495 = vpack.c.b16 %v2280, %v2275
    %v2496 = vpack.c.b16 %v2281, %v2276
    %v2497 = vpack.c.b16 %v2282, %v2277
    %v2498 = vpack.c.b16 %v2283, %v2278
    %v2499 = vpack.c.b16 %v2289, %v2284
    %v2500 = vpack.c.b16 %v2290, %v2285
    %v2501 = vpack.c.b16 %v2291, %v2286
    %v2502 = vpack.c.b16 %v2292, %v2287
    %v2503 = vpack.c.b16 %v2293, %v2288
    %v2504 = vpack.c.b16 %v2299, %v2294
    %v2505 = vpack.c.b16 %v2300, %v2295
    %v2506 = vpack.c.b16 %v2301, %v2296
    %v2507 = vpack.c.b16 %v2302, %v2297
    %v2508 = vpack.c.b16 %v2303, %v2298
    %v2509 = vpack.c.b16 %v2309, %v2304
    %v2510 = vpack.c.b16 %v2310, %v2305
    %v2511 = vpack.c.b16 %v2311, %v2306
    %v2512 = vpack.c.b16 %v2312, %v2307
    %v2513 = vpack.c.b16 %v2313, %v2308
    %v2514 = vpack.c.b16 %v2319, %v2314
    %v2515 = vpack.c.b16 %v2320, %v2315
    %v2516 = vpack.c.b16 %v2321, %v2316
    %v2517 = vpack.c.b16 %v2322, %v2317
    %v2518 = vpack.c.b16 %v2323, %v2318
    %v2519 = vpack.c.b16 %v2329, %v2324
    %v2520 = vpack.c.b16 %v2330, %v2325
    %v2521 = vpack.c.b16 %v2331, %v2326
    %v2522 = vpack.c.b16 %v2332, %v2327
    %v2523 = vpack.c.b16 %v2333, %v2328
    %v2524 = vpack.c.b16 %v2339, %v2334
    %v2525 = vpack.c.b16 %v2340, %v2335
    %v2526 = vpack.c.b16 %v2341, %v2336
    %v2527 = vpack.c.b16 %v2342, %v2337
    %v2528 = vpack.c.b16 %v2343, %v2338
    %v2529 = vpack.c.b16 %v2349, %v2344
    %v2530 = vpack.c.b16 %v2350, %v2345
    %v2531 = vpack.c.b16 %v2351, %v2346
    %v2532 = vpack.c.b16 %v2352, %v2347
    %v2533 = vpack.c.b16 %v2353, %v2348
    %v2534 = vpack.c.b16 %v2359, %v2354
    %v2535 = vpack.c.b16 %v2360, %v2355
    %v2536 = vpack.c.b16 %v2361, %v2356
    %v2537 = vpack.c.b16 %v2362, %v2357
    %v2538 = vpack.c.b16 %v2363, %v2358
    %v2539 = vpack.c.b16 %v2369, %v2364
    %v2540 = vpack.c.b16 %v2370, %v2365
    %v2541 = vpack.c.b16 %v2371, %v2366
    %v2542 = vpack.c.b16 %v2372, %v2367
    %v2543 = vpack.c.b16 %v2373, %v2368
    %v2544 = vpack.c.b16 %v2379, %v2374
    %v2545 = vpack.c.b16 %v2380, %v2375
    %v2546 = vpack.c.b16 %v2381, %v2376
    %v2547 = vpack.c.b16 %v2382, %v2377
    %v2548 = vpack.c.b16 %v2383, %v2378
    %v2549 = vpack.c.b16 %v2389, %v2384
    %v2550 = vpack.c.b16 %v2390, %v2385
    %v2551 = vpack.c.b16 %v2391, %v2386
    %v2552 = vpack.c.b16 %v2392, %v2387
    %v2553 = vpack.c.b16 %v2393, %v2388
    %v2554 = vpack.c.b16 %v2399, %v2394
    %v2555 = vpack.c.b16 %v2400, %v2395
    %v2556 = vpack.c.b16 %v2401, %v2396
    %v2557 = vpack.c.b16 %v2402, %v2397
    %v2558 = vpack.c.b16 %v2403, %v2398
    %v2559 = vpack.c.b16 %v2409, %v2404
    %v2560 = vpack.c.b16 %v2410, %v2405
    %v2561 = vpack.c.b16 %v2411, %v2406
    %v2562 = vpack.c.b16 %v2412, %v2407
    %v2563 = vpack.c.b16 %v2413, %v2408
    %v2564 = vpack.c.b16 %v2419, %v2414
    %v2565 = vpack.c.b16 %v2420, %v2415
    %v2566 = vpack.c.b16 %v2421, %v2416
    %v2567 = vpack.c.b16 %v2422, %v2417
    %v2568 = vpack.c.b16 %v2423, %v2418
    %v2569 = vpack.c.b16 %v2429, %v2424
    %v2570 = vpack.c.b16 %v2430, %v2425
    %v2571 = vpack.c.b16 %v2431, %v2426
    %v2572 = vpack.c.b16 %v2432, %v2427
    %v2573 = vpack.c.b16 %v2433, %v2428
    %v2574 = vpack.c.b16 %v2439, %v2434
    %v2575 = vpack.c.b16 %v2440, %v2435
    %v2576 = vpack.c.b16 %v2441, %v2436
    %v2577 = vpack.c.b16 %v2442, %v2437
    %v2578 = vpack.c.b16 %v2443, %v2438
    %v2579 = vpack.c.b16 %v2449, %v2444
    %v2580 = vpack.c.b16 %v2450, %v2445
    %v2581 = vpack.c.b16 %v2451, %v2446
    %v2582 = vpack.c.b16 %v2452, %v2447
    %v2583 = vpack.c.b16 %v2453, %v2448
    %v2584 = vpack.c.b16 %v2459, %v2454
    %v2585 = vpack.c.b16 %v2460, %v2455
    %v2586 = vpack.c.b16 %v2461, %v2456
    %v2587 = vpack.c.b16 %v2462, %v2457
    %v2588 = vpack.c.b16 %v2463, %v2458
    %v2589 = vpack.c.b16 %v2469, %v2464
    %v2590 = vpack.c.b16 %v2470, %v2465
    %v2591 = vpack.c.b16 %v2471, %v2466
    %v2592 = vpack.c.b16 %v2472, %v2467
    %v2593 = vpack.c.b16 %v2473, %v2468
    %2714 = vmatprep.subr.bf16.mxu0 %v2475
    %2715 = vmatpush1.bf16.msra.mxu0 %v2474
    %2716 = vmatprep.subr.bf16.mxu0 %v2480
    %2717 = vmatpush1.bf16.msra.mxu0 %v2479
    %2718 = vmatprep.subr.bf16.mxu0 %v2485
    %2719 = vmatpush1.bf16.msra.mxu0 %v2484
    %2720 = vmatprep.subr.bf16.mxu0 %v2490
    %2721 = vmatpush1.bf16.msra.mxu0 %v2489
    %2722 = vmatprep.subr.bf16.mxu0 %v2495
    %2723 = vmatpush1.bf16.msra.mxu0 %v2494
    %2724 = vmatprep.subr.bf16.mxu0 %v2500
    %2725 = vmatpush1.bf16.msra.mxu0 %v2499
    %2726 = vmatprep.subr.bf16.mxu0 %v2505
    %2727 = vmatpush1.bf16.msra.mxu0 %v2504
    %2728 = vmatprep.subr.bf16.mxu0 %v2510
    %2729 = vmatpush1.bf16.msra.mxu0 %v2509
    %2730 = vmatprep.subr.bf16.mxu0 %v2515
    %2731 = vmatpush1.bf16.msra.mxu0 %v2514
    %2732 = vmatprep.subr.bf16.mxu0 %v2520
    %2733 = vmatpush1.bf16.msra.mxu0 %v2519
    %2734 = vmatprep.subr.bf16.mxu0 %v2525
    %2735 = vmatpush1.bf16.msra.mxu0 %v2524
    %2736 = vmatprep.subr.bf16.mxu0 %v2530
    %2737 = vmatpush1.bf16.msra.mxu0 %v2529
    %2738 = vmatprep.subr.bf16.mxu0 %v2535
    %2739 = vmatpush1.bf16.msra.mxu0 %v2534
    %2740 = vmatprep.subr.bf16.mxu0 %v2540
    %2741 = vmatpush1.bf16.msra.mxu0 %v2539
    %2742 = vmatprep.subr.bf16.mxu0 %v2545
    %2743 = vmatpush1.bf16.msra.mxu0 %v2544
    %2744 = vmatprep.subr.bf16.mxu0 %v2550
    %2745 = vmatpush1.bf16.msra.mxu0 %v2549
    %2746 = vmatprep.mubr.bf16.mxu0 %v1911
    %2747 = vmatmul.mubr.bf16.gmra.mrb[0].mxu0 %v1910
    %v2748 = vpop.f32.mrb[0].mxu0
    %v2749 = vadd.f32 %v2068, %v2748
    %v2750 = vpop.f32.mrb[0].mxu0
    %v2751 = vadd.f32 %v2072, %v2750
    %v2752 = vpop.f32.mrb[0].mxu0
    %v2753 = vadd.f32 %v2068, %v2752
    %v2754 = vpop.f32.mrb[0].mxu0
    %v2755 = vadd.f32 %v2072, %v2754
    %2756 = vmatprep.mubr.bf16.mxu0 %v1914
    %2757 = vmatmul.mubr.bf16.gmra.mrb[0].mxu0 %v1913
    %v2758 = vpop.f32.mrb[0].mxu0
    %v2759 = vadd.f32 %v2068, %v2758
    %v2760 = vpop.f32.mrb[0].mxu0
    %v2761 = vadd.f32 %v2072, %v2760
    %v2762 = vpop.f32.mrb[0].mxu0
    %v2763 = vadd.f32 %v2068, %v2762
    %v2764 = vpop.f32.mrb[0].mxu0
    %v2765 = vadd.f32 %v2072, %v2764
    %2766 = vmatprep.mubr.bf16.mxu0 %v1917
    %2767 = vmatmul.mubr.bf16.gmra.mrb[0].mxu0 %v1916
    %v2768 = vpop.f32.mrb[0].mxu0
    %v2769 = vadd.f32 %v2068, %v2768
    %v2770 = vpop.f32.mrb[0].mxu0
    %v2771 = vadd.f32 %v2072, %v2770
    %v2772 = vpop.f32.mrb[0].mxu0
    %v2773 = vadd.f32 %v2068, %v2772
    %v2774 = vpop.f32.mrb[0].mxu0
    %v2775 = vadd.f32 %v2072, %v2774
    %2776 = vdwg.mxu0
    %2777 = vmatprep.subr.bf16.mxu0 %v2555
    %2778 = vmatpush1.bf16.msra.mxu0 %v2554
    %2779 = vmatprep.subr.bf16.mxu0 %v2560
    %2780 = vmatpush1.bf16.msra.mxu0 %v2559
    %2781 = vmatprep.subr.bf16.mxu0 %v2565
    %2782 = vmatpush1.bf16.msra.mxu0 %v2564
    %2783 = vmatprep.subr.bf16.mxu0 %v2570
    %2784 = vmatpush1.bf16.msra.mxu0 %v2569
    %2785 = vmatprep.subr.bf16.mxu0 %v2575
    %2786 = vmatpush1.bf16.msra.mxu0 %v2574
    %2787 = vmatprep.subr.bf16.mxu0 %v2580
    %2788 = vmatpush1.bf16.msra.mxu0 %v2579
    %2789 = vmatprep.subr.bf16.mxu0 %v2585
    %2790 = vmatpush1.bf16.msra.mxu0 %v2584
    %2791 = vmatprep.subr.bf16.mxu0 %v2590
    %2792 = vmatpush1.bf16.msra.mxu0 %v2589
    %2793 = vmatprep.subr.bf16.mxu0 0
    %2794 = vmatpush1.bf16.msra.mxu0 0
    %2795 = vmatprep.subr.bf16.mxu0 0
    %2796 = vmatpush1.bf16.msra.mxu0 0
    %2797 = vmatprep.subr.bf16.mxu0 0
    %2798 = vmatpush1.bf16.msra.mxu0 0
    %2799 = vmatprep.subr.bf16.mxu0 0
    %2800 = vmatpush1.bf16.msra.mxu0 0
    %2801 = vmatprep.subr.bf16.mxu0 0
    %2802 = vmatpush1.bf16.msra.mxu0 0
    %2803 = vmatprep.subr.bf16.mxu0 0
    %2804 = vmatpush1.bf16.msra.mxu0 0
    %2805 = vmatprep.subr.bf16.mxu0 0
    %2806 = vmatpush1.bf16.msra.mxu0 0
    %2807 = vmatprep.subr.bf16.mxu0 0
    %2808 = vmatpush1.bf16.msra.mxu0 0
    %2809 = vmatprep.mubr.bf16.mxu0 0
    %2810 = vmatmul.mubr.bf16.gmra.mrb[0].mxu0 %v1912
    %v2811 = vpop.f32.mrb[0].mxu0
    %v2812 = vadd.f32 %v2749, %v2811
    %v2813 = vpop.f32.mrb[0].mxu0
    %v2814 = vadd.f32 %v2751, %v2813
    %v2815 = vpop.f32.mrb[0].mxu0
    %v2816 = vadd.f32 %v2753, %v2815
    %v2817 = vpop.f32.mrb[0].mxu0
    %v2818 = vadd.f32 %v2755, %v2817
    %2819 = vmatprep.mubr.bf16.mxu0 0
    %2820 = vmatmul.mubr.bf16.gmra.mrb[0].mxu0 %v1915
    %v2821 = vpop.f32.mrb[0].mxu0
    %v2822 = vadd.f32 %v2759, %v2821
    %v2823 = vpop.f32.mrb[0].mxu0
    %v2824 = vadd.f32 %v2761, %v2823
    %v2825 = vpop.f32.mrb[0].mxu0
    %v2826 = vadd.f32 %v2763, %v2825
    %v2827 = vpop.f32.mrb[0].mxu0
    %v2828 = vadd.f32 %v2765, %v2827
    %2829 = vmatprep.mubr.bf16.mxu0 0
    %2830 = vmatmul.mubr.bf16.gmra.mrb[0].mxu0 %v1918
    %v2831 = vpop.f32.mrb[0].mxu0
    %v2832 = vadd.f32 %v2769, %v2831
    %v2833 = vpop.f32.mrb[0].mxu0
    %v2834 = vadd.f32 %v2771, %v2833
    %v2835 = vpop.f32.mrb[0].mxu0
    %v2836 = vadd.f32 %v2773, %v2835
    %v2837 = vpop.f32.mrb[0].mxu0
    %v2838 = vadd.f32 %v2775, %v2837
    %2839 = vdwg.mxu0
    %2840 = vmatprep.subr.bf16.mxu0 %v2477
    %2841 = vmatpush1.bf16.msra.mxu0 %v2476
    %2842 = vmatprep.subr.bf16.mxu0 %v2482
    %2843 = vmatpush1.bf16.msra.mxu0 %v2481
    %2844 = vmatprep.subr.bf16.mxu0 %v2487
    %2845 = vmatpush1.bf16.msra.mxu0 %v2486
    %2846 = vmatprep.subr.bf16.mxu0 %v2492
    %2847 = vmatpush1.bf16.msra.mxu0 %v2491
    %2848 = vmatprep.subr.bf16.mxu0 %v2497
    %2849 = vmatpush1.bf16.msra.mxu0 %v2496
    %2850 = vmatprep.subr.bf16.mxu0 %v2502
    %2851 = vmatpush1.bf16.msra.mxu0 %v2501
    %2852 = vmatprep.subr.bf16.mxu0 %v2507
    %2853 = vmatpush1.bf16.msra.mxu0 %v2506
    %2854 = vmatprep.subr.bf16.mxu0 %v2512
    %2855 = vmatpush1.bf16.msra.mxu0 %v2511
    %2856 = vmatprep.subr.bf16.mxu0 %v2517
    %2857 = vmatpush1.bf16.msra.mxu0 %v2516
    %2858 = vmatprep.subr.bf16.mxu0 %v2522
    %2859 = vmatpush1.bf16.msra.mxu0 %v2521
    %2860 = vmatprep.subr.bf16.mxu0 %v2527
    %2861 = vmatpush1.bf16.msra.mxu0 %v2526
    %2862 = vmatprep.subr.bf16.mxu0 %v2532
    %2863 = vmatpush1.bf16.msra.mxu0 %v2531
    %2864 = vmatprep.subr.bf16.mxu0 %v2537
    %2865 = vmatpush1.bf16.msra.mxu0 %v2536
    %2866 = vmatprep.subr.bf16.mxu0 %v2542
    %2867 = vmatpush1.bf16.msra.mxu0 %v2541
    %2868 = vmatprep.subr.bf16.mxu0 %v2547
    %2869 = vmatpush1.bf16.msra.mxu0 %v2546
    %2870 = vmatprep.subr.bf16.mxu0 %v2552
    %2871 = vmatpush1.bf16.msra.mxu0 %v2551
    %2872 = vmatprep.mubr.bf16.mxu0 %v1911
    %2873 = vmatmul.mubr.bf16.gmra.mrb[0].mxu0 %v1910
    %v2874 = vpop.f32.mrb[0].mxu0
    %v2875 = vadd.f32 %v2076, %v2874
    %v2876 = vpop.f32.mrb[0].mxu0
    %v2877 = vadd.f32 %v2080, %v2876
    %v2878 = vpop.f32.mrb[0].mxu0
    %v2879 = vadd.f32 %v2076, %v2878
    %v2880 = vpop.f32.mrb[0].mxu0
    %v2881 = vadd.f32 %v2080, %v2880
    %2882 = vmatprep.mubr.bf16.mxu0 %v1914
    %2883 = vmatmul.mubr.bf16.gmra.mrb[0].mxu0 %v1913
    %v2884 = vpop.f32.mrb[0].mxu0
    %v2885 = vadd.f32 %v2076, %v2884
    %v2886 = vpop.f32.mrb[0].mxu0
    %v2887 = vadd.f32 %v2080, %v2886
    %v2888 = vpop.f32.mrb[0].mxu0
    %v2889 = vadd.f32 %v2076, %v2888
    %v2890 = vpop.f32.mrb[0].mxu0
    %v2891 = vadd.f32 %v2080, %v2890
    %2892 = vmatprep.mubr.bf16.mxu0 %v1917
    %2893 = vmatmul.mubr.bf16.gmra.mrb[0].mxu0 %v1916
    %v2894 = vpop.f32.mrb[0].mxu0
    %v2895 = vadd.f32 %v2076, %v2894
    %v2896 = vpop.f32.mrb[0].mxu0
    %v2897 = vadd.f32 %v2080, %v2896
    %v2898 = vpop.f32.mrb[0].mxu0
    %v2899 = vadd.f32 %v2076, %v2898
    %v2900 = vpop.f32.mrb[0].mxu0
    %v2901 = vadd.f32 %v2080, %v2900
    %2902 = vdwg.mxu0
    %2903 = vmatprep.subr.bf16.mxu0 %v2557
    %2904 = vmatpush1.bf16.msra.mxu0 %v2556
    %2905 = vmatprep.subr.bf16.mxu0 %v2562
    %2906 = vmatpush1.bf16.msra.mxu0 %v2561
    %2907 = vmatprep.subr.bf16.mxu0 %v2567
    %2908 = vmatpush1.bf16.msra.mxu0 %v2566
    %2909 = vmatprep.subr.bf16.mxu0 %v2572
    %2910 = vmatpush1.bf16.msra.mxu0 %v2571
    %2911 = vmatprep.subr.bf16.mxu0 %v2577
    %2912 = vmatpush1.bf16.msra.mxu0 %v2576
    %2913 = vmatprep.subr.bf16.mxu0 %v2582
    %2914 = vmatpush1.bf16.msra.mxu0 %v2581
    %2915 = vmatprep.subr.bf16.mxu0 %v2587
    %2916 = vmatpush1.bf16.msra.mxu0 %v2586
    %2917 = vmatprep.subr.bf16.mxu0 %v2592
    %2918 = vmatpush1.bf16.msra.mxu0 %v2591
    %2919 = vmatprep.subr.bf16.mxu0 0
    %2920 = vmatpush1.bf16.msra.mxu0 0
    %2921 = vmatprep.subr.bf16.mxu0 0
    %2922 = vmatpush1.bf16.msra.mxu0 0
    %2923 = vmatprep.subr.bf16.mxu0 0
    %2924 = vmatpush1.bf16.msra.mxu0 0
    %2925 = vmatprep.subr.bf16.mxu0 0
    %2926 = vmatpush1.bf16.msra.mxu0 0
    %2927 = vmatprep.subr.bf16.mxu0 0
    %2928 = vmatpush1.bf16.msra.mxu0 0
    %2929 = vmatprep.subr.bf16.mxu0 0
    %2930 = vmatpush1.bf16.msra.mxu0 0
    %2931 = vmatprep.subr.bf16.mxu0 0
    %2932 = vmatpush1.bf16.msra.mxu0 0
    %2933 = vmatprep.subr.bf16.mxu0 0
    %2934 = vmatpush1.bf16.msra.mxu0 0
    %2935 = vmatprep.mubr.bf16.mxu0 0
    %2936 = vmatmul.mubr.bf16.gmra.mrb[0].mxu0 %v1912
    %v2937 = vpop.f32.mrb[0].mxu0
    %v2938 = vadd.f32 %v2875, %v2937
    %v2939 = vpop.f32.mrb[0].mxu0
    %v2940 = vadd.f32 %v2877, %v2939
    %v2941 = vpop.f32.mrb[0].mxu0
    %v2942 = vadd.f32 %v2879, %v2941
    %v2943 = vpop.f32.mrb[0].mxu0
    %v2944 = vadd.f32 %v2881, %v2943
    %2945 = vmatprep.mubr.bf16.mxu0 0
    %2946 = vmatmul.mubr.bf16.gmra.mrb[0].mxu0 %v1915
    %v2947 = vpop.f32.mrb[0].mxu0
    %v2948 = vadd.f32 %v2885, %v2947
    %v2949 = vpop.f32.mrb[0].mxu0
    %v2950 = vadd.f32 %v2887, %v2949
    %v2951 = vpop.f32.mrb[0].mxu0
    %v2952 = vadd.f32 %v2889, %v2951
    %v2953 = vpop.f32.mrb[0].mxu0
    %v2954 = vadd.f32 %v2891, %v2953
    %2955 = vmatprep.mubr.bf16.mxu0 0
    %2956 = vmatmul.mubr.bf16.gmra.mrb[0].mxu0 %v1918
    %v2957 = vpop.f32.mrb[0].mxu0
    %v2958 = vadd.f32 %v2895, %v2957
    %v2959 = vpop.f32.mrb[0].mxu0
    %v2960 = vadd.f32 %v2897, %v2959
    %v2961 = vpop.f32.mrb[0].mxu0
    %v2962 = vadd.f32 %v2899, %v2961
    %v2963 = vpop.f32.mrb[0].mxu0
    %v2964 = vadd.f32 %v2901, %v2963
    %2965 = vdwg.mxu0
    %2966 = vmatprep.subr.bf16.mxu0 0
    %2967 = vmatpush1.bf16.msra.mxu0 %v2478
    %2968 = vmatprep.subr.bf16.mxu0 0
    %2969 = vmatpush1.bf16.msra.mxu0 %v2483
    %2970 = vmatprep.subr.bf16.mxu0 0
    %2971 = vmatpush1.bf16.msra.mxu0 %v2488
    %2972 = vmatprep.subr.bf16.mxu0 0
    %2973 = vmatpush1.bf16.msra.mxu0 %v2493
    %2974 = vmatprep.subr.bf16.mxu0 0
    %2975 = vmatpush1.bf16.msra.mxu0 %v2498
    %2976 = vmatprep.subr.bf16.mxu0 0
    %2977 = vmatpush1.bf16.msra.mxu0 %v2503
    %2978 = vmatprep.subr.bf16.mxu0 0
    %2979 = vmatpush1.bf16.msra.mxu0 %v2508
    %2980 = vmatprep.subr.bf16.mxu0 0
    %2981 = vmatpush1.bf16.msra.mxu0 %v2513
    %2982 = vmatprep.subr.bf16.mxu0 0
    %2983 = vmatpush1.bf16.msra.mxu0 %v2518
    %2984 = vmatprep.subr.bf16.mxu0 0
    %2985 = vmatpush1.bf16.msra.mxu0 %v2523
    %2986 = vmatprep.subr.bf16.mxu0 0
    %2987 = vmatpush1.bf16.msra.mxu0 %v2528
    %2988 = vmatprep.subr.bf16.mxu0 0
    %2989 = vmatpush1.bf16.msra.mxu0 %v2533
    %2990 = vmatprep.subr.bf16.mxu0 0
    %2991 = vmatpush1.bf16.msra.mxu0 %v2538
    %2992 = vmatprep.subr.bf16.mxu0 0
    %2993 = vmatpush1.bf16.msra.mxu0 %v2543
    %2994 = vmatprep.subr.bf16.mxu0 0
    %2995 = vmatpush1.bf16.msra.mxu0 %v2548
    %2996 = vmatprep.subr.bf16.mxu0 0
    %2997 = vmatpush1.bf16.msra.mxu0 %v2553
    %2998 = vmatprep.mubr.bf16.mxu0 %v1911
    %2999 = vmatmul.mubr.bf16.gmra.mrb[0].mxu0 %v1910
    %v3000 = vpop.f32.mrb[0].mxu0
    %v3001 = vadd.f32 %v2084, %v3000
    %v3002 = vpop.f32.mrb[0].mxu0
    %v3003 = vpop.f32.mrb[0].mxu0
    %v3004 = vadd.f32 %v2084, %v3003
    %v3005 = vpop.f32.mrb[0].mxu0
    %3006 = vmatprep.mubr.bf16.mxu0 %v1914
    %3007 = vmatmul.mubr.bf16.gmra.mrb[0].mxu0 %v1913
    %v3008 = vpop.f32.mrb[0].mxu0
    %v3009 = vadd.f32 %v2084, %v3008
    %v3010 = vpop.f32.mrb[0].mxu0
    %v3011 = vpop.f32.mrb[0].mxu0
    %v3012 = vadd.f32 %v2084, %v3011
    %v3013 = vpop.f32.mrb[0].mxu0
    %3014 = vmatprep.mubr.bf16.mxu0 %v1917
    %3015 = vmatmul.mubr.bf16.gmra.mrb[0].mxu0 %v1916
    %v3016 = vpop.f32.mrb[0].mxu0
    %v3017 = vadd.f32 %v2084, %v3016
    %v3018 = vpop.f32.mrb[0].mxu0
    %v3019 = vpop.f32.mrb[0].mxu0
    %v3020 = vadd.f32 %v2084, %v3019
    %v3021 = vpop.f32.mrb[0].mxu0
    %3022 = vdwg.mxu0
    %3023 = vmatprep.subr.bf16.mxu0 0
    %3024 = vmatpush1.bf16.msra.mxu0 %v2558
    %3025 = vmatprep.subr.bf16.mxu0 0
    %3026 = vmatpush1.bf16.msra.mxu0 %v2563
    %3027 = vmatprep.subr.bf16.mxu0 0
    %3028 = vmatpush1.bf16.msra.mxu0 %v2568
    %3029 = vmatprep.subr.bf16.mxu0 0
    %3030 = vmatpush1.bf16.msra.mxu0 %v2573
    %3031 = vmatprep.subr.bf16.mxu0 0
    %3032 = vmatpush1.bf16.msra.mxu0 %v2578
    %3033 = vmatprep.subr.bf16.mxu0 0
    %3034 = vmatpush1.bf16.msra.mxu0 %v2583
    %3035 = vmatprep.subr.bf16.mxu0 0
    %3036 = vmatpush1.bf16.msra.mxu0 %v2588
    %3037 = vmatprep.subr.bf16.mxu0 0
    %3038 = vmatpush1.bf16.msra.mxu0 %v2593
    %3039 = vmatprep.subr.bf16.mxu0 0
    %3040 = vmatpush1.bf16.msra.mxu0 0
    %3041 = vmatprep.subr.bf16.mxu0 0
    %3042 = vmatpush1.bf16.msra.mxu0 0
    %3043 = vmatprep.subr.bf16.mxu0 0
    %3044 = vmatpush1.bf16.msra.mxu0 0
    %3045 = vmatprep.subr.bf16.mxu0 0
    %3046 = vmatpush1.bf16.msra.mxu0 0
    %3047 = vmatprep.subr.bf16.mxu0 0
    %3048 = vmatpush1.bf16.msra.mxu0 0
    %3049 = vmatprep.subr.bf16.mxu0 0
    %3050 = vmatpush1.bf16.msra.mxu0 0
    %3051 = vmatprep.subr.bf16.mxu0 0
    %3052 = vmatpush1.bf16.msra.mxu0 0
    %3053 = vmatprep.subr.bf16.mxu0 0
    %3054 = vmatpush1.bf16.msra.mxu0 0
    %3055 = vmatprep.mubr.bf16.mxu0 0
    %3056 = vmatmul.mubr.bf16.gmra.mrb[0].mxu0 %v1912
    %v3057 = vpop.f32.mrb[0].mxu0
    %v3058 = vadd.f32 %v3001, %v3057
    %v3059 = vpop.f32.mrb[0].mxu0
    %v3060 = vpop.f32.mrb[0].mxu0
    %v3061 = vadd.f32 %v3004, %v3060
    %v3062 = vpop.f32.mrb[0].mxu0
    %3063 = vmatprep.mubr.bf16.mxu0 0
    %3064 = vmatmul.mubr.bf16.gmra.mrb[0].mxu0 %v1915
    %v3065 = vpop.f32.mrb[0].mxu0
    %v3066 = vadd.f32 %v3009, %v3065
    %v3067 = vpop.f32.mrb[0].mxu0
    %v3068 = vpop.f32.mrb[0].mxu0
    %v3069 = vadd.f32 %v3012, %v3068
    %v3070 = vpop.f32.mrb[0].mxu0
    %3071 = vmatprep.mubr.bf16.mxu0 0
    %3072 = vmatmul.mubr.bf16.gmra.mrb[0].mxu0 %v1918
    %v3073 = vpop.f32.mrb[0].mxu0
    %v3074 = vadd.f32 %v3017, %v3073
    %v3075 = vpop.f32.mrb[0].mxu0
    %v3076 = vpop.f32.mrb[0].mxu0
    %v3077 = vadd.f32 %v3020, %v3076
    %v3078 = vpop.f32.mrb[0].mxu0
    %3079 = vdwg.mxu0
    %v3080 = vmax.f32 %v2812, 0.0
    %v3081 = vmax.f32 %v2814, 0.0
    %v3082 = vmax.f32 %v2938, 0.0
    %v3083 = vmax.f32 %v2940, 0.0
    %v3084 = vmax.f32 %v3058, 0.0
    %v3085 = vmax.f32 %v2816, 0.0
    %v3086 = vmax.f32 %v2818, 0.0
    %v3087 = vmax.f32 %v2942, 0.0
    %v3088 = vmax.f32 %v2944, 0.0
    %v3089 = vmax.f32 %v3061, 0.0
    %v3090 = vmax.f32 %v2822, 0.0
    %v3091 = vmax.f32 %v2824, 0.0
    %v3092 = vmax.f32 %v2948, 0.0
    %v3093 = vmax.f32 %v2950, 0.0
    %v3094 = vmax.f32 %v3066, 0.0
    %v3095 = vmax.f32 %v2826, 0.0
    %v3096 = vmax.f32 %v2828, 0.0
    %v3097 = vmax.f32 %v2952, 0.0
    %v3098 = vmax.f32 %v2954, 0.0
    %v3099 = vmax.f32 %v3069, 0.0
    %v3100 = vmax.f32 %v2832, 0.0
    %v3101 = vmax.f32 %v2834, 0.0
    %v3102 = vmax.f32 %v2958, 0.0
    %v3103 = vmax.f32 %v2960, 0.0
    %v3104 = vmax.f32 %v3074, 0.0
    %v3105 = vmax.f32 %v2836, 0.0
    %v3106 = vmax.f32 %v2838, 0.0
    %v3107 = vmax.f32 %v2962, 0.0
    %v3108 = vmax.f32 %v2964, 0.0
    %v3109 = vmax.f32 %v3077, 0.0
    %v3110 = vpack.c.bf16 %v3085, %v3080
    %v3111 = vpack.c.bf16 %v3086, %v3081
    %v3112 = vpack.c.bf16 %v3087, %v3082
    %v3113 = vpack.c.bf16 %v3088, %v3083
    %v3114 = vpack.c.bf16 %v3089, %v3084
    %v3115 = vpack.c.bf16 %v3095, %v3090
    %v3116 = vpack.c.bf16 %v3096, %v3091
    %v3117 = vpack.c.bf16 %v3097, %v3092
    %v3118 = vpack.c.bf16 %v3098, %v3093
    %v3119 = vpack.c.bf16 %v3099, %v3094
    %v3120 = vpack.c.bf16 %v3105, %v3100
    %v3121 = vpack.c.bf16 %v3106, %v3101
    %v3122 = vpack.c.bf16 %v3107, %v3102
    %v3123 = vpack.c.bf16 %v3108, %v3103
    %v3124 = vpack.c.bf16 %v3109, %v3104
    %v3125 = vld [vmem:[#allocation10] sm:$0xf]
    %v3126 = vld [vmem:[#allocation10 + $0x4] sm:$0xf]
    %v3127 = vld [vmem:[#allocation10 + $0x8] sm:$0xf]
    %v3128 = vld [vmem:[#allocation10 + $0xc] sm:$0xf]
    %v3129 = vld [vmem:[#allocation10 + $0x10] sm:$0xf]
    %v3130 = vld [vmem:[#allocation10 + $0x14] sm:$0xf]
    %v3131 = vld [vmem:[#allocation10 + $0x18] sm:$0xf]
    %v3132 = vld [vmem:[#allocation10 + $0x1c] sm:$0xf]
    %v3133 = vld [vmem:[#allocation10 + $0x20] sm:$0xf]
    %v3134 = vld [vmem:[#allocation10 + $0x24] sm:$0xf]
    %v3135 = vld [vmem:[#allocation10 + $0x28] sm:$0xf]
    %v3136 = vld [vmem:[#allocation10 + $0x2c] sm:$0xf]
    %v3137 = vld [vmem:[#allocation10 + $0x30] sm:$0xf]
    %v3138 = vld [vmem:[#allocation10 + $0x34] sm:$0xf]
    %v3139 = vld [vmem:[#allocation10 + $0x38] sm:$0xf]
    %v3140 = vld [vmem:[#allocation10 + $0x3c] sm:$0xf]
    %v3141 = vld [vmem:[#allocation10 + $0x40] sm:$0xf]
    %v3142 = vld [vmem:[#allocation10 + $0x44] sm:$0xf]
    %v3143 = vld [vmem:[#allocation10 + $0x48] sm:$0xf]
    %v3144 = vld [vmem:[#allocation10 + $0x4c] sm:$0xf]
    %v3145 = vld [vmem:[#allocation10 + $0x50] sm:$0xf]
    %v3146 = vld [vmem:[#allocation10 + $0x54] sm:$0xf]
    %v3147 = vld [vmem:[#allocation10 + $0x58] sm:$0xf]
    %v3148 = vld [vmem:[#allocation10 + $0x5c] sm:$0xf]
    %v3149 = vld [vmem:[#allocation10 + $0x60] sm:$0xf]
    %v3150 = vld [vmem:[#allocation10 + $0x64] sm:$0xf]
    %v3151 = vld [vmem:[#allocation10 + $0x68] sm:$0xf]
    %v3152 = vld [vmem:[#allocation10 + $0x6c] sm:$0xf]
    %v3153 = vld [vmem:[#allocation10 + $0x70] sm:$0xf]
    %v3154 = vld [vmem:[#allocation10 + $0x74] sm:$0xf]
    %v3155 = vld [vmem:[#allocation10 + $0x78] sm:$0xf]
    %v3156 = vld [vmem:[#allocation10 + $0x7c] sm:$0xf]
    %v3157 = vld [vmem:[#allocation10 + $0x80] sm:$0xf]
    %v3158 = vld [vmem:[#allocation10 + $0x84] sm:$0xf]
    %v3159 = vld [vmem:[#allocation10 + $0x88] sm:$0xf]
    %v3160 = vld [vmem:[#allocation10 + $0x8c] sm:$0xf]
    %v3161 = vld [vmem:[#allocation10 + $0x90] sm:$0xf]
    %v3162 = vld [vmem:[#allocation10 + $0x94] sm:$0xf]
    %v3163 = vld [vmem:[#allocation10 + $0x98] sm:$0xf]
    %v3164 = vld [vmem:[#allocation10 + $0x9c] sm:$0xf]
    %v3165 = vld [vmem:[#allocation10 + $0xa0] sm:$0xf]
    %v3166 = vld [vmem:[#allocation10 + $0xa4] sm:$0xf]
    %v3167 = vld [vmem:[#allocation10 + $0xa8] sm:$0xf]
    %v3168 = vld [vmem:[#allocation10 + $0xac] sm:$0xf]
    %v3169 = vld [vmem:[#allocation10 + $0xb0] sm:$0xf]
    %v3170 = vld [vmem:[#allocation10 + $0xb4] sm:$0xf]
    %v3171 = vld [vmem:[#allocation10 + $0xb8] sm:$0xf]
    %v3172 = vld [vmem:[#allocation10 + $0xbc] sm:$0xf]
    %v3173 = vld [vmem:[#allocation10 + $0xc0] sm:$0xf]
    %v3174 = vld [vmem:[#allocation10 + $0xc4] sm:$0xf]
    %v3175 = vld [vmem:[#allocation10 + $0xc8] sm:$0xf]
    %v3176 = vld [vmem:[#allocation10 + $0xcc] sm:$0xf]
    %v3177 = vld [vmem:[#allocation10 + $0xd0] sm:$0xf]
    %v3178 = vld [vmem:[#allocation10 + $0xd4] sm:$0xf]
    %v3179 = vld [vmem:[#allocation10 + $0xd8] sm:$0xf]
    %v3180 = vld [vmem:[#allocation10 + $0xdc] sm:$0xf]
    %v3181 = vld [vmem:[#allocation10 + $0xe0] sm:$0xf]
    %v3182 = vld [vmem:[#allocation10 + $0xe4] sm:$0xf]
    %v3183 = vld [vmem:[#allocation10 + $0xe8] sm:$0xf]
    %v3184 = vld [vmem:[#allocation10 + $0xec] sm:$0xf]
    %v3185 = vld [vmem:[#allocation10 + $0xf0] sm:$0xf]
    %v3186 = vld [vmem:[#allocation10 + $0xf4] sm:$0xf]
    %v3187 = vld [vmem:[#allocation10 + $0xf8] sm:$0xf]
    %v3188 = vld [vmem:[#allocation10 + $0xfc] sm:$0xf]
    %v3189 = vld [vmem:[#allocation10 + $0x100] sm:$0xf]
    %v3190 = vld [vmem:[#allocation10 + $0x104] sm:$0xf]
    %v3191 = vld [vmem:[#allocation10 + $0x108] sm:$0xf]
    %v3192 = vld [vmem:[#allocation10 + $0x10c] sm:$0xf]
    %v3193 = vld [vmem:[#allocation10 + $0x110] sm:$0xf]
    %v3194 = vld [vmem:[#allocation10 + $0x114] sm:$0xf]
    %v3195 = vld [vmem:[#allocation10 + $0x118] sm:$0xf]
    %v3196 = vld [vmem:[#allocation10 + $0x11c] sm:$0xf]
    %v3197 = vld [vmem:[#allocation10 + $0x120] sm:$0xf]
    %v3198 = vld [vmem:[#allocation10 + $0x124] sm:$0xf]
    %v3199 = vld [vmem:[#allocation10 + $0x128] sm:$0xf]
    %v3200 = vld [vmem:[#allocation10 + $0x12c] sm:$0xf]
    %v3201 = vld [vmem:[#allocation10 + $0x130] sm:$0xf]
    %v3202 = vld [vmem:[#allocation10 + $0x134] sm:$0xf]
    %v3203 = vld [vmem:[#allocation10 + $0x138] sm:$0xf]
    %v3204 = vld [vmem:[#allocation10 + $0x13c] sm:$0xf]
    %s3205 = scalar_lea.vmem [#allocation10], 320
    %v3206 = vld [vmem:[%s3205] sm:$0xf]
    %v3207 = vld [vmem:[%s3205 + $0x4] sm:$0xf]
    %v3208 = vld [vmem:[%s3205 + $0x8] sm:$0xf]
    %v3209 = vld [vmem:[%s3205 + $0xc] sm:$0xf]
    %v3210 = vld [vmem:[%s3205 + $0x10] sm:$0xf]
    %v3211 = vld [vmem:[%s3205 + $0x14] sm:$0xf]
    %v3212 = vld [vmem:[%s3205 + $0x18] sm:$0xf]
    %v3213 = vld [vmem:[%s3205 + $0x1c] sm:$0xf]
    %v3214 = vld [vmem:[%s3205 + $0x20] sm:$0xf]
    %v3215 = vld [vmem:[%s3205 + $0x24] sm:$0xf]
    %v3216 = vld [vmem:[%s3205 + $0x28] sm:$0xf]
    %v3217 = vld [vmem:[%s3205 + $0x2c] sm:$0xf]
    %v3218 = vld [vmem:[%s3205 + $0x30] sm:$0xf]
    %v3219 = vld [vmem:[%s3205 + $0x34] sm:$0xf]
    %v3220 = vld [vmem:[%s3205 + $0x38] sm:$0xf]
    %v3221 = vld [vmem:[%s3205 + $0x3c] sm:$0xf]
    %v3222 = vld [vmem:[%s3205 + $0x40] sm:$0xf]
    %v3223 = vld [vmem:[%s3205 + $0x44] sm:$0xf]
    %v3224 = vld [vmem:[%s3205 + $0x48] sm:$0xf]
    %v3225 = vld [vmem:[%s3205 + $0x4c] sm:$0xf]
    %v3226 = vld [vmem:[%s3205 + $0x50] sm:$0xf]
    %v3227 = vld [vmem:[%s3205 + $0x54] sm:$0xf]
    %v3228 = vld [vmem:[%s3205 + $0x58] sm:$0xf]
    %v3229 = vld [vmem:[%s3205 + $0x5c] sm:$0xf]
    %v3230 = vld [vmem:[%s3205 + $0x60] sm:$0xf]
    %v3231 = vld [vmem:[%s3205 + $0x64] sm:$0xf]
    %v3232 = vld [vmem:[%s3205 + $0x68] sm:$0xf]
    %v3233 = vld [vmem:[%s3205 + $0x6c] sm:$0xf]
    %v3234 = vld [vmem:[%s3205 + $0x70] sm:$0xf]
    %v3235 = vld [vmem:[%s3205 + $0x74] sm:$0xf]
    %v3236 = vld [vmem:[%s3205 + $0x78] sm:$0xf]
    %v3237 = vld [vmem:[%s3205 + $0x7c] sm:$0xf]
    %v3238 = vld [vmem:[%s3205 + $0x80] sm:$0xf]
    %v3239 = vld [vmem:[%s3205 + $0x84] sm:$0xf]
    %v3240 = vld [vmem:[%s3205 + $0x88] sm:$0xf]
    %v3241 = vld [vmem:[%s3205 + $0x8c] sm:$0xf]
    %v3242 = vld [vmem:[%s3205 + $0x90] sm:$0xf]
    %v3243 = vld [vmem:[%s3205 + $0x94] sm:$0xf]
    %v3244 = vld [vmem:[%s3205 + $0x98] sm:$0xf]
    %v3245 = vld [vmem:[%s3205 + $0x9c] sm:$0xf]
    %v3246 = vld [vmem:[%s3205 + $0xa0] sm:$0xf]
    %v3247 = vld [vmem:[%s3205 + $0xa4] sm:$0xf]
    %v3248 = vld [vmem:[%s3205 + $0xa8] sm:$0xf]
    %v3249 = vld [vmem:[%s3205 + $0xac] sm:$0xf]
    %v3250 = vld [vmem:[%s3205 + $0xb0] sm:$0xf]
    %v3251 = vld [vmem:[%s3205 + $0xb4] sm:$0xf]
    %v3252 = vld [vmem:[%s3205 + $0xb8] sm:$0xf]
    %v3253 = vld [vmem:[%s3205 + $0xbc] sm:$0xf]
    %v3254 = vld [vmem:[%s3205 + $0xc0] sm:$0xf]
    %v3255 = vld [vmem:[%s3205 + $0xc4] sm:$0xf]
    %v3256 = vld [vmem:[%s3205 + $0xc8] sm:$0xf]
    %v3257 = vld [vmem:[%s3205 + $0xcc] sm:$0xf]
    %v3258 = vld [vmem:[%s3205 + $0xd0] sm:$0xf]
    %v3259 = vld [vmem:[%s3205 + $0xd4] sm:$0xf]
    %v3260 = vld [vmem:[%s3205 + $0xd8] sm:$0xf]
    %v3261 = vld [vmem:[%s3205 + $0xdc] sm:$0xf]
    %v3262 = vld [vmem:[%s3205 + $0xe0] sm:$0xf]
    %v3263 = vld [vmem:[%s3205 + $0xe4] sm:$0xf]
    %v3264 = vld [vmem:[%s3205 + $0xe8] sm:$0xf]
    %v3265 = vld [vmem:[%s3205 + $0xec] sm:$0xf]
    %v3266 = vld [vmem:[%s3205 + $0xf0] sm:$0xf]
    %v3267 = vld [vmem:[%s3205 + $0xf4] sm:$0xf]
    %v3268 = vld [vmem:[%s3205 + $0xf8] sm:$0xf]
    %v3269 = vld [vmem:[%s3205 + $0xfc] sm:$0xf]
    %v3270 = vld [vmem:[%s3205 + $0x100] sm:$0xf]
    %v3271 = vld [vmem:[%s3205 + $0x104] sm:$0xf]
    %v3272 = vld [vmem:[%s3205 + $0x108] sm:$0xf]
    %v3273 = vld [vmem:[%s3205 + $0x10c] sm:$0xf]
    %v3274 = vld [vmem:[%s3205 + $0x110] sm:$0xf]
    %v3275 = vld [vmem:[%s3205 + $0x114] sm:$0xf]
    %v3276 = vld [vmem:[%s3205 + $0x118] sm:$0xf]
    %v3277 = vld [vmem:[%s3205 + $0x11c] sm:$0xf]
    %v3278 = vld [vmem:[%s3205 + $0x120] sm:$0xf]
    %v3279 = vld [vmem:[%s3205 + $0x124] sm:$0xf]
    %v3280 = vld [vmem:[%s3205 + $0x128] sm:$0xf]
    %v3281 = vld [vmem:[%s3205 + $0x12c] sm:$0xf]
    %v3282 = vld [vmem:[%s3205 + $0x130] sm:$0xf]
    %v3283 = vld [vmem:[%s3205 + $0x134] sm:$0xf]
    %v3284 = vld [vmem:[%s3205 + $0x138] sm:$0xf]
    %v3285 = vld [vmem:[%s3205 + $0x13c] sm:$0xf]
    %v3366 = vunpack.c.l.b16 %v3206
    %v3367 = vunpack.c.l.b16 %v3207
    %v3368 = vunpack.c.l.b16 %v3208
    %v3369 = vunpack.c.l.b16 %v3209
    %v3370 = vunpack.c.l.b16 %v3210
    %v3371 = vunpack.c.l.b16 %v3211
    %v3372 = vunpack.c.l.b16 %v3212
    %v3373 = vunpack.c.l.b16 %v3213
    %v3374 = vunpack.c.l.b16 %v3214
    %v3375 = vunpack.c.l.b16 %v3215
    %v3376 = vunpack.c.l.b16 %v3216
    %v3377 = vunpack.c.l.b16 %v3217
    %v3378 = vunpack.c.l.b16 %v3218
    %v3379 = vunpack.c.l.b16 %v3219
    %v3380 = vunpack.c.l.b16 %v3220
    %v3381 = vunpack.c.l.b16 %v3221
    %v3382 = vunpack.c.l.b16 %v3222
    %v3383 = vunpack.c.l.b16 %v3223
    %v3384 = vunpack.c.l.b16 %v3224
    %v3385 = vunpack.c.l.b16 %v3225
    %v3386 = vunpack.c.l.b16 %v3226
    %v3387 = vunpack.c.l.b16 %v3227
    %v3388 = vunpack.c.l.b16 %v3228
    %v3389 = vunpack.c.l.b16 %v3229
    %v3390 = vunpack.c.l.b16 %v3230
    %v3391 = vunpack.c.l.b16 %v3231
    %v3392 = vunpack.c.l.b16 %v3232
    %v3393 = vunpack.c.l.b16 %v3233
    %v3394 = vunpack.c.l.b16 %v3234
    %v3395 = vunpack.c.l.b16 %v3235
    %v3396 = vunpack.c.l.b16 %v3236
    %v3397 = vunpack.c.l.b16 %v3237
    %v3398 = vunpack.c.l.b16 %v3238
    %v3399 = vunpack.c.l.b16 %v3239
    %v3400 = vunpack.c.l.b16 %v3240
    %v3401 = vunpack.c.l.b16 %v3241
    %v3402 = vunpack.c.l.b16 %v3242
    %v3403 = vunpack.c.l.b16 %v3243
    %v3404 = vunpack.c.l.b16 %v3244
    %v3405 = vunpack.c.l.b16 %v3245
    %v3406 = vunpack.c.l.b16 %v3246
    %v3407 = vunpack.c.l.b16 %v3247
    %v3408 = vunpack.c.l.b16 %v3248
    %v3409 = vunpack.c.l.b16 %v3249
    %v3410 = vunpack.c.l.b16 %v3250
    %v3411 = vunpack.c.l.b16 %v3251
    %v3412 = vunpack.c.l.b16 %v3252
    %v3413 = vunpack.c.l.b16 %v3253
    %v3414 = vunpack.c.l.b16 %v3254
    %v3415 = vunpack.c.l.b16 %v3255
    %v3416 = vunpack.c.l.b16 %v3256
    %v3417 = vunpack.c.l.b16 %v3257
    %v3418 = vunpack.c.l.b16 %v3258
    %v3419 = vunpack.c.l.b16 %v3259
    %v3420 = vunpack.c.l.b16 %v3260
    %v3421 = vunpack.c.l.b16 %v3261
    %v3422 = vunpack.c.l.b16 %v3262
    %v3423 = vunpack.c.l.b16 %v3263
    %v3424 = vunpack.c.l.b16 %v3264
    %v3425 = vunpack.c.l.b16 %v3265
    %v3426 = vunpack.c.l.b16 %v3266
    %v3427 = vunpack.c.l.b16 %v3267
    %v3428 = vunpack.c.l.b16 %v3268
    %v3429 = vunpack.c.l.b16 %v3269
    %v3430 = vunpack.c.l.b16 %v3270
    %v3431 = vunpack.c.l.b16 %v3271
    %v3432 = vunpack.c.l.b16 %v3272
    %v3433 = vunpack.c.l.b16 %v3273
    %v3434 = vunpack.c.l.b16 %v3274
    %v3435 = vunpack.c.l.b16 %v3275
    %v3436 = vunpack.c.l.b16 %v3276
    %v3437 = vunpack.c.l.b16 %v3277
    %v3438 = vunpack.c.l.b16 %v3278
    %v3439 = vunpack.c.l.b16 %v3279
    %v3440 = vunpack.c.l.b16 %v3280
    %v3441 = vunpack.c.l.b16 %v3281
    %v3442 = vunpack.c.l.b16 %v3282
    %v3443 = vunpack.c.l.b16 %v3283
    %v3444 = vunpack.c.l.b16 %v3284
    %v3445 = vunpack.c.l.b16 %v3285
    %v3446 = vpack.c.b16 %v3367, %v3366
    %v3447 = vpack.c.b16 %v3369, %v3368
    %v3448 = vpack.c.b16 %v3371, %v3370
    %v3449 = vpack.c.b16 %v3373, %v3372
    %v3450 = vpack.c.b16 %v3375, %v3374
    %v3451 = vpack.c.b16 %v3377, %v3376
    %v3452 = vpack.c.b16 %v3379, %v3378
    %v3453 = vpack.c.b16 %v3381, %v3380
    %v3454 = vpack.c.b16 %v3383, %v3382
    %v3455 = vpack.c.b16 %v3385, %v3384
    %v3456 = vpack.c.b16 %v3387, %v3386
    %v3457 = vpack.c.b16 %v3389, %v3388
    %v3458 = vpack.c.b16 %v3391, %v3390
    %v3459 = vpack.c.b16 %v3393, %v3392
    %v3460 = vpack.c.b16 %v3395, %v3394
    %v3461 = vpack.c.b16 %v3397, %v3396
    %v3462 = vpack.c.b16 %v3399, %v3398
    %v3463 = vpack.c.b16 %v3401, %v3400
    %v3464 = vpack.c.b16 %v3403, %v3402
    %v3465 = vpack.c.b16 %v3405, %v3404
    %v3466 = vpack.c.b16 %v3407, %v3406
    %v3467 = vpack.c.b16 %v3409, %v3408
    %v3468 = vpack.c.b16 %v3411, %v3410
    %v3469 = vpack.c.b16 %v3413, %v3412
    %v3470 = vpack.c.b16 %v3415, %v3414
    %v3471 = vpack.c.b16 %v3417, %v3416
    %v3472 = vpack.c.b16 %v3419, %v3418
    %v3473 = vpack.c.b16 %v3421, %v3420
    %v3474 = vpack.c.b16 %v3423, %v3422
    %v3475 = vpack.c.b16 %v3425, %v3424
    %v3476 = vpack.c.b16 %v3427, %v3426
    %v3477 = vpack.c.b16 %v3429, %v3428
    %v3478 = vpack.c.b16 %v3431, %v3430
    %v3479 = vpack.c.b16 %v3433, %v3432
    %v3480 = vpack.c.b16 %v3435, %v3434
    %v3481 = vpack.c.b16 %v3437, %v3436
    %v3482 = vpack.c.b16 %v3439, %v3438
    %v3483 = vpack.c.b16 %v3441, %v3440
    %v3484 = vpack.c.b16 %v3443, %v3442
    %v3485 = vpack.c.b16 %v3445, %v3444
    %3526 = vmatprep.subr.bf16.mxu0 0
    %3527 = vmatpush1.bf16.msra.mxu0 %v3446
    %3528 = vmatprep.subr.bf16.mxu0 0
    %3529 = vmatpush1.bf16.msra.mxu0 %v3447
    %3530 = vmatprep.subr.bf16.mxu0 0
    %3531 = vmatpush1.bf16.msra.mxu0 %v3448
    %3532 = vmatprep.subr.bf16.mxu0 0
    %3533 = vmatpush1.bf16.msra.mxu0 %v3449
    %3534 = vmatprep.subr.bf16.mxu0 0
    %3535 = vmatpush1.bf16.msra.mxu0 %v3450
    %3536 = vmatprep.subr.bf16.mxu0 0
    %3537 = vmatpush1.bf16.msra.mxu0 %v3451
    %3538 = vmatprep.subr.bf16.mxu0 0
    %3539 = vmatpush1.bf16.msra.mxu0 %v3452
    %3540 = vmatprep.subr.bf16.mxu0 0
    %3541 = vmatpush1.bf16.msra.mxu0 %v3453
    %3542 = vmatprep.subr.bf16.mxu0 0
    %3543 = vmatpush1.bf16.msra.mxu0 %v3454
    %3544 = vmatprep.subr.bf16.mxu0 0
    %3545 = vmatpush1.bf16.msra.mxu0 %v3455
    %3546 = vmatprep.subr.bf16.mxu0 0
    %3547 = vmatpush1.bf16.msra.mxu0 %v3456
    %3548 = vmatprep.subr.bf16.mxu0 0
    %3549 = vmatpush1.bf16.msra.mxu0 %v3457
    %3550 = vmatprep.subr.bf16.mxu0 0
    %3551 = vmatpush1.bf16.msra.mxu0 %v3458
    %3552 = vmatprep.subr.bf16.mxu0 0
    %3553 = vmatpush1.bf16.msra.mxu0 %v3459
    %3554 = vmatprep.subr.bf16.mxu0 0
    %3555 = vmatpush1.bf16.msra.mxu0 %v3460
    %3556 = vmatprep.subr.bf16.mxu0 0
    %3557 = vmatpush1.bf16.msra.mxu0 %v3461
    %3558 = vmatprep.mubr.bf16.mxu0 %v3116
    %3559 = vmatmul.mubr.bf16.gmra.mrb[0].mxu0 %v3115
    %v3560 = vpop.f32.mrb[0].mxu0
    %v3561 = vadd.f32 0.0, %v3560
    %v3562 = vpop.f32.mrb[0].mxu0
    %v3563 = vpop.f32.mrb[0].mxu0
    %v3564 = vadd.f32 0.0, %v3563
    %v3565 = vpop.f32.mrb[0].mxu0
    %3566 = vdwg.mxu0
    %3567 = vmatprep.subr.bf16.mxu0 0
    %3568 = vmatpush1.bf16.msra.mxu0 %v3462
    %3569 = vmatprep.subr.bf16.mxu0 0
    %3570 = vmatpush1.bf16.msra.mxu0 %v3463
    %3571 = vmatprep.subr.bf16.mxu0 0
    %3572 = vmatpush1.bf16.msra.mxu0 %v3464
    %3573 = vmatprep.subr.bf16.mxu0 0
    %3574 = vmatpush1.bf16.msra.mxu0 %v3465
    %3575 = vmatprep.subr.bf16.mxu0 0
    %3576 = vmatpush1.bf16.msra.mxu0 %v3466
    %3577 = vmatprep.subr.bf16.mxu0 0
    %3578 = vmatpush1.bf16.msra.mxu0 %v3467
    %3579 = vmatprep.subr.bf16.mxu0 0
    %3580 = vmatpush1.bf16.msra.mxu0 %v3468
    %3581 = vmatprep.subr.bf16.mxu0 0
    %3582 = vmatpush1.bf16.msra.mxu0 %v3469
    %3583 = vmatprep.subr.bf16.mxu0 0
    %3584 = vmatpush1.bf16.msra.mxu0 %v3470
    %3585 = vmatprep.subr.bf16.mxu0 0
    %3586 = vmatpush1.bf16.msra.mxu0 %v3471
    %3587 = vmatprep.subr.bf16.mxu0 0
    %3588 = vmatpush1.bf16.msra.mxu0 %v3472
    %3589 = vmatprep.subr.bf16.mxu0 0
    %3590 = vmatpush1.bf16.msra.mxu0 %v3473
    %3591 = vmatprep.subr.bf16.mxu0 0
    %3592 = vmatpush1.bf16.msra.mxu0 %v3474
    %3593 = vmatprep.subr.bf16.mxu0 0
    %3594 = vmatpush1.bf16.msra.mxu0 %v3475
    %3595 = vmatprep.subr.bf16.mxu0 0
    %3596 = vmatpush1.bf16.msra.mxu0 %v3476
    %3597 = vmatprep.subr.bf16.mxu0 0
    %3598 = vmatpush1.bf16.msra.mxu0 %v3477
    %3599 = vmatprep.mubr.bf16.mxu0 %v3118
    %3600 = vmatmul.mubr.bf16.gmra.mrb[0].mxu0 %v3117
    %v3601 = vpop.f32.mrb[0].mxu0
    %v3602 = vadd.f32 %v3561, %v3601
    %v3603 = vpop.f32.mrb[0].mxu0
    %v3604 = vpop.f32.mrb[0].mxu0
    %v3605 = vadd.f32 %v3564, %v3604
    %v3606 = vpop.f32.mrb[0].mxu0
    %3607 = vdwg.mxu0
    %3608 = vmatprep.subr.bf16.mxu0 0
    %3609 = vmatpush1.bf16.msra.mxu0 %v3478
    %3610 = vmatprep.subr.bf16.mxu0 0
    %3611 = vmatpush1.bf16.msra.mxu0 %v3479
    %3612 = vmatprep.subr.bf16.mxu0 0
    %3613 = vmatpush1.bf16.msra.mxu0 %v3480
    %3614 = vmatprep.subr.bf16.mxu0 0
    %3615 = vmatpush1.bf16.msra.mxu0 %v3481
    %3616 = vmatprep.subr.bf16.mxu0 0
    %3617 = vmatpush1.bf16.msra.mxu0 %v3482
    %3618 = vmatprep.subr.bf16.mxu0 0
    %3619 = vmatpush1.bf16.msra.mxu0 %v3483
    %3620 = vmatprep.subr.bf16.mxu0 0
    %3621 = vmatpush1.bf16.msra.mxu0 %v3484
    %3622 = vmatprep.subr.bf16.mxu0 0
    %3623 = vmatpush1.bf16.msra.mxu0 %v3485
    %3624 = vmatprep.subr.bf16.mxu0 0
    %3625 = vmatpush1.bf16.msra.mxu0 0
    %3626 = vmatprep.subr.bf16.mxu0 0
    %3627 = vmatpush1.bf16.msra.mxu0 0
    %3628 = vmatprep.subr.bf16.mxu0 0
    %3629 = vmatpush1.bf16.msra.mxu0 0
    %3630 = vmatprep.subr.bf16.mxu0 0
    %3631 = vmatpush1.bf16.msra.mxu0 0
    %3632 = vmatprep.subr.bf16.mxu0 0
    %3633 = vmatpush1.bf16.msra.mxu0 0
    %3634 = vmatprep.subr.bf16.mxu0 0
    %3635 = vmatpush1.bf16.msra.mxu0 0
    %3636 = vmatprep.subr.bf16.mxu0 0
    %3637 = vmatpush1.bf16.msra.mxu0 0
    %3638 = vmatprep.subr.bf16.mxu0 0
    %3639 = vmatpush1.bf16.msra.mxu0 0
    %3640 = vmatprep.mubr.bf16.mxu0 0
    %3641 = vmatmul.mubr.bf16.gmra.mrb[0].mxu0 %v3119
    %v3642 = vpop.f32.mrb[0].mxu0
    %v3643 = vadd.f32 %v3602, %v3642
    %v3644 = vpop.f32.mrb[0].mxu0
    %v3645 = vpop.f32.mrb[0].mxu0
    %v3646 = vadd.f32 %v3605, %v3645
    %v3647 = vpop.f32.mrb[0].mxu0
    %3648 = vdwg.mxu0
    %v3729 = vunpack.c.l.b16 %v3125
    %v3730 = vunpack.c.l.b16 %v3126
    %v3731 = vunpack.c.l.b16 %v3127
    %v3732 = vunpack.c.l.b16 %v3128
    %v3733 = vunpack.c.l.b16 %v3129
    %v3734 = vunpack.c.l.b16 %v3130
    %v3735 = vunpack.c.l.b16 %v3131
    %v3736 = vunpack.c.l.b16 %v3132
    %v3737 = vunpack.c.l.b16 %v3133
    %v3738 = vunpack.c.l.b16 %v3134
    %v3739 = vunpack.c.l.b16 %v3135
    %v3740 = vunpack.c.l.b16 %v3136
    %v3741 = vunpack.c.l.b16 %v3137
    %v3742 = vunpack.c.l.b16 %v3138
    %v3743 = vunpack.c.l.b16 %v3139
    %v3744 = vunpack.c.l.b16 %v3140
    %v3745 = vunpack.c.l.b16 %v3141
    %v3746 = vunpack.c.l.b16 %v3142
    %v3747 = vunpack.c.l.b16 %v3143
    %v3748 = vunpack.c.l.b16 %v3144
    %v3749 = vunpack.c.l.b16 %v3145
    %v3750 = vunpack.c.l.b16 %v3146
    %v3751 = vunpack.c.l.b16 %v3147
    %v3752 = vunpack.c.l.b16 %v3148
    %v3753 = vunpack.c.l.b16 %v3149
    %v3754 = vunpack.c.l.b16 %v3150
    %v3755 = vunpack.c.l.b16 %v3151
    %v3756 = vunpack.c.l.b16 %v3152
    %v3757 = vunpack.c.l.b16 %v3153
    %v3758 = vunpack.c.l.b16 %v3154
    %v3759 = vunpack.c.l.b16 %v3155
    %v3760 = vunpack.c.l.b16 %v3156
    %v3761 = vunpack.c.l.b16 %v3157
    %v3762 = vunpack.c.l.b16 %v3158
    %v3763 = vunpack.c.l.b16 %v3159
    %v3764 = vunpack.c.l.b16 %v3160
    %v3765 = vunpack.c.l.b16 %v3161
    %v3766 = vunpack.c.l.b16 %v3162
    %v3767 = vunpack.c.l.b16 %v3163
    %v3768 = vunpack.c.l.b16 %v3164
    %v3769 = vunpack.c.l.b16 %v3165
    %v3770 = vunpack.c.l.b16 %v3166
    %v3771 = vunpack.c.l.b16 %v3167
    %v3772 = vunpack.c.l.b16 %v3168
    %v3773 = vunpack.c.l.b16 %v3169
    %v3774 = vunpack.c.l.b16 %v3170
    %v3775 = vunpack.c.l.b16 %v3171
    %v3776 = vunpack.c.l.b16 %v3172
    %v3777 = vunpack.c.l.b16 %v3173
    %v3778 = vunpack.c.l.b16 %v3174
    %v3779 = vunpack.c.l.b16 %v3175
    %v3780 = vunpack.c.l.b16 %v3176
    %v3781 = vunpack.c.l.b16 %v3177
    %v3782 = vunpack.c.l.b16 %v3178
    %v3783 = vunpack.c.l.b16 %v3179
    %v3784 = vunpack.c.l.b16 %v3180
    %v3785 = vunpack.c.l.b16 %v3181
    %v3786 = vunpack.c.l.b16 %v3182
    %v3787 = vunpack.c.l.b16 %v3183
    %v3788 = vunpack.c.l.b16 %v3184
    %v3789 = vunpack.c.l.b16 %v3185
    %v3790 = vunpack.c.l.b16 %v3186
    %v3791 = vunpack.c.l.b16 %v3187
    %v3792 = vunpack.c.l.b16 %v3188
    %v3793 = vunpack.c.l.b16 %v3189
    %v3794 = vunpack.c.l.b16 %v3190
    %v3795 = vunpack.c.l.b16 %v3191
    %v3796 = vunpack.c.l.b16 %v3192
    %v3797 = vunpack.c.l.b16 %v3193
    %v3798 = vunpack.c.l.b16 %v3194
    %v3799 = vunpack.c.l.b16 %v3195
    %v3800 = vunpack.c.l.b16 %v3196
    %v3801 = vunpack.c.l.b16 %v3197
    %v3802 = vunpack.c.l.b16 %v3198
    %v3803 = vunpack.c.l.b16 %v3199
    %v3804 = vunpack.c.l.b16 %v3200
    %v3805 = vunpack.c.l.b16 %v3201
    %v3806 = vunpack.c.l.b16 %v3202
    %v3807 = vunpack.c.l.b16 %v3203
    %v3808 = vunpack.c.l.b16 %v3204
    %v3809 = vpack.c.b16 %v3730, %v3729
    %v3810 = vpack.c.b16 %v3732, %v3731
    %v3811 = vpack.c.b16 %v3734, %v3733
    %v3812 = vpack.c.b16 %v3736, %v3735
    %v3813 = vpack.c.b16 %v3738, %v3737
    %v3814 = vpack.c.b16 %v3740, %v3739
    %v3815 = vpack.c.b16 %v3742, %v3741
    %v3816 = vpack.c.b16 %v3744, %v3743
    %v3817 = vpack.c.b16 %v3746, %v3745
    %v3818 = vpack.c.b16 %v3748, %v3747
    %v3819 = vpack.c.b16 %v3750, %v3749
    %v3820 = vpack.c.b16 %v3752, %v3751
    %v3821 = vpack.c.b16 %v3754, %v3753
    %v3822 = vpack.c.b16 %v3756, %v3755
    %v3823 = vpack.c.b16 %v3758, %v3757
    %v3824 = vpack.c.b16 %v3760, %v3759
    %v3825 = vpack.c.b16 %v3762, %v3761
    %v3826 = vpack.c.b16 %v3764, %v3763
    %v3827 = vpack.c.b16 %v3766, %v3765
    %v3828 = vpack.c.b16 %v3768, %v3767
    %v3829 = vpack.c.b16 %v3770, %v3769
    %v3830 = vpack.c.b16 %v3772, %v3771
    %v3831 = vpack.c.b16 %v3774, %v3773
    %v3832 = vpack.c.b16 %v3776, %v3775
    %v3833 = vpack.c.b16 %v3778, %v3777
    %v3834 = vpack.c.b16 %v3780, %v3779
    %v3835 = vpack.c.b16 %v3782, %v3781
    %v3836 = vpack.c.b16 %v3784, %v3783
    %v3837 = vpack.c.b16 %v3786, %v3785
    %v3838 = vpack.c.b16 %v3788, %v3787
    %v3839 = vpack.c.b16 %v3790, %v3789
    %v3840 = vpack.c.b16 %v3792, %v3791
    %v3841 = vpack.c.b16 %v3794, %v3793
    %v3842 = vpack.c.b16 %v3796, %v3795
    %v3843 = vpack.c.b16 %v3798, %v3797
    %v3844 = vpack.c.b16 %v3800, %v3799
    %v3845 = vpack.c.b16 %v3802, %v3801
    %v3846 = vpack.c.b16 %v3804, %v3803
    %v3847 = vpack.c.b16 %v3806, %v3805
    %v3848 = vpack.c.b16 %v3808, %v3807
    %3889 = vmatprep.subr.bf16.mxu0 0
    %3890 = vmatpush1.bf16.msra.mxu0 %v3809
    %3891 = vmatprep.subr.bf16.mxu0 0
    %3892 = vmatpush1.bf16.msra.mxu0 %v3810
    %3893 = vmatprep.subr.bf16.mxu0 0
    %3894 = vmatpush1.bf16.msra.mxu0 %v3811
    %3895 = vmatprep.subr.bf16.mxu0 0
    %3896 = vmatpush1.bf16.msra.mxu0 %v3812
    %3897 = vmatprep.subr.bf16.mxu0 0
    %3898 = vmatpush1.bf16.msra.mxu0 %v3813
    %3899 = vmatprep.subr.bf16.mxu0 0
    %3900 = vmatpush1.bf16.msra.mxu0 %v3814
    %3901 = vmatprep.subr.bf16.mxu0 0
    %3902 = vmatpush1.bf16.msra.mxu0 %v3815
    %3903 = vmatprep.subr.bf16.mxu0 0
    %3904 = vmatpush1.bf16.msra.mxu0 %v3816
    %3905 = vmatprep.subr.bf16.mxu0 0
    %3906 = vmatpush1.bf16.msra.mxu0 %v3817
    %3907 = vmatprep.subr.bf16.mxu0 0
    %3908 = vmatpush1.bf16.msra.mxu0 %v3818
    %3909 = vmatprep.subr.bf16.mxu0 0
    %3910 = vmatpush1.bf16.msra.mxu0 %v3819
    %3911 = vmatprep.subr.bf16.mxu0 0
    %3912 = vmatpush1.bf16.msra.mxu0 %v3820
    %3913 = vmatprep.subr.bf16.mxu0 0
    %3914 = vmatpush1.bf16.msra.mxu0 %v3821
    %3915 = vmatprep.subr.bf16.mxu0 0
    %3916 = vmatpush1.bf16.msra.mxu0 %v3822
    %3917 = vmatprep.subr.bf16.mxu0 0
    %3918 = vmatpush1.bf16.msra.mxu0 %v3823
    %3919 = vmatprep.subr.bf16.mxu0 0
    %3920 = vmatpush1.bf16.msra.mxu0 %v3824
    %3921 = vmatprep.mubr.bf16.mxu0 %v3111
    %3922 = vmatmul.mubr.bf16.gmra.mrb[0].mxu0 %v3110
    %v3923 = vpop.f32.mrb[0].mxu0
    %v3924 = vadd.f32 %v3643, %v3923
    %v3925 = vpop.f32.mrb[0].mxu0
    %v3926 = vpop.f32.mrb[0].mxu0
    %v3927 = vadd.f32 %v3646, %v3926
    %v3928 = vpop.f32.mrb[0].mxu0
    %3929 = vdwg.mxu0
    %3930 = vmatprep.subr.bf16.mxu0 0
    %3931 = vmatpush1.bf16.msra.mxu0 %v3825
    %3932 = vmatprep.subr.bf16.mxu0 0
    %3933 = vmatpush1.bf16.msra.mxu0 %v3826
    %3934 = vmatprep.subr.bf16.mxu0 0
    %3935 = vmatpush1.bf16.msra.mxu0 %v3827
    %3936 = vmatprep.subr.bf16.mxu0 0
    %3937 = vmatpush1.bf16.msra.mxu0 %v3828
    %3938 = vmatprep.subr.bf16.mxu0 0
    %3939 = vmatpush1.bf16.msra.mxu0 %v3829
    %3940 = vmatprep.subr.bf16.mxu0 0
    %3941 = vmatpush1.bf16.msra.mxu0 %v3830
    %3942 = vmatprep.subr.bf16.mxu0 0
    %3943 = vmatpush1.bf16.msra.mxu0 %v3831
    %3944 = vmatprep.subr.bf16.mxu0 0
    %3945 = vmatpush1.bf16.msra.mxu0 %v3832
    %3946 = vmatprep.subr.bf16.mxu0 0
    %3947 = vmatpush1.bf16.msra.mxu0 %v3833
    %3948 = vmatprep.subr.bf16.mxu0 0
    %3949 = vmatpush1.bf16.msra.mxu0 %v3834
    %3950 = vmatprep.subr.bf16.mxu0 0
    %3951 = vmatpush1.bf16.msra.mxu0 %v3835
    %3952 = vmatprep.subr.bf16.mxu0 0
    %3953 = vmatpush1.bf16.msra.mxu0 %v3836
    %3954 = vmatprep.subr.bf16.mxu0 0
    %3955 = vmatpush1.bf16.msra.mxu0 %v3837
    %3956 = vmatprep.subr.bf16.mxu0 0
    %3957 = vmatpush1.bf16.msra.mxu0 %v3838
    %3958 = vmatprep.subr.bf16.mxu0 0
    %3959 = vmatpush1.bf16.msra.mxu0 %v3839
    %3960 = vmatprep.subr.bf16.mxu0 0
    %3961 = vmatpush1.bf16.msra.mxu0 %v3840
    %3962 = vmatprep.mubr.bf16.mxu0 %v3113
    %3963 = vmatmul.mubr.bf16.gmra.mrb[0].mxu0 %v3112
    %v3964 = vpop.f32.mrb[0].mxu0
    %v3965 = vadd.f32 %v3924, %v3964
    %v3966 = vpop.f32.mrb[0].mxu0
    %v3967 = vpop.f32.mrb[0].mxu0
    %v3968 = vadd.f32 %v3927, %v3967
    %v3969 = vpop.f32.mrb[0].mxu0
    %3970 = vdwg.mxu0
    %3971 = vmatprep.subr.bf16.mxu0 0
    %3972 = vmatpush1.bf16.msra.mxu0 %v3841
    %3973 = vmatprep.subr.bf16.mxu0 0
    %3974 = vmatpush1.bf16.msra.mxu0 %v3842
    %3975 = vmatprep.subr.bf16.mxu0 0
    %3976 = vmatpush1.bf16.msra.mxu0 %v3843
    %3977 = vmatprep.subr.bf16.mxu0 0
    %3978 = vmatpush1.bf16.msra.mxu0 %v3844
    %3979 = vmatprep.subr.bf16.mxu0 0
    %3980 = vmatpush1.bf16.msra.mxu0 %v3845
    %3981 = vmatprep.subr.bf16.mxu0 0
    %3982 = vmatpush1.bf16.msra.mxu0 %v3846
    %3983 = vmatprep.subr.bf16.mxu0 0
    %3984 = vmatpush1.bf16.msra.mxu0 %v3847
    %3985 = vmatprep.subr.bf16.mxu0 0
    %3986 = vmatpush1.bf16.msra.mxu0 %v3848
    %3987 = vmatprep.subr.bf16.mxu0 0
    %3988 = vmatpush1.bf16.msra.mxu0 0
    %3989 = vmatprep.subr.bf16.mxu0 0
    %3990 = vmatpush1.bf16.msra.mxu0 0
    %3991 = vmatprep.subr.bf16.mxu0 0
    %3992 = vmatpush1.bf16.msra.mxu0 0
    %3993 = vmatprep.subr.bf16.mxu0 0
    %3994 = vmatpush1.bf16.msra.mxu0 0
    %3995 = vmatprep.subr.bf16.mxu0 0
    %3996 = vmatpush1.bf16.msra.mxu0 0
    %3997 = vmatprep.subr.bf16.mxu0 0
    %3998 = vmatpush1.bf16.msra.mxu0 0
    %3999 = vmatprep.subr.bf16.mxu0 0
    %4000 = vmatpush1.bf16.msra.mxu0 0
    %4001 = vmatprep.subr.bf16.mxu0 0
    %4002 = vmatpush1.bf16.msra.mxu0 0
    %4003 = vmatprep.mubr.bf16.mxu0 0
    %4004 = vmatmul.mubr.bf16.gmra.mrb[0].mxu0 %v3114
    %v4005 = vpop.f32.mrb[0].mxu0
    %v4006 = vadd.f32 %v3965, %v4005
    %v4007 = vpop.f32.mrb[0].mxu0
    %v4008 = vpop.f32.mrb[0].mxu0
    %v4009 = vadd.f32 %v3968, %v4008
    %v4010 = vpop.f32.mrb[0].mxu0
    %4011 = vdwg.mxu0
    %s4012 = scalar_lea.vmem [#allocation10], 640
    %v4013 = vld [vmem:[%s4012] sm:$0xf]
    %v4014 = vld [vmem:[%s4012 + $0x4] sm:$0xf]
    %v4015 = vld [vmem:[%s4012 + $0x8] sm:$0xf]
    %v4016 = vld [vmem:[%s4012 + $0xc] sm:$0xf]
    %v4017 = vld [vmem:[%s4012 + $0x10] sm:$0xf]
    %v4018 = vld [vmem:[%s4012 + $0x14] sm:$0xf]
    %v4019 = vld [vmem:[%s4012 + $0x18] sm:$0xf]
    %v4020 = vld [vmem:[%s4012 + $0x1c] sm:$0xf]
    %v4021 = vld [vmem:[%s4012 + $0x20] sm:$0xf]
    %v4022 = vld [vmem:[%s4012 + $0x24] sm:$0xf]
    %v4023 = vld [vmem:[%s4012 + $0x28] sm:$0xf]
    %v4024 = vld [vmem:[%s4012 + $0x2c] sm:$0xf]
    %v4025 = vld [vmem:[%s4012 + $0x30] sm:$0xf]
    %v4026 = vld [vmem:[%s4012 + $0x34] sm:$0xf]
    %v4027 = vld [vmem:[%s4012 + $0x38] sm:$0xf]
    %v4028 = vld [vmem:[%s4012 + $0x3c] sm:$0xf]
    %v4029 = vld [vmem:[%s4012 + $0x40] sm:$0xf]
    %v4030 = vld [vmem:[%s4012 + $0x44] sm:$0xf]
    %v4031 = vld [vmem:[%s4012 + $0x48] sm:$0xf]
    %v4032 = vld [vmem:[%s4012 + $0x4c] sm:$0xf]
    %v4033 = vld [vmem:[%s4012 + $0x50] sm:$0xf]
    %v4034 = vld [vmem:[%s4012 + $0x54] sm:$0xf]
    %v4035 = vld [vmem:[%s4012 + $0x58] sm:$0xf]
    %v4036 = vld [vmem:[%s4012 + $0x5c] sm:$0xf]
    %v4037 = vld [vmem:[%s4012 + $0x60] sm:$0xf]
    %v4038 = vld [vmem:[%s4012 + $0x64] sm:$0xf]
    %v4039 = vld [vmem:[%s4012 + $0x68] sm:$0xf]
    %v4040 = vld [vmem:[%s4012 + $0x6c] sm:$0xf]
    %v4041 = vld [vmem:[%s4012 + $0x70] sm:$0xf]
    %v4042 = vld [vmem:[%s4012 + $0x74] sm:$0xf]
    %v4043 = vld [vmem:[%s4012 + $0x78] sm:$0xf]
    %v4044 = vld [vmem:[%s4012 + $0x7c] sm:$0xf]
    %v4045 = vld [vmem:[%s4012 + $0x80] sm:$0xf]
    %v4046 = vld [vmem:[%s4012 + $0x84] sm:$0xf]
    %v4047 = vld [vmem:[%s4012 + $0x88] sm:$0xf]
    %v4048 = vld [vmem:[%s4012 + $0x8c] sm:$0xf]
    %v4049 = vld [vmem:[%s4012 + $0x90] sm:$0xf]
    %v4050 = vld [vmem:[%s4012 + $0x94] sm:$0xf]
    %v4051 = vld [vmem:[%s4012 + $0x98] sm:$0xf]
    %v4052 = vld [vmem:[%s4012 + $0x9c] sm:$0xf]
    %v4053 = vld [vmem:[%s4012 + $0xa0] sm:$0xf]
    %v4054 = vld [vmem:[%s4012 + $0xa4] sm:$0xf]
    %v4055 = vld [vmem:[%s4012 + $0xa8] sm:$0xf]
    %v4056 = vld [vmem:[%s4012 + $0xac] sm:$0xf]
    %v4057 = vld [vmem:[%s4012 + $0xb0] sm:$0xf]
    %v4058 = vld [vmem:[%s4012 + $0xb4] sm:$0xf]
    %v4059 = vld [vmem:[%s4012 + $0xb8] sm:$0xf]
    %v4060 = vld [vmem:[%s4012 + $0xbc] sm:$0xf]
    %v4061 = vld [vmem:[%s4012 + $0xc0] sm:$0xf]
    %v4062 = vld [vmem:[%s4012 + $0xc4] sm:$0xf]
    %v4063 = vld [vmem:[%s4012 + $0xc8] sm:$0xf]
    %v4064 = vld [vmem:[%s4012 + $0xcc] sm:$0xf]
    %v4065 = vld [vmem:[%s4012 + $0xd0] sm:$0xf]
    %v4066 = vld [vmem:[%s4012 + $0xd4] sm:$0xf]
    %v4067 = vld [vmem:[%s4012 + $0xd8] sm:$0xf]
    %v4068 = vld [vmem:[%s4012 + $0xdc] sm:$0xf]
    %v4069 = vld [vmem:[%s4012 + $0xe0] sm:$0xf]
    %v4070 = vld [vmem:[%s4012 + $0xe4] sm:$0xf]
    %v4071 = vld [vmem:[%s4012 + $0xe8] sm:$0xf]
    %v4072 = vld [vmem:[%s4012 + $0xec] sm:$0xf]
    %v4073 = vld [vmem:[%s4012 + $0xf0] sm:$0xf]
    %v4074 = vld [vmem:[%s4012 + $0xf4] sm:$0xf]
    %v4075 = vld [vmem:[%s4012 + $0xf8] sm:$0xf]
    %v4076 = vld [vmem:[%s4012 + $0xfc] sm:$0xf]
    %v4077 = vld [vmem:[%s4012 + $0x100] sm:$0xf]
    %v4078 = vld [vmem:[%s4012 + $0x104] sm:$0xf]
    %v4079 = vld [vmem:[%s4012 + $0x108] sm:$0xf]
    %v4080 = vld [vmem:[%s4012 + $0x10c] sm:$0xf]
    %v4081 = vld [vmem:[%s4012 + $0x110] sm:$0xf]
    %v4082 = vld [vmem:[%s4012 + $0x114] sm:$0xf]
    %v4083 = vld [vmem:[%s4012 + $0x118] sm:$0xf]
    %v4084 = vld [vmem:[%s4012 + $0x11c] sm:$0xf]
    %v4085 = vld [vmem:[%s4012 + $0x120] sm:$0xf]
    %v4086 = vld [vmem:[%s4012 + $0x124] sm:$0xf]
    %v4087 = vld [vmem:[%s4012 + $0x128] sm:$0xf]
    %v4088 = vld [vmem:[%s4012 + $0x12c] sm:$0xf]
    %v4089 = vld [vmem:[%s4012 + $0x130] sm:$0xf]
    %v4090 = vld [vmem:[%s4012 + $0x134] sm:$0xf]
    %v4091 = vld [vmem:[%s4012 + $0x138] sm:$0xf]
    %v4092 = vld [vmem:[%s4012 + $0x13c] sm:$0xf]
    %v4173 = vunpack.c.l.b16 %v4013
    %v4174 = vunpack.c.l.b16 %v4014
    %v4175 = vunpack.c.l.b16 %v4015
    %v4176 = vunpack.c.l.b16 %v4016
    %v4177 = vunpack.c.l.b16 %v4017
    %v4178 = vunpack.c.l.b16 %v4018
    %v4179 = vunpack.c.l.b16 %v4019
    %v4180 = vunpack.c.l.b16 %v4020
    %v4181 = vunpack.c.l.b16 %v4021
    %v4182 = vunpack.c.l.b16 %v4022
    %v4183 = vunpack.c.l.b16 %v4023
    %v4184 = vunpack.c.l.b16 %v4024
    %v4185 = vunpack.c.l.b16 %v4025
    %v4186 = vunpack.c.l.b16 %v4026
    %v4187 = vunpack.c.l.b16 %v4027
    %v4188 = vunpack.c.l.b16 %v4028
    %v4189 = vunpack.c.l.b16 %v4029
    %v4190 = vunpack.c.l.b16 %v4030
    %v4191 = vunpack.c.l.b16 %v4031
    %v4192 = vunpack.c.l.b16 %v4032
    %v4193 = vunpack.c.l.b16 %v4033
    %v4194 = vunpack.c.l.b16 %v4034
    %v4195 = vunpack.c.l.b16 %v4035
    %v4196 = vunpack.c.l.b16 %v4036
    %v4197 = vunpack.c.l.b16 %v4037
    %v4198 = vunpack.c.l.b16 %v4038
    %v4199 = vunpack.c.l.b16 %v4039
    %v4200 = vunpack.c.l.b16 %v4040
    %v4201 = vunpack.c.l.b16 %v4041
    %v4202 = vunpack.c.l.b16 %v4042
    %v4203 = vunpack.c.l.b16 %v4043
    %v4204 = vunpack.c.l.b16 %v4044
    %v4205 = vunpack.c.l.b16 %v4045
    %v4206 = vunpack.c.l.b16 %v4046
    %v4207 = vunpack.c.l.b16 %v4047
    %v4208 = vunpack.c.l.b16 %v4048
    %v4209 = vunpack.c.l.b16 %v4049
    %v4210 = vunpack.c.l.b16 %v4050
    %v4211 = vunpack.c.l.b16 %v4051
    %v4212 = vunpack.c.l.b16 %v4052
    %v4213 = vunpack.c.l.b16 %v4053
    %v4214 = vunpack.c.l.b16 %v4054
    %v4215 = vunpack.c.l.b16 %v4055
    %v4216 = vunpack.c.l.b16 %v4056
    %v4217 = vunpack.c.l.b16 %v4057
    %v4218 = vunpack.c.l.b16 %v4058
    %v4219 = vunpack.c.l.b16 %v4059
    %v4220 = vunpack.c.l.b16 %v4060
    %v4221 = vunpack.c.l.b16 %v4061
    %v4222 = vunpack.c.l.b16 %v4062
    %v4223 = vunpack.c.l.b16 %v4063
    %v4224 = vunpack.c.l.b16 %v4064
    %v4225 = vunpack.c.l.b16 %v4065
    %v4226 = vunpack.c.l.b16 %v4066
    %v4227 = vunpack.c.l.b16 %v4067
    %v4228 = vunpack.c.l.b16 %v4068
    %v4229 = vunpack.c.l.b16 %v4069
    %v4230 = vunpack.c.l.b16 %v4070
    %v4231 = vunpack.c.l.b16 %v4071
    %v4232 = vunpack.c.l.b16 %v4072
    %v4233 = vunpack.c.l.b16 %v4073
    %v4234 = vunpack.c.l.b16 %v4074
    %v4235 = vunpack.c.l.b16 %v4075
    %v4236 = vunpack.c.l.b16 %v4076
    %v4237 = vunpack.c.l.b16 %v4077
    %v4238 = vunpack.c.l.b16 %v4078
    %v4239 = vunpack.c.l.b16 %v4079
    %v4240 = vunpack.c.l.b16 %v4080
    %v4241 = vunpack.c.l.b16 %v4081
    %v4242 = vunpack.c.l.b16 %v4082
    %v4243 = vunpack.c.l.b16 %v4083
    %v4244 = vunpack.c.l.b16 %v4084
    %v4245 = vunpack.c.l.b16 %v4085
    %v4246 = vunpack.c.l.b16 %v4086
    %v4247 = vunpack.c.l.b16 %v4087
    %v4248 = vunpack.c.l.b16 %v4088
    %v4249 = vunpack.c.l.b16 %v4089
    %v4250 = vunpack.c.l.b16 %v4090
    %v4251 = vunpack.c.l.b16 %v4091
    %v4252 = vunpack.c.l.b16 %v4092
    %v4253 = vpack.c.b16 %v4174, %v4173
    %v4254 = vpack.c.b16 %v4176, %v4175
    %v4255 = vpack.c.b16 %v4178, %v4177
    %v4256 = vpack.c.b16 %v4180, %v4179
    %v4257 = vpack.c.b16 %v4182, %v4181
    %v4258 = vpack.c.b16 %v4184, %v4183
    %v4259 = vpack.c.b16 %v4186, %v4185
    %v4260 = vpack.c.b16 %v4188, %v4187
    %v4261 = vpack.c.b16 %v4190, %v4189
    %v4262 = vpack.c.b16 %v4192, %v4191
    %v4263 = vpack.c.b16 %v4194, %v4193
    %v4264 = vpack.c.b16 %v4196, %v4195
    %v4265 = vpack.c.b16 %v4198, %v4197
    %v4266 = vpack.c.b16 %v4200, %v4199
    %v4267 = vpack.c.b16 %v4202, %v4201
    %v4268 = vpack.c.b16 %v4204, %v4203
    %v4269 = vpack.c.b16 %v4206, %v4205
    %v4270 = vpack.c.b16 %v4208, %v4207
    %v4271 = vpack.c.b16 %v4210, %v4209
    %v4272 = vpack.c.b16 %v4212, %v4211
    %v4273 = vpack.c.b16 %v4214, %v4213
    %v4274 = vpack.c.b16 %v4216, %v4215
    %v4275 = vpack.c.b16 %v4218, %v4217
    %v4276 = vpack.c.b16 %v4220, %v4219
    %v4277 = vpack.c.b16 %v4222, %v4221
    %v4278 = vpack.c.b16 %v4224, %v4223
    %v4279 = vpack.c.b16 %v4226, %v4225
    %v4280 = vpack.c.b16 %v4228, %v4227
    %v4281 = vpack.c.b16 %v4230, %v4229
    %v4282 = vpack.c.b16 %v4232, %v4231
    %v4283 = vpack.c.b16 %v4234, %v4233
    %v4284 = vpack.c.b16 %v4236, %v4235
    %v4285 = vpack.c.b16 %v4238, %v4237
    %v4286 = vpack.c.b16 %v4240, %v4239
    %v4287 = vpack.c.b16 %v4242, %v4241
    %v4288 = vpack.c.b16 %v4244, %v4243
    %v4289 = vpack.c.b16 %v4246, %v4245
    %v4290 = vpack.c.b16 %v4248, %v4247
    %v4291 = vpack.c.b16 %v4250, %v4249
    %v4292 = vpack.c.b16 %v4252, %v4251
    %4333 = vmatprep.subr.bf16.mxu0 0
    %4334 = vmatpush1.bf16.msra.mxu0 %v4253
    %4335 = vmatprep.subr.bf16.mxu0 0
    %4336 = vmatpush1.bf16.msra.mxu0 %v4254
    %4337 = vmatprep.subr.bf16.mxu0 0
    %4338 = vmatpush1.bf16.msra.mxu0 %v4255
    %4339 = vmatprep.subr.bf16.mxu0 0
    %4340 = vmatpush1.bf16.msra.mxu0 %v4256
    %4341 = vmatprep.subr.bf16.mxu0 0
    %4342 = vmatpush1.bf16.msra.mxu0 %v4257
    %4343 = vmatprep.subr.bf16.mxu0 0
    %4344 = vmatpush1.bf16.msra.mxu0 %v4258
    %4345 = vmatprep.subr.bf16.mxu0 0
    %4346 = vmatpush1.bf16.msra.mxu0 %v4259
    %4347 = vmatprep.subr.bf16.mxu0 0
    %4348 = vmatpush1.bf16.msra.mxu0 %v4260
    %4349 = vmatprep.subr.bf16.mxu0 0
    %4350 = vmatpush1.bf16.msra.mxu0 %v4261
    %4351 = vmatprep.subr.bf16.mxu0 0
    %4352 = vmatpush1.bf16.msra.mxu0 %v4262
    %4353 = vmatprep.subr.bf16.mxu0 0
    %4354 = vmatpush1.bf16.msra.mxu0 %v4263
    %4355 = vmatprep.subr.bf16.mxu0 0
    %4356 = vmatpush1.bf16.msra.mxu0 %v4264
    %4357 = vmatprep.subr.bf16.mxu0 0
    %4358 = vmatpush1.bf16.msra.mxu0 %v4265
    %4359 = vmatprep.subr.bf16.mxu0 0
    %4360 = vmatpush1.bf16.msra.mxu0 %v4266
    %4361 = vmatprep.subr.bf16.mxu0 0
    %4362 = vmatpush1.bf16.msra.mxu0 %v4267
    %4363 = vmatprep.subr.bf16.mxu0 0
    %4364 = vmatpush1.bf16.msra.mxu0 %v4268
    %4365 = vmatprep.mubr.bf16.mxu0 %v3121
    %4366 = vmatmul.mubr.bf16.gmra.mrb[0].mxu0 %v3120
    %v4367 = vpop.f32.mrb[0].mxu0
    %v4368 = vadd.f32 0.0, %v4367
    %v4369 = vpop.f32.mrb[0].mxu0
    %v4370 = vpop.f32.mrb[0].mxu0
    %v4371 = vadd.f32 0.0, %v4370
    %v4372 = vpop.f32.mrb[0].mxu0
    %4373 = vdwg.mxu0
    %4374 = vmatprep.subr.bf16.mxu0 0
    %4375 = vmatpush1.bf16.msra.mxu0 %v4269
    %4376 = vmatprep.subr.bf16.mxu0 0
    %4377 = vmatpush1.bf16.msra.mxu0 %v4270
    %4378 = vmatprep.subr.bf16.mxu0 0
    %4379 = vmatpush1.bf16.msra.mxu0 %v4271
    %4380 = vmatprep.subr.bf16.mxu0 0
    %4381 = vmatpush1.bf16.msra.mxu0 %v4272
    %4382 = vmatprep.subr.bf16.mxu0 0
    %4383 = vmatpush1.bf16.msra.mxu0 %v4273
    %4384 = vmatprep.subr.bf16.mxu0 0
    %4385 = vmatpush1.bf16.msra.mxu0 %v4274
    %4386 = vmatprep.subr.bf16.mxu0 0
    %4387 = vmatpush1.bf16.msra.mxu0 %v4275
    %4388 = vmatprep.subr.bf16.mxu0 0
    %4389 = vmatpush1.bf16.msra.mxu0 %v4276
    %4390 = vmatprep.subr.bf16.mxu0 0
    %4391 = vmatpush1.bf16.msra.mxu0 %v4277
    %4392 = vmatprep.subr.bf16.mxu0 0
    %4393 = vmatpush1.bf16.msra.mxu0 %v4278
    %4394 = vmatprep.subr.bf16.mxu0 0
    %4395 = vmatpush1.bf16.msra.mxu0 %v4279
    %4396 = vmatprep.subr.bf16.mxu0 0
    %4397 = vmatpush1.bf16.msra.mxu0 %v4280
    %4398 = vmatprep.subr.bf16.mxu0 0
    %4399 = vmatpush1.bf16.msra.mxu0 %v4281
    %4400 = vmatprep.subr.bf16.mxu0 0
    %4401 = vmatpush1.bf16.msra.mxu0 %v4282
    %4402 = vmatprep.subr.bf16.mxu0 0
    %4403 = vmatpush1.bf16.msra.mxu0 %v4283
    %4404 = vmatprep.subr.bf16.mxu0 0
    %4405 = vmatpush1.bf16.msra.mxu0 %v4284
    %4406 = vmatprep.mubr.bf16.mxu0 %v3123
    %4407 = vmatmul.mubr.bf16.gmra.mrb[0].mxu0 %v3122
    %v4408 = vpop.f32.mrb[0].mxu0
    %v4409 = vadd.f32 %v4368, %v4408
    %v4410 = vpop.f32.mrb[0].mxu0
    %v4411 = vpop.f32.mrb[0].mxu0
    %v4412 = vadd.f32 %v4371, %v4411
    %v4413 = vpop.f32.mrb[0].mxu0
    %4414 = vdwg.mxu0
    %4415 = vmatprep.subr.bf16.mxu0 0
    %4416 = vmatpush1.bf16.msra.mxu0 %v4285
    %4417 = vmatprep.subr.bf16.mxu0 0
    %4418 = vmatpush1.bf16.msra.mxu0 %v4286
    %4419 = vmatprep.subr.bf16.mxu0 0
    %4420 = vmatpush1.bf16.msra.mxu0 %v4287
    %4421 = vmatprep.subr.bf16.mxu0 0
    %4422 = vmatpush1.bf16.msra.mxu0 %v4288
    %4423 = vmatprep.subr.bf16.mxu0 0
    %4424 = vmatpush1.bf16.msra.mxu0 %v4289
    %4425 = vmatprep.subr.bf16.mxu0 0
    %4426 = vmatpush1.bf16.msra.mxu0 %v4290
    %4427 = vmatprep.subr.bf16.mxu0 0
    %4428 = vmatpush1.bf16.msra.mxu0 %v4291
    %4429 = vmatprep.subr.bf16.mxu0 0
    %4430 = vmatpush1.bf16.msra.mxu0 %v4292
    %4431 = vmatprep.subr.bf16.mxu0 0
    %4432 = vmatpush1.bf16.msra.mxu0 0
    %4433 = vmatprep.subr.bf16.mxu0 0
    %4434 = vmatpush1.bf16.msra.mxu0 0
    %4435 = vmatprep.subr.bf16.mxu0 0
    %4436 = vmatpush1.bf16.msra.mxu0 0
    %4437 = vmatprep.subr.bf16.mxu0 0
    %4438 = vmatpush1.bf16.msra.mxu0 0
    %4439 = vmatprep.subr.bf16.mxu0 0
    %4440 = vmatpush1.bf16.msra.mxu0 0
    %4441 = vmatprep.subr.bf16.mxu0 0
    %4442 = vmatpush1.bf16.msra.mxu0 0
    %4443 = vmatprep.subr.bf16.mxu0 0
    %4444 = vmatpush1.bf16.msra.mxu0 0
    %4445 = vmatprep.subr.bf16.mxu0 0
    %4446 = vmatpush1.bf16.msra.mxu0 0
    %4447 = vmatprep.mubr.bf16.mxu0 0
    %4448 = vmatmul.mubr.bf16.gmra.mrb[0].mxu0 %v3124
    %v4449 = vpop.f32.mrb[0].mxu0
    %v4450 = vadd.f32 %v4409, %v4449
    %v4451 = vpop.f32.mrb[0].mxu0
    %v4452 = vpop.f32.mrb[0].mxu0
    %v4453 = vadd.f32 %v4412, %v4452
    %v4454 = vpop.f32.mrb[0].mxu0
    %4455 = vdwg.mxu0
    %v4456 = vadd.f32 %v4006, %v4450
    %v4457 = vadd.f32 %v4009, %v4453
    %v4458 = vld [vmem:[%s8] sm:$0x1]
    %v4460 = vlaneseq
    %v4461 = vshrl.u32 %v4460, 7
    %v4462 = vsub.s32 0, %v4461
    %v4463 = vrot.slane %v4458, %v4462
    %v4465 = vadd.f32 %v4456, %v4463
    %v4466 = vadd.f32 %v4457, %v4463
    %v4467 = vmax.f32 %v4465, 0.0
    %v4468 = vmax.f32 %v4466, 0.0
    %v4469 = vpack.c.bf16 %v4468, %v4467
    %v4470 = vld [vmem:[#allocation11] sm:$0xf]
    %v4471 = vld [vmem:[#allocation11 + $0x4] sm:$0xf]
    %v4472 = vld [vmem:[#allocation11 + $0x8] sm:$0xf]
    %v4473 = vld [vmem:[#allocation11 + $0xc] sm:$0xf]
    %v4474 = vld [vmem:[#allocation11 + $0x10] sm:$0xf]
    %v4475 = vld [vmem:[#allocation11 + $0x14] sm:$0xf]
    %v4476 = vld [vmem:[#allocation11 + $0x18] sm:$0xf]
    %v4477 = vld [vmem:[#allocation11 + $0x1c] sm:$0xf]
    %v4478 = vld [vmem:[#allocation11 + $0x20] sm:$0xf]
    %v4479 = vld [vmem:[#allocation11 + $0x24] sm:$0xf]
    %v4480 = vld [vmem:[#allocation11 + $0x28] sm:$0xf]
    %v4481 = vld [vmem:[#allocation11 + $0x2c] sm:$0xf]
    %v4482 = vld [vmem:[#allocation11 + $0x30] sm:$0xf]
    %v4483 = vld [vmem:[#allocation11 + $0x34] sm:$0xf]
    %v4484 = vld [vmem:[#allocation11 + $0x38] sm:$0xf]
    %v4485 = vld [vmem:[#allocation11 + $0x3c] sm:$0xf]
    %v4486 = vld [vmem:[%s10] sm:$0x1]
    %v4488 = vlaneseq
    %v4489 = vshrl.u32 %v4488, 7
    %v4490 = vsub.s32 0, %v4489
    %v4491 = vrot.slane %v4486, %v4490
    %v4509 = vunpack.c.l.b16 %v4470
    %v4510 = vunpack.c.l.b16 %v4471
    %v4511 = vunpack.c.l.b16 %v4472
    %v4512 = vunpack.c.l.b16 %v4473
    %v4513 = vunpack.c.l.b16 %v4474
    %v4514 = vunpack.c.l.b16 %v4475
    %v4515 = vunpack.c.l.b16 %v4476
    %v4516 = vunpack.c.l.b16 %v4477
    %v4517 = vunpack.c.l.b16 %v4478
    %v4518 = vunpack.c.l.b16 %v4479
    %v4519 = vunpack.c.l.b16 %v4480
    %v4520 = vunpack.c.l.b16 %v4481
    %v4521 = vunpack.c.l.b16 %v4482
    %v4522 = vunpack.c.l.b16 %v4483
    %v4523 = vunpack.c.l.b16 %v4484
    %v4524 = vunpack.c.l.b16 %v4485
    %v4525 = vpack.c.b16 %v4510, %v4509
    %v4526 = vpack.c.b16 %v4512, %v4511
    %v4527 = vpack.c.b16 %v4514, %v4513
    %v4528 = vpack.c.b16 %v4516, %v4515
    %v4529 = vpack.c.b16 %v4518, %v4517
    %v4530 = vpack.c.b16 %v4520, %v4519
    %v4531 = vpack.c.b16 %v4522, %v4521
    %v4532 = vpack.c.b16 %v4524, %v4523
    %4541 = vmatprep.subr.bf16.mxu0 0
    %4542 = vmatpush1.bf16.msra.mxu0 %v4525
    %4543 = vmatprep.subr.bf16.mxu0 0
    %4544 = vmatpush1.bf16.msra.mxu0 %v4526
    %4545 = vmatprep.subr.bf16.mxu0 0
    %4546 = vmatpush1.bf16.msra.mxu0 %v4527
    %4547 = vmatprep.subr.bf16.mxu0 0
    %4548 = vmatpush1.bf16.msra.mxu0 %v4528
    %4549 = vmatprep.subr.bf16.mxu0 0
    %4550 = vmatpush1.bf16.msra.mxu0 %v4529
    %4551 = vmatprep.subr.bf16.mxu0 0
    %4552 = vmatpush1.bf16.msra.mxu0 %v4530
    %4553 = vmatprep.subr.bf16.mxu0 0
    %4554 = vmatpush1.bf16.msra.mxu0 %v4531
    %4555 = vmatprep.subr.bf16.mxu0 0
    %4556 = vmatpush1.bf16.msra.mxu0 %v4532
    %4557 = vmatprep.subr.bf16.mxu0 0
    %4558 = vmatpush1.bf16.msra.mxu0 0
    %4559 = vmatprep.subr.bf16.mxu0 0
    %4560 = vmatpush1.bf16.msra.mxu0 0
    %4561 = vmatprep.subr.bf16.mxu0 0
    %4562 = vmatpush1.bf16.msra.mxu0 0
    %4563 = vmatprep.subr.bf16.mxu0 0
    %4564 = vmatpush1.bf16.msra.mxu0 0
    %4565 = vmatprep.subr.bf16.mxu0 0
    %4566 = vmatpush1.bf16.msra.mxu0 0
    %4567 = vmatprep.subr.bf16.mxu0 0
    %4568 = vmatpush1.bf16.msra.mxu0 0
    %4569 = vmatprep.subr.bf16.mxu0 0
    %4570 = vmatpush1.bf16.msra.mxu0 0
    %4571 = vmatprep.subr.bf16.mxu0 0
    %4572 = vmatpush1.bf16.msra.mxu0 0
    %4573 = vmatprep.mubr.bf16.mxu0 0
    %4574 = vmatmul.mubr.bf16.gmra.mrb[0].mxu0 %v4469
    %v4575 = vpop.f32.mrb[0].mxu0
    %v4576 = vadd.f32 %v4491, %v4575
    %v4577 = vpop.f32.mrb[0].mxu0
    %v4578 = vpop.f32.mrb[0].mxu0
    %v4579 = vadd.f32 %v4491, %v4578
    %v4580 = vpop.f32.mrb[0].mxu0
    %4581 = vdwg.mxu0
    %4582 = vst [vmem:[#allocation13] sm:$0xff] %v4576
    %4583 = vst [vmem:[#allocation13 + $0x8] sm:$0xff] %v4579
    // Predicated region
    $region70: #{tpu_custom_call.1} parent=1 // pred_check
      _
    $region71: #{tpu_custom_call.1} parent=1 // pred_check_branch
      %4585 = sbr.rel (0) target = $region73
    $region72: #{tpu_custom_call.1} parent=1 // pred_region
      %s4587 = ssub.s32 256, 256
      %4588 = vsyncadd [#allocation4], %s4587
      %s4589 = sshll.u32 [#allocation13], 4
      %s4590 = int_to_ptr.vmem [resolvable:$true] %s4589
      %4595 = dma.vmem_to_hbm [thread:$0]  %s4590, 256, %s11, [#allocation4], 128, 128, 8
    $region73: #{tpu_custom_call.1} parent=1 // pred_fallthru
      _
    // Predicated region
    $region74: #{tpu_custom_call.1} parent=1 // pred_check
      _
    $region75: #{tpu_custom_call.1} parent=1 // pred_check_branch
      %4597 = sbr.rel (0) target = $region77
    $region76: #{tpu_custom_call.1} parent=1 // pred_region
      %4598 = dma.done [#allocation4], 256
    $region77: #{tpu_custom_call.1} parent=1 // pred_fallthru
      _
    %4599 = vsyncpa [#allocation3], 1
    %4600 = vsyncpa [#allocation6], 1
    %4601 = vsyncpa [#allocation9], 1
    %4602 = vsyncpa [#allocation12], 1
    %4603 = vsyncpa [#allocation4], 1

</llo_original>
